<compile_context>
chip_gen: v7x
topology: tpu7x:2x2x1
jax: 0.10.0
libtpu: 0.0.40
codegen_flags: <defaults>
</compile_context>

<pallas_src>
import functools

import jax
import jax.numpy as jnp
from jax.experimental import pallas as pl
from jax.experimental.pallas import tpu as pltpu


NEG_MASK = jnp.float32(-1.0e9)   # value used by torch masked_fill in the module


def _round_up(a, m):
    return ((a + m - 1) // m) * m


# --------------------------------------------------------------------------
# Generation-aware tiling
# --------------------------------------------------------------------------
def _tpu_vmem_capacity():
    """Per-TensorCore VMEM bytes; conservative (v7x-sized) fallback."""
    try:
        return int(pltpu.get_tpu_info().vmem_capacity_bytes)
    except Exception:
        return 64 * 1024 * 1024


def _derive_tiling(B, Sp, H, MID, G, OUTp, x_bytes, w_bytes):
    """Pick the batch block TB, padded batch Bp and vmem_limit_bytes from the
    problem shapes and the detected VMEM capacity (no hand retuning per gen)."""
    vmem_cap = _tpu_vmem_capacity()
    # Leave >=25% physical headroom; never ask for more than 96 MiB.
    # -> ~96 MiB budget on v5e/v6e (128 MiB physical), ~48 MiB on v7x (64 MiB).
    budget = min(96 << 20, (vmem_cap * 3) // 4)

    lane = 128
    Gp = _round_up(G, 8)
    Sl = _round_up(Sp, lane)
    Hl = _round_up(H, lane)

    # Grid-invariant weights.  Counted double-buffered as a safety margin even
    # though we request pl.Buffered(1) for them.
    weight_bytes = 2 * ((H * MID + MID * G + G * H * OUTp) * w_bytes
                        + (MID + lane + OUTp) * 4)

    # VMEM per batch row: pipelined blocks (x2 buffers) + in-kernel temporaries.
    per_row = (
        2 * Sp * H * x_bytes       # x block (double-buffered)
        + 2 * Sp * 4               # mask-bias block (f32)
        + 2 * OUTp * 4             # output block (f32)
        + Sp * MID * 4             # h = relu(x@w1+b1), f32 accumulation
        + Sp * MID * w_bytes       # h cast back for the 2nd matmul
        + Sp * lane * 4            # (S, G) logits, lane-padded to 128
        + 3 * Gp * Sl * 4          # transposed logits / exp / probs
        + Gp * Hl * 4              # per-glimpse weighted sums (TB, G, H)
        + 2 * OUTp * 4             # merge accumulator / store temp
    )

    tb = (budget - weight_bytes) // max(per_row, 1)
    tb = int(max(8, min(256, tb)) // 8 * 8)      # multiple of 8, capped at 256
    tb = min(tb, _round_up(B, 8))                # never bigger than the batch

    # v7x-class chips (~64 MiB VMEM per TC) have 2 TensorCores per chip: keep
    # at least two grid steps so the "parallel" batch axis shards across them.
    if vmem_cap <= (80 << 20) and B > 8:
        tb = min(tb, max(8, _round_up(-(-B // 2), 8)))

    Bp = _round_up(B, tb)
    need = weight_bytes + tb * per_row
    vmem_limit = max(16 << 20, min(budget, need + need // 4 + (4 << 20)))
    return tb, Bp, int(vmem_limit)


# --------------------------------------------------------------------------
# Kernel
# --------------------------------------------------------------------------
def attflat_kernel(x_ref, mbias_ref, w1_ref, b1_ref, w2_ref, b2_ref,
                   wm_ref, bm_ref, out_ref, *, compute_dtype):
    """One grid step: a (TB, Sp, H) block of batch rows."""
    TB, S, H = x_ref.shape
    G = wm_ref.shape[0]

    xc = x_ref[...]                                   # (TB, S, H), compute_dtype
    x2d = xc.reshape(TB * S, H)                       # token-major for the MXU

    # ---- MLP: Linear(H -> MID) -> ReLU -> Linear(MID -> G), f32 accumulation
    # TODO(synk): training-mode dropout (DROPOUT_R) not implemented; eval-mode.
    h = jnp.dot(x2d, w1_ref[...], preferred_element_type=jnp.float32) + b1_ref[...]
    h = jnp.maximum(h, 0.0)                           # (TB*S, MID) f32
    # Audit note (perf review): N=G(=2) makes this a tiny-N MXU pass; at
    # production sizes confirm it hides under DMA, else consider a VPU path.
    att = jnp.dot(h.astype(compute_dtype), w2_ref[...],
                  preferred_element_type=jnp.float32) + b2_ref[...]   # (TB*S, G)

    # ---- put the sequence axis on LANES before the softmax ----
    att = jnp.swapaxes(att.reshape(TB, S, G), 1, 2)   # (TB, G, S) f32

    # ---- masked_fill(mask, -1e9) as a lane-dense additive bias
    #      (sequence-pad positions carry -inf -> exactly zero weight) ----
    att = att + mbias_ref[...][:, None, :]            # (TB, G, S)

    # ---- softmax over the sequence (lane) axis, f32; cheap XLU reductions ----
    m = jnp.max(att, axis=-1, keepdims=True)          # (TB, G, 1)
    e = jnp.exp(att - m)
    denom = jnp.sum(e, axis=-1, keepdims=True)        # (TB, G, 1)
    inv = pl.reciprocal(denom, approx=True)           # EUP, 1/S as many elems
    inv = inv * (2.0 - denom * inv)                   # one Newton step (~f32)
    p = e * inv                                       # (TB, G, S)

    # ---- per-glimpse weighted sums on the MXU: (TB, G, S) @ (TB, S, H) ----
    # Audit note (perf review): only M=G rows per pass; move to the VPU
    # (broadcast-multiply + sum over S) if MXU occupancy shows it binds.
    x_att = jax.lax.dot_general(
        p.astype(compute_dtype), xc,
        dimension_numbers=(((2,), (1,)), ((0,), (0,))),
        preferred_element_type=jnp.float32)           # (TB, G, H)

    # ---- linear_merge: glimpse-major concat folded into G small matmuls;
    #      accumulator initialized from the bias (saves one full-tile add) ----
    acc = jnp.broadcast_to(bm_ref[...], out_ref.shape).astype(jnp.float32)
    for g in range(G):                                # G tiny (2) -> unrolled
        acc = acc + jnp.dot(x_att[:, g, :].astype(compute_dtype), wm_ref[g],
                            preferred_element_type=jnp.float32)
    out_ref[...] = acc.astype(out_ref.dtype)


# --------------------------------------------------------------------------
# Wrapper
# --------------------------------------------------------------------------
def attflat_pallas(x, x_mask, params, compute_dtype=jnp.bfloat16):
    """AttFlat forward.

    x:      (B, S, H) f32
    x_mask: (B, 1, 1, S) bool, True = padded (as in the PyTorch module)
    params: (w1, b1, w2, b2, wm, bm); weights stored (in, out):
            w1 (H, MID), b1 (1, MID), w2 (MID, G), b2 (1, G),
            wm (G*H, OUT) with glimpse-major rows, bm (1, OUT)
    compute_dtype: storage + matmul-operand dtype for x and the weights
            (bf16 recommended: halves the dominant HBM traffic and runs the
            v6e/v7x MXU at full rate); accumulation/softmax stay f32.
    """
    w1, b1, w2, b2, wm, bm = params
    B, S, H = x.shape
    MID = w1.shape[1]
    G = w2.shape[1]
    OUT = wm.shape[1]

    x_bytes = jnp.dtype(compute_dtype).itemsize
    sub = 16 if x_bytes < 4 else 8                    # bf16 packs 2 rows/sublane
    Sp = _round_up(max(S, sub), sub)
    OUTp = _round_up(OUT, 128)                        # lane-dense output block

    TB, Bp, vmem_limit = _derive_tiling(B, Sp, H, MID, G, OUTp, x_bytes, x_bytes)

    # x in compute_dtype in HBM (the old in-kernel astype did not reduce DMA).
    xc = x.astype(compute_dtype)

    # Lane-dense additive mask bias (f32): -1e9 at masked positions.
    mask_bias = jnp.where(x_mask.reshape(B, S), NEG_MASK,
                          jnp.float32(0.0)).astype(jnp.float32)

    # Pad S; pad positions get -inf so they contribute exactly zero softmax
    # weight (keeps fully-masked rows identical to PyTorch's 1/S uniform case).
    if Sp != S:
        xc = jnp.pad(xc, ((0, 0), (0, Sp - S), (0, 0)))
        mask_bias = jnp.pad(mask_bias, ((0, 0), (0, Sp - S)),
                            constant_values=-jnp.inf)

    # Pad the batch to a multiple of TB (pad rows: zero x, zero bias).
    if Bp != B:
        xc = jnp.pad(xc, ((0, Bp - B), (0, 0), (0, 0)))
        mask_bias = jnp.pad(mask_bias, ((0, Bp - B), (0, 0)))

    # linear_merge weight viewed glimpse-major (G, H, OUT), lane-padded.
    wm3 = wm.reshape(G, H, OUT)
    if OUTp != OUT:
        wm3 = jnp.pad(wm3, ((0, 0), (0, 0), (0, OUTp - OUT)))
        bm = jnp.pad(bm, ((0, 0), (0, OUTp - OUT)))

    # Weights in compute_dtype; biases stay f32 (added to f32 accumulators).
    w1c = w1.astype(compute_dtype)
    w2c = w2.astype(compute_dtype)
    wm3c = wm3.astype(compute_dtype)
    b1f = b1.astype(jnp.float32)
    b2f = b2.astype(jnp.float32)
    bmf = bm.astype(jnp.float32)

    grid = (Bp // TB,)
    kernel = functools.partial(attflat_kernel, compute_dtype=compute_dtype)

    def _run(buffered_weights):
        # Grid-invariant weights: single-buffered (pure VMEM headroom; Pallas
        # already skips re-DMA for constant index_maps).
        wkw = {"pipeline_mode": pl.Buffered(1)} if buffered_weights else {}
        return pl.pallas_call(
            kernel,
            out_shape=jax.ShapeDtypeStruct((Bp, OUTp), jnp.float32),
            grid=grid,
            in_specs=[
                pl.BlockSpec((TB, Sp, H), lambda b: (b, 0, 0)),         # x
                pl.BlockSpec((TB, Sp), lambda b: (b, 0)),               # mask bias
                pl.BlockSpec((H, MID), lambda b: (0, 0), **wkw),        # w1
                pl.BlockSpec((1, MID), lambda b: (0, 0), **wkw),        # b1
                pl.BlockSpec((MID, G), lambda b: (0, 0), **wkw),        # w2
                pl.BlockSpec((1, G), lambda b: (0, 0), **wkw),          # b2
                pl.BlockSpec((G, H, OUTp), lambda b: (0, 0, 0), **wkw), # wm
                pl.BlockSpec((1, OUTp), lambda b: (0, 0), **wkw),       # bm
            ],
            out_specs=pl.BlockSpec((TB, OUTp), lambda b: (b, 0)),
            compiler_params=pltpu.CompilerParams(
                dimension_semantics=("parallel",),
                vmem_limit_bytes=vmem_limit,
            ),
        )(xc, mask_bias, w1c, b1f, w2c, b2f, wm3c, bmf)

    try:
        out = _run(True)
    except Exception:
        # Fallback for jax versions where BlockSpec(pipeline_mode=Buffered(1))
        # is not accepted for pallas_call pipelining: default double-buffering.
        out = _run(False)

    return out[:B, :OUT]                                                # (B, OUT)


# --------------------------------------------------------------------------
# Pure-JAX reference (mirrors the PyTorch forward exactly)
# --------------------------------------------------------------------------
def attflat_reference(x, x_mask, params):
    w1, b1, w2, b2, wm, bm = params
    B, S, _ = x.shape
    mask = x_mask.reshape(B, S, 1)
    h = jnp.maximum(x @ w1 + b1, 0.0)
    att = h @ w2 + b2
    att = jnp.where(mask, -1.0e9, att)
    att = jax.nn.softmax(att, axis=1)
    G = att.shape[-1]
    parts = [jnp.sum(att[:, :, g:g + 1] * x, axis=1) for g in range(G)]
    x_atted = jnp.concatenate(parts, axis=1)
    return x_atted @ wm + bm


if __name__ == "__main__":
    # Small config consistent with the module:
    B, S = 2, 8
    HIDDEN_SIZE = 32       # __C.HIDDEN_SIZE
    FLAT_MLP_SIZE = 64     # __C.FLAT_MLP_SIZE
    FLAT_GLIMPSES = 2      # __C.FLAT_GLIMPSES
    FLAT_OUT_SIZE = 64     # __C.FLAT_OUT_SIZE

    key = jax.random.PRNGKey(0)
    kx, k1, k2, k3, k4, k5, k6 = jax.random.split(key, 7)

    x = jax.random.normal(kx, (B, S, HIDDEN_SIZE), dtype=jnp.float32)

    # x_mask as in PyTorch: (B, 1, 1, S) bool, True where padded.
    pad = jnp.zeros((B, S), dtype=bool).at[1, S - 3:].set(True)
    x_mask = pad[:, None, None, :]                       # (B, 1, 1, S)

    # Deterministic parameter init (weights stored pre-transposed: (in, out)).
    w1 = 0.1 * jax.random.normal(k1, (HIDDEN_SIZE, FLAT_MLP_SIZE), dtype=jnp.float32)
    b1 = 0.1 * jax.random.normal(k2, (1, FLAT_MLP_SIZE), dtype=jnp.float32)
    w2 = 0.1 * jax.random.normal(k3, (FLAT_MLP_SIZE, FLAT_GLIMPSES), dtype=jnp.float32)
    b2 = 0.1 * jax.random.normal(k4, (1, FLAT_GLIMPSES), dtype=jnp.float32)
    wm = 0.1 * jax.random.normal(
        k5, (HIDDEN_SIZE * FLAT_GLIMPSES, FLAT_OUT_SIZE), dtype=jnp.float32)
    bm = 0.1 * jax.random.normal(k6, (1, FLAT_OUT_SIZE), dtype=jnp.float32)

    params = (w1, b1, w2, b2, wm, bm)
    ref = attflat_reference(x, x_mask, params)

    # f32 compute/storage path: tight check of the kernel logic.
    out_f32 = jax.block_until_ready(attflat_pallas(x, x_mask, params, jnp.float32))
    assert out_f32.shape == (B, FLAT_OUT_SIZE)
    assert jnp.allclose(out_f32, ref, atol=1e-4, rtol=1e-4), "f32 mismatch vs reference"

    # bf16 compute/storage path (default; the perf path for v6e/v7x).
    out_bf16 = jax.block_until_ready(attflat_pallas(x, x_mask, params))
    assert out_bf16.shape == (B, FLAT_OUT_SIZE)
    assert jnp.allclose(out_bf16, ref, atol=3e-2, rtol=3e-2), "bf16 mismatch vs reference"

    print("KERNEL_OK")
</pallas_src>

<mosaic_0001>
module attributes {stable_mosaic.version = 11 : i64} {
  func.func @attflat_kernel(%arg0: i32, %arg1: memref<8x8x32xf32, #tpu.memory_space<vmem>>, %arg2: memref<8x8xf32, #tpu.memory_space<vmem>>, %arg3: memref<32x64xf32, #tpu.memory_space<vmem>>, %arg4: memref<1x64xf32, #tpu.memory_space<vmem>>, %arg5: memref<64x2xf32, #tpu.memory_space<vmem>>, %arg6: memref<1x2xf32, #tpu.memory_space<vmem>>, %arg7: memref<2x32x128xf32, #tpu.memory_space<vmem>>, %arg8: memref<1x128xf32, #tpu.memory_space<vmem>>, %arg9: memref<8x128xf32, #tpu.memory_space<vmem>>) attributes {dimension_semantics = [#tpu.dimension_semantics<parallel>], iteration_bounds = array<i64: 1>, scalar_prefetch = 0 : i64, scratch_operands = 0 : i64, tpu.core_type = #tpu.core_type<tc>, window_params = [{transform_indices = @transform_0, window_bounds = array<i64: 8, 8, 32>}, {transform_indices = @transform_1, window_bounds = array<i64: 8, 8>}, {pipeline_mode = #tpu.pipeline_mode<synchronous>, transform_indices = @transform_2, window_bounds = array<i64: 32, 64>}, {pipeline_mode = #tpu.pipeline_mode<synchronous>, transform_indices = @transform_3, window_bounds = array<i64: 1, 64>}, {pipeline_mode = #tpu.pipeline_mode<synchronous>, transform_indices = @transform_4, window_bounds = array<i64: 64, 2>}, {pipeline_mode = #tpu.pipeline_mode<synchronous>, transform_indices = @transform_5, window_bounds = array<i64: 1, 2>}, {pipeline_mode = #tpu.pipeline_mode<synchronous>, transform_indices = @transform_6, window_bounds = array<i64: 2, 32, 128>}, {pipeline_mode = #tpu.pipeline_mode<synchronous>, transform_indices = @transform_7, window_bounds = array<i64: 1, 128>}, {transform_indices = @transform_8, window_bounds = array<i64: 8, 128>}]} {
    %c0 = arith.constant 0 : index
    %c0_0 = arith.constant 0 : index
    %c0_1 = arith.constant 0 : index
    %0 = vector.load %arg1[%c0, %c0_0, %c0_1] : memref<8x8x32xf32, #tpu.memory_space<vmem>>, vector<8x8x32xf32>
    %1 = vector.shape_cast %0 : vector<8x8x32xf32> to vector<64x32xf32>
    %c0_2 = arith.constant 0 : index
    %c0_3 = arith.constant 0 : index
    %2 = vector.load %arg3[%c0_2, %c0_3] : memref<32x64xf32, #tpu.memory_space<vmem>>, vector<32x64xf32>
    %cst = arith.constant dense<0.000000e+00> : vector<64x64xf32>
    %3 = tpu.matmul %1, %2, %cst {dimension_numbers = #tpu.dot_dimension_numbers<[1], [0], [0], [1], [0, 0, 1, 1], [], []>} : vector<64x32xf32>, vector<32x64xf32>, vector<64x64xf32> -> vector<64x64xf32>
    %c0_4 = arith.constant 0 : index
    %c0_5 = arith.constant 0 : index
    %4 = vector.load %arg4[%c0_4, %c0_5] : memref<1x64xf32, #tpu.memory_space<vmem>>, vector<1x64xf32>
    %5 = vector.broadcast %4 : vector<1x64xf32> to vector<64x64xf32>
    %6 = arith.addf %3, %5 : vector<64x64xf32>
    %cst_6 = arith.constant 0.000000e+00 : f32
    %7 = vector.broadcast %cst_6 : f32 to vector<64x64xf32>
    %8 = arith.maximumf %6, %7 : vector<64x64xf32>
    %c0_7 = arith.constant 0 : index
    %c0_8 = arith.constant 0 : index
    %9 = vector.load %arg5[%c0_7, %c0_8] : memref<64x2xf32, #tpu.memory_space<vmem>>, vector<64x2xf32>
    %cst_9 = arith.constant dense<0.000000e+00> : vector<64x2xf32>
    %10 = tpu.matmul %8, %9, %cst_9 {dimension_numbers = #tpu.dot_dimension_numbers<[1], [0], [0], [1], [0, 0, 1, 1], [], []>} : vector<64x64xf32>, vector<64x2xf32>, vector<64x2xf32> -> vector<64x2xf32>
    %c0_10 = arith.constant 0 : index
    %c0_11 = arith.constant 0 : index
    %11 = vector.load %arg6[%c0_10, %c0_11] : memref<1x2xf32, #tpu.memory_space<vmem>>, vector<1x2xf32>
    %12 = vector.broadcast %11 : vector<1x2xf32> to vector<64x2xf32>
    %13 = arith.addf %10, %12 : vector<64x2xf32>
    %14 = vector.shape_cast %13 : vector<64x2xf32> to vector<8x8x2xf32>
    %15 = tpu.transpose %14, [0, 2, 1] : vector<8x8x2xf32> -> vector<8x2x8xf32>
    %c0_12 = arith.constant 0 : index
    %c0_13 = arith.constant 0 : index
    %16 = vector.load %arg2[%c0_12, %c0_13] : memref<8x8xf32, #tpu.memory_space<vmem>>, vector<8x8xf32>
    %17 = vector.shape_cast %16 : vector<8x8xf32> to vector<8x1x8xf32>
    %18 = vector.broadcast %17 : vector<8x1x8xf32> to vector<8x2x8xf32>
    %19 = arith.addf %15, %18 : vector<8x2x8xf32>
    %cst_14 = arith.constant dense<0xFF800000> : vector<8x2xf32>
    %20 = vector.multi_reduction <maximumf>, %19, %cst_14 [2] : vector<8x2x8xf32> to vector<8x2xf32>
    %21 = vector.shape_cast %20 : vector<8x2xf32> to vector<8x2x1xf32>
    %22 = vector.broadcast %21 : vector<8x2x1xf32> to vector<8x2x8xf32>
    %23 = arith.subf %19, %22 : vector<8x2x8xf32>
    %24 = math.exp %23 : vector<8x2x8xf32>
    %cst_15 = arith.constant dense<0.000000e+00> : vector<8x2xf32>
    %25 = vector.multi_reduction <add>, %24, %cst_15 [2] : vector<8x2x8xf32> to vector<8x2xf32>
    %26 = vector.shape_cast %25 : vector<8x2xf32> to vector<8x2x1xf32>
    %27 = tpu.reciprocal %26 {approx = true} : vector<8x2x1xf32> -> vector<8x2x1xf32>
    %28 = arith.mulf %26, %27 : vector<8x2x1xf32>
    %cst_16 = arith.constant 2.000000e+00 : f32
    %29 = vector.broadcast %cst_16 : f32 to vector<8x2x1xf32>
    %30 = arith.subf %29, %28 : vector<8x2x1xf32>
    %31 = arith.mulf %27, %30 : vector<8x2x1xf32>
    %32 = vector.broadcast %31 : vector<8x2x1xf32> to vector<8x2x8xf32>
    %33 = arith.mulf %24, %32 : vector<8x2x8xf32>
    %cst_17 = arith.constant dense<0.000000e+00> : vector<8x2x32xf32>
    %34 = tpu.matmul %33, %0, %cst_17 {dimension_numbers = #tpu.dot_dimension_numbers<[2], [1], [1], [2], [0, 0, 0, 1, 1, 2], [0], [0]>} : vector<8x2x8xf32>, vector<8x8x32xf32>, vector<8x2x32xf32> -> vector<8x2x32xf32>
    %c0_18 = arith.constant 0 : index
    %c0_19 = arith.constant 0 : index
    %35 = vector.load %arg8[%c0_18, %c0_19] : memref<1x128xf32, #tpu.memory_space<vmem>>, vector<1x128xf32>
    %36 = vector.shape_cast %35 : vector<1x128xf32> to vector<1x128xf32>
    %37 = vector.broadcast %36 : vector<1x128xf32> to vector<8x128xf32>
    %38 = vector.extract_strided_slice %34 {offsets = [0, 0, 0], sizes = [8, 1, 32], strides = [1, 1, 1]} : vector<8x2x32xf32> to vector<8x1x32xf32>
    %39 = vector.shape_cast %38 : vector<8x1x32xf32> to vector<8x32xf32>
    %c0_20 = arith.constant 0 : index
    %c0_21 = arith.constant 0 : index
    %c0_22 = arith.constant 0 : index
    %40 = vector.load %arg7[%c0_20, %c0_21, %c0_22] : memref<2x32x128xf32, #tpu.memory_space<vmem>>, vector<1x32x128xf32>
    %41 = vector.shape_cast %40 : vector<1x32x128xf32> to vector<32x128xf32>
    %cst_23 = arith.constant dense<0.000000e+00> : vector<8x128xf32>
    %42 = tpu.matmul %39, %41, %cst_23 {dimension_numbers = #tpu.dot_dimension_numbers<[1], [0], [0], [1], [0, 0, 1, 1], [], []>} : vector<8x32xf32>, vector<32x128xf32>, vector<8x128xf32> -> vector<8x128xf32>
    %43 = arith.addf %37, %42 : vector<8x128xf32>
    %44 = vector.extract_strided_slice %34 {offsets = [0, 1, 0], sizes = [8, 1, 32], strides = [1, 1, 1]} : vector<8x2x32xf32> to vector<8x1x32xf32>
    %45 = vector.shape_cast %44 : vector<8x1x32xf32> to vector<8x32xf32>
    %c1 = arith.constant 1 : index
    %c0_24 = arith.constant 0 : index
    %c0_25 = arith.constant 0 : index
    %46 = vector.load %arg7[%c1, %c0_24, %c0_25] : memref<2x32x128xf32, #tpu.memory_space<vmem>>, vector<1x32x128xf32>
    %47 = vector.shape_cast %46 : vector<1x32x128xf32> to vector<32x128xf32>
    %cst_26 = arith.constant dense<0.000000e+00> : vector<8x128xf32>
    %48 = tpu.matmul %45, %47, %cst_26 {dimension_numbers = #tpu.dot_dimension_numbers<[1], [0], [0], [1], [0, 0, 1, 1], [], []>} : vector<8x32xf32>, vector<32x128xf32>, vector<8x128xf32> -> vector<8x128xf32>
    %49 = arith.addf %43, %48 : vector<8x128xf32>
    %c0_27 = arith.constant 0 : index
    %c0_28 = arith.constant 0 : index
    %50 = vector.load %arg9[%c0_27, %c0_28] : memref<8x128xf32, #tpu.memory_space<vmem>>, vector<8x128xf32>
    tpu.vector_store %arg9[%c0_27, %c0_28], %49 {strides = array<i32>} : memref<8x128xf32, #tpu.memory_space<vmem>>, vector<8x128xf32>,
    return
  }
  func.func @transform_0(%arg0: i32) -> (i32, i32, i32) {
    %c0_i32 = arith.constant 0 : i32
    %c0_i32_0 = arith.constant 0 : i32
    %c0_i32_1 = arith.constant 0 : i32
    return %arg0, %c0_i32, %c0_i32_0 : i32, i32, i32
  }
  func.func @transform_1(%arg0: i32) -> (i32, i32) {
    %c0_i32 = arith.constant 0 : i32
    %c0_i32_0 = arith.constant 0 : i32
    return %arg0, %c0_i32 : i32, i32
  }
  func.func @transform_2(%arg0: i32) -> (i32, i32) {
    %c0_i32 = arith.constant 0 : i32
    %c0_i32_0 = arith.constant 0 : i32
    %c0_i32_1 = arith.constant 0 : i32
    return %c0_i32, %c0_i32_0 : i32, i32
  }
  func.func @transform_3(%arg0: i32) -> (i32, i32) {
    %c0_i32 = arith.constant 0 : i32
    %c0_i32_0 = arith.constant 0 : i32
    %c0_i32_1 = arith.constant 0 : i32
    return %c0_i32, %c0_i32_0 : i32, i32
  }
  func.func @transform_4(%arg0: i32) -> (i32, i32) {
    %c0_i32 = arith.constant 0 : i32
    %c0_i32_0 = arith.constant 0 : i32
    %c0_i32_1 = arith.constant 0 : i32
    return %c0_i32, %c0_i32_0 : i32, i32
  }
  func.func @transform_5(%arg0: i32) -> (i32, i32) {
    %c0_i32 = arith.constant 0 : i32
    %c0_i32_0 = arith.constant 0 : i32
    %c0_i32_1 = arith.constant 0 : i32
    return %c0_i32, %c0_i32_0 : i32, i32
  }
  func.func @transform_6(%arg0: i32) -> (i32, i32, i32) {
    %c0_i32 = arith.constant 0 : i32
    %c0_i32_0 = arith.constant 0 : i32
    %c0_i32_1 = arith.constant 0 : i32
    %c0_i32_2 = arith.constant 0 : i32
    return %c0_i32, %c0_i32_0, %c0_i32_1 : i32, i32, i32
  }
  func.func @transform_7(%arg0: i32) -> (i32, i32) {
    %c0_i32 = arith.constant 0 : i32
    %c0_i32_0 = arith.constant 0 : i32
    %c0_i32_1 = arith.constant 0 : i32
    return %c0_i32, %c0_i32_0 : i32, i32
  }
  func.func @transform_8(%arg0: i32) -> (i32, i32) {
    %c0_i32 = arith.constant 0 : i32
    %c0_i32_0 = arith.constant 0 : i32
    return %arg0, %c0_i32 : i32, i32
  }
}

module attributes {stable_mosaic.version = 11 : i64} {
  func.func @attflat_kernel(%arg0: i32, %arg1: memref<8x8x32xf32, #tpu.memory_space<vmem>>, %arg2: memref<8x8xf32, #tpu.memory_space<vmem>>, %arg3: memref<32x64xf32, #tpu.memory_space<vmem>>, %arg4: memref<1x64xf32, #tpu.memory_space<vmem>>, %arg5: memref<64x2xf32, #tpu.memory_space<vmem>>, %arg6: memref<1x2xf32, #tpu.memory_space<vmem>>, %arg7: memref<2x32x128xf32, #tpu.memory_space<vmem>>, %arg8: memref<1x128xf32, #tpu.memory_space<vmem>>, %arg9: memref<8x128xf32, #tpu.memory_space<vmem>>) attributes {dimension_semantics = [#tpu.dimension_semantics<parallel>], iteration_bounds = array<i64: 1>, scalar_prefetch = 0 : i64, scratch_operands = 0 : i64, tpu.core_type = #tpu.core_type<tc>, window_params = [{transform_indices = @transform_0, window_bounds = array<i64: 8, 8, 32>}, {transform_indices = @transform_1, window_bounds = array<i64: 8, 8>}, {pipeline_mode = #tpu.pipeline_mode<synchronous>, transform_indices = @transform_2, window_bounds = array<i64: 32, 64>}, {pipeline_mode = #tpu.pipeline_mode<synchronous>, transform_indices = @transform_3, window_bounds = array<i64: 1, 64>}, {pipeline_mode = #tpu.pipeline_mode<synchronous>, transform_indices = @transform_4, window_bounds = array<i64: 64, 2>}, {pipeline_mode = #tpu.pipeline_mode<synchronous>, transform_indices = @transform_5, window_bounds = array<i64: 1, 2>}, {pipeline_mode = #tpu.pipeline_mode<synchronous>, transform_indices = @transform_6, window_bounds = array<i64: 2, 32, 128>}, {pipeline_mode = #tpu.pipeline_mode<synchronous>, transform_indices = @transform_7, window_bounds = array<i64: 1, 128>}, {transform_indices = @transform_8, window_bounds = array<i64: 8, 128>}]} {
    %c0 = arith.constant 0 : index
    %c0_0 = arith.constant 0 : index
    %c0_1 = arith.constant 0 : index
    %0 = vector.load %arg1[%c0, %c0_0, %c0_1] : memref<8x8x32xf32, #tpu.memory_space<vmem>>, vector<8x8x32xf32>
    %1 = vector.shape_cast %0 : vector<8x8x32xf32> to vector<64x32xf32>
    %c0_2 = arith.constant 0 : index
    %c0_3 = arith.constant 0 : index
    %2 = vector.load %arg3[%c0_2, %c0_3] : memref<32x64xf32, #tpu.memory_space<vmem>>, vector<32x64xf32>
    %cst = arith.constant dense<0.000000e+00> : vector<64x64xf32>
    %3 = tpu.matmul %1, %2, %cst {dimension_numbers = #tpu.dot_dimension_numbers<[1], [0], [0], [1], [0, 0, 1, 1], [], []>} : vector<64x32xf32>, vector<32x64xf32>, vector<64x64xf32> -> vector<64x64xf32>
    %c0_4 = arith.constant 0 : index
    %c0_5 = arith.constant 0 : index
    %4 = vector.load %arg4[%c0_4, %c0_5] : memref<1x64xf32, #tpu.memory_space<vmem>>, vector<1x64xf32>
    %5 = vector.broadcast %4 : vector<1x64xf32> to vector<64x64xf32>
    %6 = arith.addf %3, %5 : vector<64x64xf32>
    %cst_6 = arith.constant 0.000000e+00 : f32
    %7 = vector.broadcast %cst_6 : f32 to vector<64x64xf32>
    %8 = arith.maximumf %6, %7 : vector<64x64xf32>
    %c0_7 = arith.constant 0 : index
    %c0_8 = arith.constant 0 : index
    %9 = vector.load %arg5[%c0_7, %c0_8] : memref<64x2xf32, #tpu.memory_space<vmem>>, vector<64x2xf32>
    %cst_9 = arith.constant dense<0.000000e+00> : vector<64x2xf32>
    %10 = tpu.matmul %8, %9, %cst_9 {dimension_numbers = #tpu.dot_dimension_numbers<[1], [0], [0], [1], [0, 0, 1, 1], [], []>} : vector<64x64xf32>, vector<64x2xf32>, vector<64x2xf32> -> vector<64x2xf32>
    %c0_10 = arith.constant 0 : index
    %c0_11 = arith.constant 0 : index
    %11 = vector.load %arg6[%c0_10, %c0_11] : memref<1x2xf32, #tpu.memory_space<vmem>>, vector<1x2xf32>
    %12 = vector.broadcast %11 : vector<1x2xf32> to vector<64x2xf32>
    %13 = arith.addf %10, %12 : vector<64x2xf32>
    %14 = vector.shape_cast %13 : vector<64x2xf32> to vector<8x8x2xf32>
    %15 = tpu.transpose %14, [0, 2, 1] : vector<8x8x2xf32> -> vector<8x2x8xf32>
    %c0_12 = arith.constant 0 : index
    %c0_13 = arith.constant 0 : index
    %16 = vector.load %arg2[%c0_12, %c0_13] : memref<8x8xf32, #tpu.memory_space<vmem>>, vector<8x8xf32>
    %17 = vector.shape_cast %16 : vector<8x8xf32> to vector<8x1x8xf32>
    %18 = vector.broadcast %17 : vector<8x1x8xf32> to vector<8x2x8xf32>
    %19 = arith.addf %15, %18 : vector<8x2x8xf32>
    %cst_14 = arith.constant dense<0xFF800000> : vector<8x2xf32>
    %20 = vector.multi_reduction <maximumf>, %19, %cst_14 [2] : vector<8x2x8xf32> to vector<8x2xf32>
    %21 = vector.shape_cast %20 : vector<8x2xf32> to vector<8x2x1xf32>
    %22 = vector.broadcast %21 : vector<8x2x1xf32> to vector<8x2x8xf32>
    %23 = arith.subf %19, %22 : vector<8x2x8xf32>
    %24 = math.exp %23 : vector<8x2x8xf32>
    %cst_15 = arith.constant dense<0.000000e+00> : vector<8x2xf32>
    %25 = vector.multi_reduction <add>, %24, %cst_15 [2] : vector<8x2x8xf32> to vector<8x2xf32>
    %26 = vector.shape_cast %25 : vector<8x2xf32> to vector<8x2x1xf32>
    %27 = tpu.reciprocal %26 {approx = true} : vector<8x2x1xf32> -> vector<8x2x1xf32>
    %28 = arith.mulf %26, %27 : vector<8x2x1xf32>
    %cst_16 = arith.constant 2.000000e+00 : f32
    %29 = vector.broadcast %cst_16 : f32 to vector<8x2x1xf32>
    %30 = arith.subf %29, %28 : vector<8x2x1xf32>
    %31 = arith.mulf %27, %30 : vector<8x2x1xf32>
    %32 = vector.broadcast %31 : vector<8x2x1xf32> to vector<8x2x8xf32>
    %33 = arith.mulf %24, %32 : vector<8x2x8xf32>
    %cst_17 = arith.constant dense<0.000000e+00> : vector<8x2x32xf32>
    %34 = tpu.matmul %33, %0, %cst_17 {dimension_numbers = #tpu.dot_dimension_numbers<[2], [1], [1], [2], [0, 0, 0, 1, 1, 2], [0], [0]>} : vector<8x2x8xf32>, vector<8x8x32xf32>, vector<8x2x32xf32> -> vector<8x2x32xf32>
    %c0_18 = arith.constant 0 : index
    %c0_19 = arith.constant 0 : index
    %35 = vector.load %arg8[%c0_18, %c0_19] : memref<1x128xf32, #tpu.memory_space<vmem>>, vector<1x128xf32>
    %36 = vector.shape_cast %35 : vector<1x128xf32> to vector<1x128xf32>
    %37 = vector.broadcast %36 : vector<1x128xf32> to vector<8x128xf32>
    %38 = vector.extract_strided_slice %34 {offsets = [0, 0, 0], sizes = [8, 1, 32], strides = [1, 1, 1]} : vector<8x2x32xf32> to vector<8x1x32xf32>
    %39 = vector.shape_cast %38 : vector<8x1x32xf32> to vector<8x32xf32>
    %c0_20 = arith.constant 0 : index
    %c0_21 = arith.constant 0 : index
    %c0_22 = arith.constant 0 : index
    %40 = vector.load %arg7[%c0_20, %c0_21, %c0_22] : memref<2x32x128xf32, #tpu.memory_space<vmem>>, vector<1x32x128xf32>
    %41 = vector.shape_cast %40 : vector<1x32x128xf32> to vector<32x128xf32>
    %cst_23 = arith.constant dense<0.000000e+00> : vector<8x128xf32>
    %42 = tpu.matmul %39, %41, %cst_23 {dimension_numbers = #tpu.dot_dimension_numbers<[1], [0], [0], [1], [0, 0, 1, 1], [], []>} : vector<8x32xf32>, vector<32x128xf32>, vector<8x128xf32> -> vector<8x128xf32>
    %43 = arith.addf %37, %42 : vector<8x128xf32>
    %44 = vector.extract_strided_slice %34 {offsets = [0, 1, 0], sizes = [8, 1, 32], strides = [1, 1, 1]} : vector<8x2x32xf32> to vector<8x1x32xf32>
    %45 = vector.shape_cast %44 : vector<8x1x32xf32> to vector<8x32xf32>
    %c1 = arith.constant 1 : index
    %c0_24 = arith.constant 0 : index
    %c0_25 = arith.constant 0 : index
    %46 = vector.load %arg7[%c1, %c0_24, %c0_25] : memref<2x32x128xf32, #tpu.memory_space<vmem>>, vector<1x32x128xf32>
    %47 = vector.shape_cast %46 : vector<1x32x128xf32> to vector<32x128xf32>
    %cst_26 = arith.constant dense<0.000000e+00> : vector<8x128xf32>
    %48 = tpu.matmul %45, %47, %cst_26 {dimension_numbers = #tpu.dot_dimension_numbers<[1], [0], [0], [1], [0, 0, 1, 1], [], []>} : vector<8x32xf32>, vector<32x128xf32>, vector<8x128xf32> -> vector<8x128xf32>
    %49 = arith.addf %43, %48 : vector<8x128xf32>
    %c0_27 = arith.constant 0 : index
    %c0_28 = arith.constant 0 : index
    %50 = vector.load %arg9[%c0_27, %c0_28] : memref<8x128xf32, #tpu.memory_space<vmem>>, vector<8x128xf32>
    tpu.vector_store %arg9[%c0_27, %c0_28], %49 {strides = array<i32>} : memref<8x128xf32, #tpu.memory_space<vmem>>, vector<8x128xf32>,
    return
  }
  func.func @transform_0(%arg0: i32) -> (i32, i32, i32) {
    %c0_i32 = arith.constant 0 : i32
    %c0_i32_0 = arith.constant 0 : i32
    %c0_i32_1 = arith.constant 0 : i32
    return %arg0, %c0_i32, %c0_i32_0 : i32, i32, i32
  }
  func.func @transform_1(%arg0: i32) -> (i32, i32) {
    %c0_i32 = arith.constant 0 : i32
    %c0_i32_0 = arith.constant 0 : i32
    return %arg0, %c0_i32 : i32, i32
  }
  func.func @transform_2(%arg0: i32) -> (i32, i32) {
    %c0_i32 = arith.constant 0 : i32
    %c0_i32_0 = arith.constant 0 : i32
    %c0_i32_1 = arith.constant 0 : i32
    return %c0_i32, %c0_i32_0 : i32, i32
  }
  func.func @transform_3(%arg0: i32) -> (i32, i32) {
    %c0_i32 = arith.constant 0 : i32
    %c0_i32_0 = arith.constant 0 : i32
    %c0_i32_1 = arith.constant 0 : i32
    return %c0_i32, %c0_i32_0 : i32, i32
  }
  func.func @transform_4(%arg0: i32) -> (i32, i32) {
    %c0_i32 = arith.constant 0 : i32
    %c0_i32_0 = arith.constant 0 : i32
    %c0_i32_1 = arith.constant 0 : i32
    return %c0_i32, %c0_i32_0 : i32, i32
  }
  func.func @transform_5(%arg0: i32) -> (i32, i32) {
    %c0_i32 = arith.constant 0 : i32
    %c0_i32_0 = arith.constant 0 : i32
    %c0_i32_1 = arith.constant 0 : i32
    return %c0_i32, %c0_i32_0 : i32, i32
  }
  func.func @transform_6(%arg0: i32) -> (i32, i32, i32) {
    %c0_i32 = arith.constant 0 : i32
    %c0_i32_0 = arith.constant 0 : i32
    %c0_i32_1 = arith.constant 0 : i32
    %c0_i32_2 = arith.constant 0 : i32
    return %c0_i32, %c0_i32_0, %c0_i32_1 : i32, i32, i32
  }
  func.func @transform_7(%arg0: i32) -> (i32, i32) {
    %c0_i32 = arith.constant 0 : i32
    %c0_i32_0 = arith.constant 0 : i32
    %c0_i32_1 = arith.constant 0 : i32
    return %c0_i32, %c0_i32_0 : i32, i32
  }
  func.func @transform_8(%arg0: i32) -> (i32, i32) {
    %c0_i32 = arith.constant 0 : i32
    %c0_i32_0 = arith.constant 0 : i32
    return %arg0, %c0_i32 : i32, i32
  }
}

</mosaic_0001>

<llo_original>
// kernel: tpu_custom_call.1
$region0: #{tpu_custom_call.1}
  #allocation0 [shape = 'u32[]', space=smem, size = 0x4, offset = 0x4, fixed_abs, tag = 'smem constant byte address 0x4 - core index']
  #allocation1 [shape = 'u32[144,128]{1,0:T(1,128)}', space=vmem, size = 0x12000, scoped, tag = 'internal scratch']
  %s0 = inlined_call_operand.vmem [shape: f32[8,8,32], index: 0, kind: input, shape index: {}]
  %s1 = inlined_call_operand.hbm [shape: f32[8,8], index: 1, kind: input, shape index: {}]
  %s2 = inlined_call_operand.hbm [shape: f32[32,64], index: 2, kind: input, shape index: {}]
  %s3 = inlined_call_operand.vmem [shape: f32[1,64], index: 3, kind: input, shape index: {}]
  %s4 = inlined_call_operand.vmem [shape: f32[64,2], index: 4, kind: input, shape index: {}]
  %s5 = inlined_call_operand.vmem [shape: f32[1,2], index: 5, kind: input, shape index: {}]
  %s6 = inlined_call_operand.hbm [shape: f32[2,32,128], index: 6, kind: input, shape index: {}]
  %s7 = inlined_call_operand.vmem [shape: f32[1,128], index: 7, kind: input, shape index: {}]
  %s8 = inlined_call_operand.hbm [shape: f32[8,128], index: 8, kind: output, shape index: {}]
  %s9 = sld [smem:[#allocation0]]
  $region54: #{tpu_custom_call.1} parent=0
    _
  %s11 = ssub.s32 1, %s9
  %s12 = scalar_select 0, %s11, %s9
  $region1: #{tpu_custom_call.1} parent=0
    #allocation2 [shape = 'u8[4096]{0}', space=vmem, size = 0x1000, scoped, tag = 'input window, operand 1, single buffered']
    #allocation3 [shape = 's32[1]{0}', space=sflag, size = 0x4, scoped, tag = 'scoped memory for tpu_custom_call.1']
    #allocation4 [shape = 's32[1]{0}', space=sflag, size = 0x4, scoped, tag = 'scoped memory for tpu_custom_call.1']
    #allocation5 [shape = 'u8[16384]{0}', space=vmem, size = 0x4000, scoped, tag = 'input window, operand 2, single buffered']
    #allocation6 [shape = 's32[1]{0}', space=sflag, size = 0x4, scoped, tag = 'scoped memory for tpu_custom_call.1']
    #allocation7 [shape = 'u8[32768]{0}', space=vmem, size = 0x8000, scoped, tag = 'input window, operand 6, single buffered']
    #allocation8 [shape = 'u8[4096]{0}', space=vmem, size = 0x1000, scoped, tag = 'output window, operand 0, single buffered']
    %13 = vsyncpa [#allocation3], 0
    %14 = vsyncpa [#allocation6], 0
    %15 = vsyncpa [#allocation4], 0
    // Predicated region
    $region2: #{tpu_custom_call.1} parent=1 // pred_check
      _
    $region3: #{tpu_custom_call.1} parent=1 // pred_check_branch
      %17 = sbr.rel (0) target = $region5
    $region4: #{tpu_custom_call.1} parent=1 // pred_region
      _
    $region5: #{tpu_custom_call.1} parent=1 // pred_fallthru
      _
    // Predicated region
    $region6: #{tpu_custom_call.1} parent=1 // pred_check
      _
    $region7: #{tpu_custom_call.1} parent=1 // pred_check_branch
      %19 = sbr.rel (0) target = $region9
    $region8: #{tpu_custom_call.1} parent=1 // pred_region
      %s21 = ssub.s32 128, 128
      %22 = vsyncadd [#allocation3], %s21
      %s24 = sshll.u32 [#allocation2], 4
      %s25 = int_to_ptr.vmem [resolvable:$true] %s24
      %27 = dma.hbm_to_vmem [thread:$0]  %s1, 128, %s25, [#allocation3]
    $region9: #{tpu_custom_call.1} parent=1 // pred_fallthru
      _
    // Predicated region
    $region10: #{tpu_custom_call.1} parent=1 // pred_check
      _
    $region11: #{tpu_custom_call.1} parent=1 // pred_check_branch
      %29 = sbr.rel (0) target = $region13
    $region12: #{tpu_custom_call.1} parent=1 // pred_region
      %s31 = ssub.s32 512, 512
      %32 = vsyncadd [#allocation6], %s31
      %s33 = sshll.u32 [#allocation5], 4
      %s34 = int_to_ptr.vmem [resolvable:$true] %s33
      %39 = dma.hbm_to_vmem [thread:$0]  %s2, 512, %s34, [#allocation6], 128, 128, 8
    $region13: #{tpu_custom_call.1} parent=1 // pred_fallthru
      _
    // Predicated region
    $region14: #{tpu_custom_call.1} parent=1 // pred_check
      _
    $region15: #{tpu_custom_call.1} parent=1 // pred_check_branch
      %41 = sbr.rel (0) target = $region17
    $region16: #{tpu_custom_call.1} parent=1 // pred_region
      _
    $region17: #{tpu_custom_call.1} parent=1 // pred_fallthru
      _
    // Predicated region
    $region18: #{tpu_custom_call.1} parent=1 // pred_check
      _
    $region19: #{tpu_custom_call.1} parent=1 // pred_check_branch
      %43 = sbr.rel (0) target = $region21
    $region20: #{tpu_custom_call.1} parent=1 // pred_region
      _
    $region21: #{tpu_custom_call.1} parent=1 // pred_fallthru
      _
    // Predicated region
    $region22: #{tpu_custom_call.1} parent=1 // pred_check
      _
    $region23: #{tpu_custom_call.1} parent=1 // pred_check_branch
      %45 = sbr.rel (0) target = $region25
    $region24: #{tpu_custom_call.1} parent=1 // pred_region
      _
    $region25: #{tpu_custom_call.1} parent=1 // pred_fallthru
      _
    // Predicated region
    $region26: #{tpu_custom_call.1} parent=1 // pred_check
      _
    $region27: #{tpu_custom_call.1} parent=1 // pred_check_branch
      %47 = sbr.rel (0) target = $region29
    $region28: #{tpu_custom_call.1} parent=1 // pred_region
      %s49 = ssub.s32 1024, 1024
      %50 = vsyncadd [#allocation6], %s49
      %s51 = sshll.u32 [#allocation7], 4
      %s52 = int_to_ptr.vmem [resolvable:$true] %s51
      %57 = dma.hbm_to_vmem [thread:$0]  %s6, 1024, %s52, [#allocation6], 128, 128, 8
    $region29: #{tpu_custom_call.1} parent=1 // pred_fallthru
      _
    // Predicated region
    $region30: #{tpu_custom_call.1} parent=1 // pred_check
      _
    $region31: #{tpu_custom_call.1} parent=1 // pred_check_branch
      %59 = sbr.rel (0) target = $region33
    $region32: #{tpu_custom_call.1} parent=1 // pred_region
      _
    $region33: #{tpu_custom_call.1} parent=1 // pred_fallthru
      _
    // Predicated region
    $region34: #{tpu_custom_call.1} parent=1 // pred_check
      _
    $region35: #{tpu_custom_call.1} parent=1 // pred_check_branch
      %61 = sbr.rel (0) target = $region37
    $region36: #{tpu_custom_call.1} parent=1 // pred_region
      %62 = dma.done [#allocation3], 128
    $region37: #{tpu_custom_call.1} parent=1 // pred_fallthru
      _
    // Predicated region
    $region38: #{tpu_custom_call.1} parent=1 // pred_check
      _
    $region39: #{tpu_custom_call.1} parent=1 // pred_check_branch
      %64 = sbr.rel (0) target = $region41
    $region40: #{tpu_custom_call.1} parent=1 // pred_region
      %65 = dma.done [#allocation6], 512
    $region41: #{tpu_custom_call.1} parent=1 // pred_fallthru
      _
    // Predicated region
    $region42: #{tpu_custom_call.1} parent=1 // pred_check
      _
    $region43: #{tpu_custom_call.1} parent=1 // pred_check_branch
      %67 = sbr.rel (0) target = $region45
    $region44: #{tpu_custom_call.1} parent=1 // pred_region
      %68 = dma.done [#allocation6], 1024
    $region45: #{tpu_custom_call.1} parent=1 // pred_fallthru
      _
    %v69 = vld [vmem:[%s0] sm:$0xff]
    %v70 = vld [vmem:[%s0 + $0x8] sm:$0xff]
    %v71 = vld [vmem:[%s0 + $0x10] sm:$0xff]
    %v72 = vld [vmem:[%s0 + $0x18] sm:$0xff]
    %v73 = vld [vmem:[%s0 + $0x20] sm:$0xff]
    %v74 = vld [vmem:[%s0 + $0x28] sm:$0xff]
    %v75 = vld [vmem:[%s0 + $0x30] sm:$0xff]
    %v76 = vld [vmem:[%s0 + $0x38] sm:$0xff]
    %v77 = vld [vmem:[#allocation5] sm:$0xff]
    %v78 = vld [vmem:[#allocation5 + $0x8] sm:$0xff]
    %v79 = vld [vmem:[#allocation5 + $0x10] sm:$0xff]
    %v80 = vld [vmem:[#allocation5 + $0x18] sm:$0xff]
    %v81 = vld [vmem:[%s3] sm:$0x1]
    %v83 = vlaneseq
    %v84 = vshrl.u32 %v83, 7
    %v85 = vsub.s32 0, %v84
    %v86 = vrot.slane %v81, %v85
    %vm88 = vcmask 261120
    %v90 = vsel %vm88, %v69, 0
    %v93 = vsel %vm88, %v70, 0
    %v96 = vsel %vm88, %v71, 0
    %v99 = vsel %vm88, %v72, 0
    %v102 = vsel %vm88, %v73, 0
    %v105 = vsel %vm88, %v74, 0
    %v108 = vsel %vm88, %v75, 0
    %v111 = vsel %vm88, %v76, 0
    %113 = vmatprep.subr.mxu0 0.0
    %114 = vmatpush1.msra.mxu0 %v77
    %115 = vmatprep.subr.mxu0 0.0
    %116 = vmatpush1.msra.mxu0 %v78
    %117 = vmatprep.subr.mxu0 0.0
    %118 = vmatpush1.msra.mxu0 %v79
    %119 = vmatprep.subr.mxu0 0.0
    %120 = vmatpush1.msra.mxu0 %v80
    %121 = vmatprep.subr.mxu0 0.0
    %122 = vmatpush1.msra.mxu0 0.0
    %123 = vmatprep.subr.mxu0 0.0
    %124 = vmatpush1.msra.mxu0 0.0
    %125 = vmatprep.subr.mxu0 0.0
    %126 = vmatpush1.msra.mxu0 0.0
    %127 = vmatprep.subr.mxu0 0.0
    %128 = vmatpush1.msra.mxu0 0.0
    %129 = vmatprep.subr.mxu0 0.0
    %130 = vmatpush1.msra.mxu0 0.0
    %131 = vmatprep.subr.mxu0 0.0
    %132 = vmatpush1.msra.mxu0 0.0
    %133 = vmatprep.subr.mxu0 0.0
    %134 = vmatpush1.msra.mxu0 0.0
    %135 = vmatprep.subr.mxu0 0.0
    %136 = vmatpush1.msra.mxu0 0.0
    %137 = vmatprep.subr.mxu0 0.0
    %138 = vmatpush1.msra.mxu0 0.0
    %139 = vmatprep.subr.mxu0 0.0
    %140 = vmatpush1.msra.mxu0 0.0
    %141 = vmatprep.subr.mxu0 0.0
    %142 = vmatpush1.msra.mxu0 0.0
    %143 = vmatprep.subr.mxu0 0.0
    %144 = vmatpush1.msra.mxu0 0.0
    %145 = vmatprep.subr.mxu0 0.0
    %146 = vmatpush1.msra.mxu0 0.0
    %147 = vmatprep.subr.mxu0 0.0
    %148 = vmatpush1.msra.mxu0 0.0
    %149 = vmatprep.subr.mxu0 0.0
    %150 = vmatpush1.msra.mxu0 0.0
    %151 = vmatprep.subr.mxu0 0.0
    %152 = vmatpush1.msra.mxu0 0.0
    %153 = vmatprep.subr.mxu0 0.0
    %154 = vmatpush1.msra.mxu0 0.0
    %155 = vmatprep.subr.mxu0 0.0
    %156 = vmatpush1.msra.mxu0 0.0
    %157 = vmatprep.subr.mxu0 0.0
    %158 = vmatpush1.msra.mxu0 0.0
    %159 = vmatprep.subr.mxu0 0.0
    %160 = vmatpush1.msra.mxu0 0.0
    %161 = vmatprep.subr.mxu0 0.0
    %162 = vmatpush1.msra.mxu0 0.0
    %163 = vmatprep.subr.mxu0 0.0
    %164 = vmatpush1.msra.mxu0 0.0
    %165 = vmatprep.subr.mxu0 0.0
    %166 = vmatpush1.msra.mxu0 0.0
    %167 = vmatprep.subr.mxu0 0.0
    %168 = vmatpush1.msra.mxu0 0.0
    %169 = vmatprep.subr.mxu0 0.0
    %170 = vmatpush1.msra.mxu0 0.0
    %171 = vmatprep.subr.mxu0 0.0
    %172 = vmatpush1.msra.mxu0 0.0
    %173 = vmatprep.subr.mxu0 0.0
    %174 = vmatpush1.msra.mxu0 0.0
    %175 = vmatprep.subr.mxu0 0.0
    %176 = vmatpush1.msra.mxu0 0.0
    %177 = vmatprep.mubr.f32.mxu0 0.0
    %178 = vmatmul.mubr.f32.gmra.mrb[0].mxu0 %v90
    %v179 = vpop.f32.mrb[0].mxu0
    %v180 = vadd.f32 %v86, %v179
    %v181 = vpop.f32.mrb[0].mxu0
    %182 = vmatprep.mubr.f32.mxu0 0.0
    %183 = vmatmul.mubr.f32.gmra.mrb[0].mxu0 %v93
    %v184 = vpop.f32.mrb[0].mxu0
    %v185 = vadd.f32 %v86, %v184
    %v186 = vpop.f32.mrb[0].mxu0
    %187 = vmatprep.mubr.f32.mxu0 0.0
    %188 = vmatmul.mubr.f32.gmra.mrb[0].mxu0 %v96
    %v189 = vpop.f32.mrb[0].mxu0
    %v190 = vadd.f32 %v86, %v189
    %v191 = vpop.f32.mrb[0].mxu0
    %192 = vmatprep.mubr.f32.mxu0 0.0
    %193 = vmatmul.mubr.f32.gmra.mrb[0].mxu0 %v99
    %v194 = vpop.f32.mrb[0].mxu0
    %v195 = vadd.f32 %v86, %v194
    %v196 = vpop.f32.mrb[0].mxu0
    %197 = vmatprep.mubr.f32.mxu0 0.0
    %198 = vmatmul.mubr.f32.gmra.mrb[0].mxu0 %v102
    %v199 = vpop.f32.mrb[0].mxu0
    %v200 = vadd.f32 %v86, %v199
    %v201 = vpop.f32.mrb[0].mxu0
    %202 = vmatprep.mubr.f32.mxu0 0.0
    %203 = vmatmul.mubr.f32.gmra.mrb[0].mxu0 %v105
    %v204 = vpop.f32.mrb[0].mxu0
    %v205 = vadd.f32 %v86, %v204
    %v206 = vpop.f32.mrb[0].mxu0
    %207 = vmatprep.mubr.f32.mxu0 0.0
    %208 = vmatmul.mubr.f32.gmra.mrb[0].mxu0 %v108
    %v209 = vpop.f32.mrb[0].mxu0
    %v210 = vadd.f32 %v86, %v209
    %v211 = vpop.f32.mrb[0].mxu0
    %212 = vmatprep.mubr.f32.mxu0 0.0
    %213 = vmatmul.mubr.f32.gmra.mrb[0].mxu0 %v111
    %v214 = vpop.f32.mrb[0].mxu0
    %v215 = vadd.f32 %v86, %v214
    %v216 = vpop.f32.mrb[0].mxu0
    %217 = vdwg.mxu0
    %v218 = vmax.f32 %v180, 0.0
    %v219 = vmax.f32 %v185, 0.0
    %v220 = vmax.f32 %v190, 0.0
    %v221 = vmax.f32 %v195, 0.0
    %v222 = vmax.f32 %v200, 0.0
    %v223 = vmax.f32 %v205, 0.0
    %v224 = vmax.f32 %v210, 0.0
    %v225 = vmax.f32 %v215, 0.0
    %v226 = vld [vmem:[%s4] sm:$0xff]
    %v227 = vld [vmem:[%s4 + $0x8] sm:$0xff]
    %v228 = vld [vmem:[%s4 + $0x10] sm:$0xff]
    %v229 = vld [vmem:[%s4 + $0x18] sm:$0xff]
    %v230 = vld [vmem:[%s4 + $0x20] sm:$0xff]
    %v231 = vld [vmem:[%s4 + $0x28] sm:$0xff]
    %v232 = vld [vmem:[%s4 + $0x30] sm:$0xff]
    %v233 = vld [vmem:[%s4 + $0x38] sm:$0xff]
    %v234 = vld [vmem:[%s5] sm:$0x1]
    %v236 = vlaneseq
    %v237 = vshrl.u32 %v236, 7
    %v238 = vsub.s32 0, %v237
    %v239 = vrot.slane %v234, %v238
    %vm241 = vcmask 523264
    %v243 = vsel %vm241, %v218, 0
    %v246 = vsel %vm241, %v219, 0
    %v249 = vsel %vm241, %v220, 0
    %v252 = vsel %vm241, %v221, 0
    %v255 = vsel %vm241, %v222, 0
    %v258 = vsel %vm241, %v223, 0
    %v261 = vsel %vm241, %v224, 0
    %v264 = vsel %vm241, %v225, 0
    %266 = vmatprep.subr.mxu0 0.0
    %267 = vmatpush1.msra.mxu0 %v226
    %268 = vmatprep.subr.mxu0 0.0
    %269 = vmatpush1.msra.mxu0 %v227
    %270 = vmatprep.subr.mxu0 0.0
    %271 = vmatpush1.msra.mxu0 %v228
    %272 = vmatprep.subr.mxu0 0.0
    %273 = vmatpush1.msra.mxu0 %v229
    %274 = vmatprep.subr.mxu0 0.0
    %275 = vmatpush1.msra.mxu0 %v230
    %276 = vmatprep.subr.mxu0 0.0
    %277 = vmatpush1.msra.mxu0 %v231
    %278 = vmatprep.subr.mxu0 0.0
    %279 = vmatpush1.msra.mxu0 %v232
    %280 = vmatprep.subr.mxu0 0.0
    %281 = vmatpush1.msra.mxu0 %v233
    %282 = vmatprep.subr.mxu0 0.0
    %283 = vmatpush1.msra.mxu0 0.0
    %284 = vmatprep.subr.mxu0 0.0
    %285 = vmatpush1.msra.mxu0 0.0
    %286 = vmatprep.subr.mxu0 0.0
    %287 = vmatpush1.msra.mxu0 0.0
    %288 = vmatprep.subr.mxu0 0.0
    %289 = vmatpush1.msra.mxu0 0.0
    %290 = vmatprep.subr.mxu0 0.0
    %291 = vmatpush1.msra.mxu0 0.0
    %292 = vmatprep.subr.mxu0 0.0
    %293 = vmatpush1.msra.mxu0 0.0
    %294 = vmatprep.subr.mxu0 0.0
    %295 = vmatpush1.msra.mxu0 0.0
    %296 = vmatprep.subr.mxu0 0.0
    %297 = vmatpush1.msra.mxu0 0.0
    %298 = vmatprep.subr.mxu0 0.0
    %299 = vmatpush1.msra.mxu0 0.0
    %300 = vmatprep.subr.mxu0 0.0
    %301 = vmatpush1.msra.mxu0 0.0
    %302 = vmatprep.subr.mxu0 0.0
    %303 = vmatpush1.msra.mxu0 0.0
    %304 = vmatprep.subr.mxu0 0.0
    %305 = vmatpush1.msra.mxu0 0.0
    %306 = vmatprep.subr.mxu0 0.0
    %307 = vmatpush1.msra.mxu0 0.0
    %308 = vmatprep.subr.mxu0 0.0
    %309 = vmatpush1.msra.mxu0 0.0
    %310 = vmatprep.subr.mxu0 0.0
    %311 = vmatpush1.msra.mxu0 0.0
    %312 = vmatprep.subr.mxu0 0.0
    %313 = vmatpush1.msra.mxu0 0.0
    %314 = vmatprep.subr.mxu0 0.0
    %315 = vmatpush1.msra.mxu0 0.0
    %316 = vmatprep.subr.mxu0 0.0
    %317 = vmatpush1.msra.mxu0 0.0
    %318 = vmatprep.subr.mxu0 0.0
    %319 = vmatpush1.msra.mxu0 0.0
    %320 = vmatprep.subr.mxu0 0.0
    %321 = vmatpush1.msra.mxu0 0.0
    %322 = vmatprep.subr.mxu0 0.0
    %323 = vmatpush1.msra.mxu0 0.0
    %324 = vmatprep.subr.mxu0 0.0
    %325 = vmatpush1.msra.mxu0 0.0
    %326 = vmatprep.subr.mxu0 0.0
    %327 = vmatpush1.msra.mxu0 0.0
    %328 = vmatprep.subr.mxu0 0.0
    %329 = vmatpush1.msra.mxu0 0.0
    %330 = vmatprep.mubr.f32.mxu0 0.0
    %331 = vmatmul.mubr.f32.gmra.mrb[0].mxu0 %v243
    %v332 = vpop.f32.mrb[0].mxu0
    %v333 = vadd.f32 %v239, %v332
    %v334 = vpop.f32.mrb[0].mxu0
    %335 = vmatprep.mubr.f32.mxu0 0.0
    %336 = vmatmul.mubr.f32.gmra.mrb[0].mxu0 %v246
    %v337 = vpop.f32.mrb[0].mxu0
    %v338 = vadd.f32 %v239, %v337
    %v339 = vpop.f32.mrb[0].mxu0
    %340 = vmatprep.mubr.f32.mxu0 0.0
    %341 = vmatmul.mubr.f32.gmra.mrb[0].mxu0 %v249
    %v342 = vpop.f32.mrb[0].mxu0
    %v343 = vadd.f32 %v239, %v342
    %v344 = vpop.f32.mrb[0].mxu0
    %345 = vmatprep.mubr.f32.mxu0 0.0
    %346 = vmatmul.mubr.f32.gmra.mrb[0].mxu0 %v252
    %v347 = vpop.f32.mrb[0].mxu0
    %v348 = vadd.f32 %v239, %v347
    %v349 = vpop.f32.mrb[0].mxu0
    %350 = vmatprep.mubr.f32.mxu0 0.0
    %351 = vmatmul.mubr.f32.gmra.mrb[0].mxu0 %v255
    %v352 = vpop.f32.mrb[0].mxu0
    %v353 = vadd.f32 %v239, %v352
    %v354 = vpop.f32.mrb[0].mxu0
    %355 = vmatprep.mubr.f32.mxu0 0.0
    %356 = vmatmul.mubr.f32.gmra.mrb[0].mxu0 %v258
    %v357 = vpop.f32.mrb[0].mxu0
    %v358 = vadd.f32 %v239, %v357
    %v359 = vpop.f32.mrb[0].mxu0
    %360 = vmatprep.mubr.f32.mxu0 0.0
    %361 = vmatmul.mubr.f32.gmra.mrb[0].mxu0 %v261
    %v362 = vpop.f32.mrb[0].mxu0
    %v363 = vadd.f32 %v239, %v362
    %v364 = vpop.f32.mrb[0].mxu0
    %365 = vmatprep.mubr.f32.mxu0 0.0
    %366 = vmatmul.mubr.f32.gmra.mrb[0].mxu0 %v264
    %v367 = vpop.f32.mrb[0].mxu0
    %v368 = vadd.f32 %v239, %v367
    %v369 = vpop.f32.mrb[0].mxu0
    %370 = vdwg.mxu0
    %371 = vxpose.xlu0.b32.start [1/16] %v333, 128
    %372 = vxpose.xlu0.b32.cont [2/16] 0.0, 128
    %373 = vxpose.xlu0.b32.cont [3/16] 0.0, 128
    %374 = vxpose.xlu0.b32.cont [4/16] 0.0, 128
    %375 = vxpose.xlu0.b32.cont [5/16] 0.0, 128
    %376 = vxpose.xlu0.b32.cont [6/16] 0.0, 128
    %377 = vxpose.xlu0.b32.cont [7/16] 0.0, 128
    %378 = vxpose.xlu0.b32.cont [8/16] 0.0, 128
    %379 = vxpose.xlu0.b32.cont [9/16] 0.0, 128
    %380 = vxpose.xlu0.b32.cont [10/16] 0.0, 128
    %381 = vxpose.xlu0.b32.cont [11/16] 0.0, 128
    %382 = vxpose.xlu0.b32.cont [12/16] 0.0, 128
    %383 = vxpose.xlu0.b32.cont [13/16] 0.0, 128
    %384 = vxpose.xlu0.b32.cont [14/16] 0.0, 128
    %385 = vxpose.xlu0.b32.cont [15/16] 0.0, 128
    %386 = vxpose.xlu0.b32.end [16/16] 0.0, 128
    %v387 = vpop.trf.xlu0
    %v388 = vpop.trf.xlu0
    %v389 = vpop.trf.xlu0
    %v390 = vpop.trf.xlu0
    %v391 = vpop.trf.xlu0
    %v392 = vpop.trf.xlu0
    %v393 = vpop.trf.xlu0
    %v394 = vpop.trf.xlu0
    %v395 = vpop.trf.xlu0
    %v396 = vpop.trf.xlu0
    %v397 = vpop.trf.xlu0
    %v398 = vpop.trf.xlu0
    %v399 = vpop.trf.xlu0
    %v400 = vpop.trf.xlu0
    %v401 = vpop.trf.xlu0
    %v402 = vpop.trf.xlu0
    %403 = vxpose.xlu0.b32.start [1/16] %v338, 128
    %404 = vxpose.xlu0.b32.cont [2/16] 0.0, 128
    %405 = vxpose.xlu0.b32.cont [3/16] 0.0, 128
    %406 = vxpose.xlu0.b32.cont [4/16] 0.0, 128
    %407 = vxpose.xlu0.b32.cont [5/16] 0.0, 128
    %408 = vxpose.xlu0.b32.cont [6/16] 0.0, 128
    %409 = vxpose.xlu0.b32.cont [7/16] 0.0, 128
    %410 = vxpose.xlu0.b32.cont [8/16] 0.0, 128
    %411 = vxpose.xlu0.b32.cont [9/16] 0.0, 128
    %412 = vxpose.xlu0.b32.cont [10/16] 0.0, 128
    %413 = vxpose.xlu0.b32.cont [11/16] 0.0, 128
    %414 = vxpose.xlu0.b32.cont [12/16] 0.0, 128
    %415 = vxpose.xlu0.b32.cont [13/16] 0.0, 128
    %416 = vxpose.xlu0.b32.cont [14/16] 0.0, 128
    %417 = vxpose.xlu0.b32.cont [15/16] 0.0, 128
    %418 = vxpose.xlu0.b32.end [16/16] 0.0, 128
    %v419 = vpop.trf.xlu0
    %v420 = vpop.trf.xlu0
    %v421 = vpop.trf.xlu0
    %v422 = vpop.trf.xlu0
    %v423 = vpop.trf.xlu0
    %v424 = vpop.trf.xlu0
    %v425 = vpop.trf.xlu0
    %v426 = vpop.trf.xlu0
    %v427 = vpop.trf.xlu0
    %v428 = vpop.trf.xlu0
    %v429 = vpop.trf.xlu0
    %v430 = vpop.trf.xlu0
    %v431 = vpop.trf.xlu0
    %v432 = vpop.trf.xlu0
    %v433 = vpop.trf.xlu0
    %v434 = vpop.trf.xlu0
    %435 = vxpose.xlu0.b32.start [1/16] %v343, 128
    %436 = vxpose.xlu0.b32.cont [2/16] 0.0, 128
    %437 = vxpose.xlu0.b32.cont [3/16] 0.0, 128
    %438 = vxpose.xlu0.b32.cont [4/16] 0.0, 128
    %439 = vxpose.xlu0.b32.cont [5/16] 0.0, 128
    %440 = vxpose.xlu0.b32.cont [6/16] 0.0, 128
    %441 = vxpose.xlu0.b32.cont [7/16] 0.0, 128
    %442 = vxpose.xlu0.b32.cont [8/16] 0.0, 128
    %443 = vxpose.xlu0.b32.cont [9/16] 0.0, 128
    %444 = vxpose.xlu0.b32.cont [10/16] 0.0, 128
    %445 = vxpose.xlu0.b32.cont [11/16] 0.0, 128
    %446 = vxpose.xlu0.b32.cont [12/16] 0.0, 128
    %447 = vxpose.xlu0.b32.cont [13/16] 0.0, 128
    %448 = vxpose.xlu0.b32.cont [14/16] 0.0, 128
    %449 = vxpose.xlu0.b32.cont [15/16] 0.0, 128
    %450 = vxpose.xlu0.b32.end [16/16] 0.0, 128
    %v451 = vpop.trf.xlu0
    %v452 = vpop.trf.xlu0
    %v453 = vpop.trf.xlu0
    %v454 = vpop.trf.xlu0
    %v455 = vpop.trf.xlu0
    %v456 = vpop.trf.xlu0
    %v457 = vpop.trf.xlu0
    %v458 = vpop.trf.xlu0
    %v459 = vpop.trf.xlu0
    %v460 = vpop.trf.xlu0
    %v461 = vpop.trf.xlu0
    %v462 = vpop.trf.xlu0
    %v463 = vpop.trf.xlu0
    %v464 = vpop.trf.xlu0
    %v465 = vpop.trf.xlu0
    %v466 = vpop.trf.xlu0
    %467 = vxpose.xlu0.b32.start [1/16] %v348, 128
    %468 = vxpose.xlu0.b32.cont [2/16] 0.0, 128
    %469 = vxpose.xlu0.b32.cont [3/16] 0.0, 128
    %470 = vxpose.xlu0.b32.cont [4/16] 0.0, 128
    %471 = vxpose.xlu0.b32.cont [5/16] 0.0, 128
    %472 = vxpose.xlu0.b32.cont [6/16] 0.0, 128
    %473 = vxpose.xlu0.b32.cont [7/16] 0.0, 128
    %474 = vxpose.xlu0.b32.cont [8/16] 0.0, 128
    %475 = vxpose.xlu0.b32.cont [9/16] 0.0, 128
    %476 = vxpose.xlu0.b32.cont [10/16] 0.0, 128
    %477 = vxpose.xlu0.b32.cont [11/16] 0.0, 128
    %478 = vxpose.xlu0.b32.cont [12/16] 0.0, 128
    %479 = vxpose.xlu0.b32.cont [13/16] 0.0, 128
    %480 = vxpose.xlu0.b32.cont [14/16] 0.0, 128
    %481 = vxpose.xlu0.b32.cont [15/16] 0.0, 128
    %482 = vxpose.xlu0.b32.end [16/16] 0.0, 128
    %v483 = vpop.trf.xlu0
    %v484 = vpop.trf.xlu0
    %v485 = vpop.trf.xlu0
    %v486 = vpop.trf.xlu0
    %v487 = vpop.trf.xlu0
    %v488 = vpop.trf.xlu0
    %v489 = vpop.trf.xlu0
    %v490 = vpop.trf.xlu0
    %v491 = vpop.trf.xlu0
    %v492 = vpop.trf.xlu0
    %v493 = vpop.trf.xlu0
    %v494 = vpop.trf.xlu0
    %v495 = vpop.trf.xlu0
    %v496 = vpop.trf.xlu0
    %v497 = vpop.trf.xlu0
    %v498 = vpop.trf.xlu0
    %499 = vxpose.xlu0.b32.start [1/16] %v353, 128
    %500 = vxpose.xlu0.b32.cont [2/16] 0.0, 128
    %501 = vxpose.xlu0.b32.cont [3/16] 0.0, 128
    %502 = vxpose.xlu0.b32.cont [4/16] 0.0, 128
    %503 = vxpose.xlu0.b32.cont [5/16] 0.0, 128
    %504 = vxpose.xlu0.b32.cont [6/16] 0.0, 128
    %505 = vxpose.xlu0.b32.cont [7/16] 0.0, 128
    %506 = vxpose.xlu0.b32.cont [8/16] 0.0, 128
    %507 = vxpose.xlu0.b32.cont [9/16] 0.0, 128
    %508 = vxpose.xlu0.b32.cont [10/16] 0.0, 128
    %509 = vxpose.xlu0.b32.cont [11/16] 0.0, 128
    %510 = vxpose.xlu0.b32.cont [12/16] 0.0, 128
    %511 = vxpose.xlu0.b32.cont [13/16] 0.0, 128
    %512 = vxpose.xlu0.b32.cont [14/16] 0.0, 128
    %513 = vxpose.xlu0.b32.cont [15/16] 0.0, 128
    %514 = vxpose.xlu0.b32.end [16/16] 0.0, 128
    %v515 = vpop.trf.xlu0
    %v516 = vpop.trf.xlu0
    %v517 = vpop.trf.xlu0
    %v518 = vpop.trf.xlu0
    %v519 = vpop.trf.xlu0
    %v520 = vpop.trf.xlu0
    %v521 = vpop.trf.xlu0
    %v522 = vpop.trf.xlu0
    %v523 = vpop.trf.xlu0
    %v524 = vpop.trf.xlu0
    %v525 = vpop.trf.xlu0
    %v526 = vpop.trf.xlu0
    %v527 = vpop.trf.xlu0
    %v528 = vpop.trf.xlu0
    %v529 = vpop.trf.xlu0
    %v530 = vpop.trf.xlu0
    %531 = vxpose.xlu0.b32.start [1/16] %v358, 128
    %532 = vxpose.xlu0.b32.cont [2/16] 0.0, 128
    %533 = vxpose.xlu0.b32.cont [3/16] 0.0, 128
    %534 = vxpose.xlu0.b32.cont [4/16] 0.0, 128
    %535 = vxpose.xlu0.b32.cont [5/16] 0.0, 128
    %536 = vxpose.xlu0.b32.cont [6/16] 0.0, 128
    %537 = vxpose.xlu0.b32.cont [7/16] 0.0, 128
    %538 = vxpose.xlu0.b32.cont [8/16] 0.0, 128
    %539 = vxpose.xlu0.b32.cont [9/16] 0.0, 128
    %540 = vxpose.xlu0.b32.cont [10/16] 0.0, 128
    %541 = vxpose.xlu0.b32.cont [11/16] 0.0, 128
    %542 = vxpose.xlu0.b32.cont [12/16] 0.0, 128
    %543 = vxpose.xlu0.b32.cont [13/16] 0.0, 128
    %544 = vxpose.xlu0.b32.cont [14/16] 0.0, 128
    %545 = vxpose.xlu0.b32.cont [15/16] 0.0, 128
    %546 = vxpose.xlu0.b32.end [16/16] 0.0, 128
    %v547 = vpop.trf.xlu0
    %v548 = vpop.trf.xlu0
    %v549 = vpop.trf.xlu0
    %v550 = vpop.trf.xlu0
    %v551 = vpop.trf.xlu0
    %v552 = vpop.trf.xlu0
    %v553 = vpop.trf.xlu0
    %v554 = vpop.trf.xlu0
    %v555 = vpop.trf.xlu0
    %v556 = vpop.trf.xlu0
    %v557 = vpop.trf.xlu0
    %v558 = vpop.trf.xlu0
    %v559 = vpop.trf.xlu0
    %v560 = vpop.trf.xlu0
    %v561 = vpop.trf.xlu0
    %v562 = vpop.trf.xlu0
    %563 = vxpose.xlu0.b32.start [1/16] %v363, 128
    %564 = vxpose.xlu0.b32.cont [2/16] 0.0, 128
    %565 = vxpose.xlu0.b32.cont [3/16] 0.0, 128
    %566 = vxpose.xlu0.b32.cont [4/16] 0.0, 128
    %567 = vxpose.xlu0.b32.cont [5/16] 0.0, 128
    %568 = vxpose.xlu0.b32.cont [6/16] 0.0, 128
    %569 = vxpose.xlu0.b32.cont [7/16] 0.0, 128
    %570 = vxpose.xlu0.b32.cont [8/16] 0.0, 128
    %571 = vxpose.xlu0.b32.cont [9/16] 0.0, 128
    %572 = vxpose.xlu0.b32.cont [10/16] 0.0, 128
    %573 = vxpose.xlu0.b32.cont [11/16] 0.0, 128
    %574 = vxpose.xlu0.b32.cont [12/16] 0.0, 128
    %575 = vxpose.xlu0.b32.cont [13/16] 0.0, 128
    %576 = vxpose.xlu0.b32.cont [14/16] 0.0, 128
    %577 = vxpose.xlu0.b32.cont [15/16] 0.0, 128
    %578 = vxpose.xlu0.b32.end [16/16] 0.0, 128
    %v579 = vpop.trf.xlu0
    %v580 = vpop.trf.xlu0
    %v581 = vpop.trf.xlu0
    %v582 = vpop.trf.xlu0
    %v583 = vpop.trf.xlu0
    %v584 = vpop.trf.xlu0
    %v585 = vpop.trf.xlu0
    %v586 = vpop.trf.xlu0
    %v587 = vpop.trf.xlu0
    %v588 = vpop.trf.xlu0
    %v589 = vpop.trf.xlu0
    %v590 = vpop.trf.xlu0
    %v591 = vpop.trf.xlu0
    %v592 = vpop.trf.xlu0
    %v593 = vpop.trf.xlu0
    %v594 = vpop.trf.xlu0
    %595 = vxpose.xlu0.b32.start [1/16] %v368, 128
    %596 = vxpose.xlu0.b32.cont [2/16] 0.0, 128
    %597 = vxpose.xlu0.b32.cont [3/16] 0.0, 128
    %598 = vxpose.xlu0.b32.cont [4/16] 0.0, 128
    %599 = vxpose.xlu0.b32.cont [5/16] 0.0, 128
    %600 = vxpose.xlu0.b32.cont [6/16] 0.0, 128
    %601 = vxpose.xlu0.b32.cont [7/16] 0.0, 128
    %602 = vxpose.xlu0.b32.cont [8/16] 0.0, 128
    %603 = vxpose.xlu0.b32.cont [9/16] 0.0, 128
    %604 = vxpose.xlu0.b32.cont [10/16] 0.0, 128
    %605 = vxpose.xlu0.b32.cont [11/16] 0.0, 128
    %606 = vxpose.xlu0.b32.cont [12/16] 0.0, 128
    %607 = vxpose.xlu0.b32.cont [13/16] 0.0, 128
    %608 = vxpose.xlu0.b32.cont [14/16] 0.0, 128
    %609 = vxpose.xlu0.b32.cont [15/16] 0.0, 128
    %610 = vxpose.xlu0.b32.end [16/16] 0.0, 128
    %v611 = vpop.trf.xlu0
    %v612 = vpop.trf.xlu0
    %v613 = vpop.trf.xlu0
    %v614 = vpop.trf.xlu0
    %v615 = vpop.trf.xlu0
    %v616 = vpop.trf.xlu0
    %v617 = vpop.trf.xlu0
    %v618 = vpop.trf.xlu0
    %v619 = vpop.trf.xlu0
    %v620 = vpop.trf.xlu0
    %v621 = vpop.trf.xlu0
    %v622 = vpop.trf.xlu0
    %v623 = vpop.trf.xlu0
    %v624 = vpop.trf.xlu0
    %v625 = vpop.trf.xlu0
    %v626 = vpop.trf.xlu0
    %v627 = vld [vmem:[#allocation2] sm:$0xff]
    %v629 = vcombine.high %v627, %v627
    %v631 = vunpack.c.l.s4 1966171168
    %v632 = vunpack.c.0.s8 %v631
    %v633 = vlaneseq
    %v634 = vshrl.u32 %v633, 7
    %v635 = vsub.s32 %v632, %v634
    %v636 = vrot.slane %v627, %v635
    %v638 = vunpack.c.l.s4 1966171168
    %v639 = vunpack.c.0.s8 %v638
    %v640 = vlaneseq
    %v641 = vshrl.u32 %v640, 7
    %v642 = vsub.s32 %v639, %v641
    %v643 = vrot.slane %v629, %v642
    %v644 = vcombine.high %v636, %v636
    %v645 = vcombine.high %v643, %v643
    %v647 = vunpack.c.l.s4 1966171168
    %v648 = vunpack.c.0.s8 %v647
    %v649 = vlaneseq
    %v650 = vshrl.u32 %v649, 7
    %v651 = vsub.s32 %v648, %v650
    %v652 = vrot.slane %v636, %v651
    %v654 = vunpack.c.l.s4 1966171168
    %v655 = vunpack.c.0.s8 %v654
    %v656 = vlaneseq
    %v657 = vshrl.u32 %v656, 7
    %v658 = vsub.s32 %v655, %v657
    %v659 = vrot.slane %v643, %v658
    %v661 = vunpack.c.l.s4 1966171168
    %v662 = vunpack.c.0.s8 %v661
    %v663 = vlaneseq
    %v664 = vshrl.u32 %v663, 7
    %v665 = vsub.s32 %v662, %v664
    %v666 = vrot.slane %v644, %v665
    %v668 = vunpack.c.l.s4 1966171168
    %v669 = vunpack.c.0.s8 %v668
    %v670 = vlaneseq
    %v671 = vshrl.u32 %v670, 7
    %v672 = vsub.s32 %v669, %v671
    %v673 = vrot.slane %v645, %v672
    %v674 = vcombine.high %v652, %v652
    %v675 = vcombine.high %v659, %v659
    %v676 = vcombine.high %v666, %v666
    %v677 = vcombine.high %v673, %v673
    %v678 = vlaneseq
    %v679 = vshrl.u32 %v678, 7
    %v680 = vsub.s32 0, %v679
    %v681 = vrot.slane %v652, %v680
    %v682 = vlaneseq
    %v683 = vshrl.u32 %v682, 7
    %v684 = vsub.s32 0, %v683
    %v685 = vrot.slane %v666, %v684
    %v686 = vlaneseq
    %v687 = vshrl.u32 %v686, 7
    %v688 = vsub.s32 0, %v687
    %v689 = vrot.slane %v674, %v688
    %v690 = vlaneseq
    %v691 = vshrl.u32 %v690, 7
    %v692 = vsub.s32 0, %v691
    %v693 = vrot.slane %v676, %v692
    %v694 = vlaneseq
    %v695 = vshrl.u32 %v694, 7
    %v696 = vsub.s32 0, %v695
    %v697 = vrot.slane %v659, %v696
    %v698 = vlaneseq
    %v699 = vshrl.u32 %v698, 7
    %v700 = vsub.s32 0, %v699
    %v701 = vrot.slane %v673, %v700
    %v702 = vlaneseq
    %v703 = vshrl.u32 %v702, 7
    %v704 = vsub.s32 0, %v703
    %v705 = vrot.slane %v675, %v704
    %v706 = vlaneseq
    %v707 = vshrl.u32 %v706, 7
    %v708 = vsub.s32 0, %v707
    %v709 = vrot.slane %v677, %v708
    %v718 = vadd.f32 %v387, %v681
    %v719 = vadd.f32 %v419, %v685
    %v720 = vadd.f32 %v451, %v689
    %v721 = vadd.f32 %v483, %v693
    %v722 = vadd.f32 %v515, %v697
    %v723 = vadd.f32 %v547, %v701
    %v724 = vadd.f32 %v579, %v705
    %v725 = vadd.f32 %v611, %v709
    %vm726 = vcmask 58368
    %v727 = vsel %vm726, %v718, -inf
    %728 = vmax.xlane.f32.xlu0 %v727
    %v729 = vpop.xlane.xlu0 %728
    %v730 = vsel %vm726, %v719, -inf
    %731 = vmax.xlane.f32.xlu0 %v730
    %v732 = vpop.xlane.xlu0 %731
    %v733 = vsel %vm726, %v720, -inf
    %734 = vmax.xlane.f32.xlu0 %v733
    %v735 = vpop.xlane.xlu0 %734
    %v736 = vsel %vm726, %v721, -inf
    %737 = vmax.xlane.f32.xlu0 %v736
    %v738 = vpop.xlane.xlu0 %737
    %v739 = vsel %vm726, %v722, -inf
    %740 = vmax.xlane.f32.xlu0 %v739
    %v741 = vpop.xlane.xlu0 %740
    %v742 = vsel %vm726, %v723, -inf
    %743 = vmax.xlane.f32.xlu0 %v742
    %v744 = vpop.xlane.xlu0 %743
    %v745 = vsel %vm726, %v724, -inf
    %746 = vmax.xlane.f32.xlu0 %v745
    %v747 = vpop.xlane.xlu0 %746
    %v748 = vsel %vm726, %v725, -inf
    %749 = vmax.xlane.f32.xlu0 %v748
    %v750 = vpop.xlane.xlu0 %749
    %v751 = vsub.f32 %v718, %v729
    %v752 = vsub.f32 %v719, %v732
    %v753 = vsub.f32 %v720, %v735
    %v754 = vsub.f32 %v721, %v738
    %v755 = vsub.f32 %v722, %v741
    %v756 = vsub.f32 %v723, %v744
    %v757 = vsub.f32 %v724, %v747
    %v758 = vsub.f32 %v725, %v750
    %v759 = vmul.f32 %v751, 1.442695
    %v760 = vpow.pop %v759
    %v761 = vmul.f32 %v752, 1.442695
    %v762 = vpow.pop %v761
    %v763 = vmul.f32 %v753, 1.442695
    %v764 = vpow.pop %v763
    %v765 = vmul.f32 %v754, 1.442695
    %v766 = vpow.pop %v765
    %v767 = vmul.f32 %v755, 1.442695
    %v768 = vpow.pop %v767
    %v769 = vmul.f32 %v756, 1.442695
    %v770 = vpow.pop %v769
    %v771 = vmul.f32 %v757, 1.442695
    %v772 = vpow.pop %v771
    %v773 = vmul.f32 %v758, 1.442695
    %v774 = vpow.pop %v773
    %v775 = vsel %vm726, %v760, 0.0
    %776 = vadd.xlane.f32.xlu0 %v775
    %v777 = vpop.xlane.xlu0 %776
    %v778 = vsel %vm726, %v762, 0.0
    %779 = vadd.xlane.f32.xlu0 %v778
    %v780 = vpop.xlane.xlu0 %779
    %v781 = vsel %vm726, %v764, 0.0
    %782 = vadd.xlane.f32.xlu0 %v781
    %v783 = vpop.xlane.xlu0 %782
    %v784 = vsel %vm726, %v766, 0.0
    %785 = vadd.xlane.f32.xlu0 %v784
    %v786 = vpop.xlane.xlu0 %785
    %v787 = vsel %vm726, %v768, 0.0
    %788 = vadd.xlane.f32.xlu0 %v787
    %v789 = vpop.xlane.xlu0 %788
    %v790 = vsel %vm726, %v770, 0.0
    %791 = vadd.xlane.f32.xlu0 %v790
    %v792 = vpop.xlane.xlu0 %791
    %v793 = vsel %vm726, %v772, 0.0
    %794 = vadd.xlane.f32.xlu0 %v793
    %v795 = vpop.xlane.xlu0 %794
    %v796 = vsel %vm726, %v774, 0.0
    %797 = vadd.xlane.f32.xlu0 %v796
    %v798 = vpop.xlane.xlu0 %797
    %v799 = vrcp.pop %v777
    %v800 = vrcp.pop %v780
    %v801 = vrcp.pop %v783
    %v802 = vrcp.pop %v786
    %v803 = vrcp.pop %v789
    %v804 = vrcp.pop %v792
    %v805 = vrcp.pop %v795
    %v806 = vrcp.pop %v798
    %v807 = vmul.f32 %v777, %v799
    %v808 = vmul.f32 %v780, %v800
    %v809 = vmul.f32 %v783, %v801
    %v810 = vmul.f32 %v786, %v802
    %v811 = vmul.f32 %v789, %v803
    %v812 = vmul.f32 %v792, %v804
    %v813 = vmul.f32 %v795, %v805
    %v814 = vmul.f32 %v798, %v806
    %v815 = vsub.f32 2.0, %v807
    %v816 = vsub.f32 2.0, %v808
    %v817 = vsub.f32 2.0, %v809
    %v818 = vsub.f32 2.0, %v810
    %v819 = vsub.f32 2.0, %v811
    %v820 = vsub.f32 2.0, %v812
    %v821 = vsub.f32 2.0, %v813
    %v822 = vsub.f32 2.0, %v814
    %v823 = vmul.f32 %v799, %v815
    %v824 = vmul.f32 %v800, %v816
    %v825 = vmul.f32 %v801, %v817
    %v826 = vmul.f32 %v802, %v818
    %v827 = vmul.f32 %v803, %v819
    %v828 = vmul.f32 %v804, %v820
    %v829 = vmul.f32 %v805, %v821
    %v830 = vmul.f32 %v806, %v822
    %v831 = vmul.f32 %v760, %v823
    %v832 = vmul.f32 %v762, %v824
    %v833 = vmul.f32 %v764, %v825
    %v834 = vmul.f32 %v766, %v826
    %v835 = vmul.f32 %v768, %v827
    %v836 = vmul.f32 %v770, %v828
    %v837 = vmul.f32 %v772, %v829
    %v838 = vmul.f32 %v774, %v830
    %vm839 = vcmask 64512
    %v841 = vsel %vm839, %v831, 0
    %843 = vmatprep.subr.mxu0 0.0
    %844 = vmatpush1.msra.mxu0 %v69
    %845 = vmatprep.subr.mxu0 0.0
    %846 = vmatpush1.msra.mxu0 0.0
    %847 = vmatprep.subr.mxu0 0.0
    %848 = vmatpush1.msra.mxu0 0.0
    %849 = vmatprep.subr.mxu0 0.0
    %850 = vmatpush1.msra.mxu0 0.0
    %851 = vmatprep.subr.mxu0 0.0
    %852 = vmatpush1.msra.mxu0 0.0
    %853 = vmatprep.subr.mxu0 0.0
    %854 = vmatpush1.msra.mxu0 0.0
    %855 = vmatprep.subr.mxu0 0.0
    %856 = vmatpush1.msra.mxu0 0.0
    %857 = vmatprep.subr.mxu0 0.0
    %858 = vmatpush1.msra.mxu0 0.0
    %859 = vmatprep.subr.mxu0 0.0
    %860 = vmatpush1.msra.mxu0 0.0
    %861 = vmatprep.subr.mxu0 0.0
    %862 = vmatpush1.msra.mxu0 0.0
    %863 = vmatprep.subr.mxu0 0.0
    %864 = vmatpush1.msra.mxu0 0.0
    %865 = vmatprep.subr.mxu0 0.0
    %866 = vmatpush1.msra.mxu0 0.0
    %867 = vmatprep.subr.mxu0 0.0
    %868 = vmatpush1.msra.mxu0 0.0
    %869 = vmatprep.subr.mxu0 0.0
    %870 = vmatpush1.msra.mxu0 0.0
    %871 = vmatprep.subr.mxu0 0.0
    %872 = vmatpush1.msra.mxu0 0.0
    %873 = vmatprep.subr.mxu0 0.0
    %874 = vmatpush1.msra.mxu0 0.0
    %875 = vmatprep.subr.mxu0 0.0
    %876 = vmatpush1.msra.mxu0 0.0
    %877 = vmatprep.subr.mxu0 0.0
    %878 = vmatpush1.msra.mxu0 0.0
    %879 = vmatprep.subr.mxu0 0.0
    %880 = vmatpush1.msra.mxu0 0.0
    %881 = vmatprep.subr.mxu0 0.0
    %882 = vmatpush1.msra.mxu0 0.0
    %883 = vmatprep.subr.mxu0 0.0
    %884 = vmatpush1.msra.mxu0 0.0
    %885 = vmatprep.subr.mxu0 0.0
    %886 = vmatpush1.msra.mxu0 0.0
    %887 = vmatprep.subr.mxu0 0.0
    %888 = vmatpush1.msra.mxu0 0.0
    %889 = vmatprep.subr.mxu0 0.0
    %890 = vmatpush1.msra.mxu0 0.0
    %891 = vmatprep.subr.mxu0 0.0
    %892 = vmatpush1.msra.mxu0 0.0
    %893 = vmatprep.subr.mxu0 0.0
    %894 = vmatpush1.msra.mxu0 0.0
    %895 = vmatprep.subr.mxu0 0.0
    %896 = vmatpush1.msra.mxu0 0.0
    %897 = vmatprep.subr.mxu0 0.0
    %898 = vmatpush1.msra.mxu0 0.0
    %899 = vmatprep.subr.mxu0 0.0
    %900 = vmatpush1.msra.mxu0 0.0
    %901 = vmatprep.subr.mxu0 0.0
    %902 = vmatpush1.msra.mxu0 0.0
    %903 = vmatprep.subr.mxu0 0.0
    %904 = vmatpush1.msra.mxu0 0.0
    %905 = vmatprep.subr.mxu0 0.0
    %906 = vmatpush1.msra.mxu0 0.0
    %907 = vmatprep.mubr.f32.mxu0 0.0
    %908 = vmatmul.mubr.f32.gmra.mrb[0].mxu0 %v841
    %v909 = vpop.f32.mrb[0].mxu0
    %v910 = vadd.f32 0.0, %v909
    %v911 = vpop.f32.mrb[0].mxu0
    %912 = vdwg.mxu0
    %v914 = vsel %vm839, %v832, 0
    %916 = vmatprep.subr.mxu0 0.0
    %917 = vmatpush1.msra.mxu0 %v70
    %918 = vmatprep.subr.mxu0 0.0
    %919 = vmatpush1.msra.mxu0 0.0
    %920 = vmatprep.subr.mxu0 0.0
    %921 = vmatpush1.msra.mxu0 0.0
    %922 = vmatprep.subr.mxu0 0.0
    %923 = vmatpush1.msra.mxu0 0.0
    %924 = vmatprep.subr.mxu0 0.0
    %925 = vmatpush1.msra.mxu0 0.0
    %926 = vmatprep.subr.mxu0 0.0
    %927 = vmatpush1.msra.mxu0 0.0
    %928 = vmatprep.subr.mxu0 0.0
    %929 = vmatpush1.msra.mxu0 0.0
    %930 = vmatprep.subr.mxu0 0.0
    %931 = vmatpush1.msra.mxu0 0.0
    %932 = vmatprep.subr.mxu0 0.0
    %933 = vmatpush1.msra.mxu0 0.0
    %934 = vmatprep.subr.mxu0 0.0
    %935 = vmatpush1.msra.mxu0 0.0
    %936 = vmatprep.subr.mxu0 0.0
    %937 = vmatpush1.msra.mxu0 0.0
    %938 = vmatprep.subr.mxu0 0.0
    %939 = vmatpush1.msra.mxu0 0.0
    %940 = vmatprep.subr.mxu0 0.0
    %941 = vmatpush1.msra.mxu0 0.0
    %942 = vmatprep.subr.mxu0 0.0
    %943 = vmatpush1.msra.mxu0 0.0
    %944 = vmatprep.subr.mxu0 0.0
    %945 = vmatpush1.msra.mxu0 0.0
    %946 = vmatprep.subr.mxu0 0.0
    %947 = vmatpush1.msra.mxu0 0.0
    %948 = vmatprep.subr.mxu0 0.0
    %949 = vmatpush1.msra.mxu0 0.0
    %950 = vmatprep.subr.mxu0 0.0
    %951 = vmatpush1.msra.mxu0 0.0
    %952 = vmatprep.subr.mxu0 0.0
    %953 = vmatpush1.msra.mxu0 0.0
    %954 = vmatprep.subr.mxu0 0.0
    %955 = vmatpush1.msra.mxu0 0.0
    %956 = vmatprep.subr.mxu0 0.0
    %957 = vmatpush1.msra.mxu0 0.0
    %958 = vmatprep.subr.mxu0 0.0
    %959 = vmatpush1.msra.mxu0 0.0
    %960 = vmatprep.subr.mxu0 0.0
    %961 = vmatpush1.msra.mxu0 0.0
    %962 = vmatprep.subr.mxu0 0.0
    %963 = vmatpush1.msra.mxu0 0.0
    %964 = vmatprep.subr.mxu0 0.0
    %965 = vmatpush1.msra.mxu0 0.0
    %966 = vmatprep.subr.mxu0 0.0
    %967 = vmatpush1.msra.mxu0 0.0
    %968 = vmatprep.subr.mxu0 0.0
    %969 = vmatpush1.msra.mxu0 0.0
    %970 = vmatprep.subr.mxu0 0.0
    %971 = vmatpush1.msra.mxu0 0.0
    %972 = vmatprep.subr.mxu0 0.0
    %973 = vmatpush1.msra.mxu0 0.0
    %974 = vmatprep.subr.mxu0 0.0
    %975 = vmatpush1.msra.mxu0 0.0
    %976 = vmatprep.subr.mxu0 0.0
    %977 = vmatpush1.msra.mxu0 0.0
    %978 = vmatprep.subr.mxu0 0.0
    %979 = vmatpush1.msra.mxu0 0.0
    %980 = vmatprep.mubr.f32.mxu0 0.0
    %981 = vmatmul.mubr.f32.gmra.mrb[0].mxu0 %v914
    %v982 = vpop.f32.mrb[0].mxu0
    %v983 = vadd.f32 0.0, %v982
    %v984 = vpop.f32.mrb[0].mxu0
    %985 = vdwg.mxu0
    %v987 = vsel %vm839, %v833, 0
    %989 = vmatprep.subr.mxu0 0.0
    %990 = vmatpush1.msra.mxu0 %v71
    %991 = vmatprep.subr.mxu0 0.0
    %992 = vmatpush1.msra.mxu0 0.0
    %993 = vmatprep.subr.mxu0 0.0
    %994 = vmatpush1.msra.mxu0 0.0
    %995 = vmatprep.subr.mxu0 0.0
    %996 = vmatpush1.msra.mxu0 0.0
    %997 = vmatprep.subr.mxu0 0.0
    %998 = vmatpush1.msra.mxu0 0.0
    %999 = vmatprep.subr.mxu0 0.0
    %1000 = vmatpush1.msra.mxu0 0.0
    %1001 = vmatprep.subr.mxu0 0.0
    %1002 = vmatpush1.msra.mxu0 0.0
    %1003 = vmatprep.subr.mxu0 0.0
    %1004 = vmatpush1.msra.mxu0 0.0
    %1005 = vmatprep.subr.mxu0 0.0
    %1006 = vmatpush1.msra.mxu0 0.0
    %1007 = vmatprep.subr.mxu0 0.0
    %1008 = vmatpush1.msra.mxu0 0.0
    %1009 = vmatprep.subr.mxu0 0.0
    %1010 = vmatpush1.msra.mxu0 0.0
    %1011 = vmatprep.subr.mxu0 0.0
    %1012 = vmatpush1.msra.mxu0 0.0
    %1013 = vmatprep.subr.mxu0 0.0
    %1014 = vmatpush1.msra.mxu0 0.0
    %1015 = vmatprep.subr.mxu0 0.0
    %1016 = vmatpush1.msra.mxu0 0.0
    %1017 = vmatprep.subr.mxu0 0.0
    %1018 = vmatpush1.msra.mxu0 0.0
    %1019 = vmatprep.subr.mxu0 0.0
    %1020 = vmatpush1.msra.mxu0 0.0
    %1021 = vmatprep.subr.mxu0 0.0
    %1022 = vmatpush1.msra.mxu0 0.0
    %1023 = vmatprep.subr.mxu0 0.0
    %1024 = vmatpush1.msra.mxu0 0.0
    %1025 = vmatprep.subr.mxu0 0.0
    %1026 = vmatpush1.msra.mxu0 0.0
    %1027 = vmatprep.subr.mxu0 0.0
    %1028 = vmatpush1.msra.mxu0 0.0
    %1029 = vmatprep.subr.mxu0 0.0
    %1030 = vmatpush1.msra.mxu0 0.0
    %1031 = vmatprep.subr.mxu0 0.0
    %1032 = vmatpush1.msra.mxu0 0.0
    %1033 = vmatprep.subr.mxu0 0.0
    %1034 = vmatpush1.msra.mxu0 0.0
    %1035 = vmatprep.subr.mxu0 0.0
    %1036 = vmatpush1.msra.mxu0 0.0
    %1037 = vmatprep.subr.mxu0 0.0
    %1038 = vmatpush1.msra.mxu0 0.0
    %1039 = vmatprep.subr.mxu0 0.0
    %1040 = vmatpush1.msra.mxu0 0.0
    %1041 = vmatprep.subr.mxu0 0.0
    %1042 = vmatpush1.msra.mxu0 0.0
    %1043 = vmatprep.subr.mxu0 0.0
    %1044 = vmatpush1.msra.mxu0 0.0
    %1045 = vmatprep.subr.mxu0 0.0
    %1046 = vmatpush1.msra.mxu0 0.0
    %1047 = vmatprep.subr.mxu0 0.0
    %1048 = vmatpush1.msra.mxu0 0.0
    %1049 = vmatprep.subr.mxu0 0.0
    %1050 = vmatpush1.msra.mxu0 0.0
    %1051 = vmatprep.subr.mxu0 0.0
    %1052 = vmatpush1.msra.mxu0 0.0
    %1053 = vmatprep.mubr.f32.mxu0 0.0
    %1054 = vmatmul.mubr.f32.gmra.mrb[0].mxu0 %v987
    %v1055 = vpop.f32.mrb[0].mxu0
    %v1056 = vadd.f32 0.0, %v1055
    %v1057 = vpop.f32.mrb[0].mxu0
    %1058 = vdwg.mxu0
    %v1060 = vsel %vm839, %v834, 0
    %1062 = vmatprep.subr.mxu0 0.0
    %1063 = vmatpush1.msra.mxu0 %v72
    %1064 = vmatprep.subr.mxu0 0.0
    %1065 = vmatpush1.msra.mxu0 0.0
    %1066 = vmatprep.subr.mxu0 0.0
    %1067 = vmatpush1.msra.mxu0 0.0
    %1068 = vmatprep.subr.mxu0 0.0
    %1069 = vmatpush1.msra.mxu0 0.0
    %1070 = vmatprep.subr.mxu0 0.0
    %1071 = vmatpush1.msra.mxu0 0.0
    %1072 = vmatprep.subr.mxu0 0.0
    %1073 = vmatpush1.msra.mxu0 0.0
    %1074 = vmatprep.subr.mxu0 0.0
    %1075 = vmatpush1.msra.mxu0 0.0
    %1076 = vmatprep.subr.mxu0 0.0
    %1077 = vmatpush1.msra.mxu0 0.0
    %1078 = vmatprep.subr.mxu0 0.0
    %1079 = vmatpush1.msra.mxu0 0.0
    %1080 = vmatprep.subr.mxu0 0.0
    %1081 = vmatpush1.msra.mxu0 0.0
    %1082 = vmatprep.subr.mxu0 0.0
    %1083 = vmatpush1.msra.mxu0 0.0
    %1084 = vmatprep.subr.mxu0 0.0
    %1085 = vmatpush1.msra.mxu0 0.0
    %1086 = vmatprep.subr.mxu0 0.0
    %1087 = vmatpush1.msra.mxu0 0.0
    %1088 = vmatprep.subr.mxu0 0.0
    %1089 = vmatpush1.msra.mxu0 0.0
    %1090 = vmatprep.subr.mxu0 0.0
    %1091 = vmatpush1.msra.mxu0 0.0
    %1092 = vmatprep.subr.mxu0 0.0
    %1093 = vmatpush1.msra.mxu0 0.0
    %1094 = vmatprep.subr.mxu0 0.0
    %1095 = vmatpush1.msra.mxu0 0.0
    %1096 = vmatprep.subr.mxu0 0.0
    %1097 = vmatpush1.msra.mxu0 0.0
    %1098 = vmatprep.subr.mxu0 0.0
    %1099 = vmatpush1.msra.mxu0 0.0
    %1100 = vmatprep.subr.mxu0 0.0
    %1101 = vmatpush1.msra.mxu0 0.0
    %1102 = vmatprep.subr.mxu0 0.0
    %1103 = vmatpush1.msra.mxu0 0.0
    %1104 = vmatprep.subr.mxu0 0.0
    %1105 = vmatpush1.msra.mxu0 0.0
    %1106 = vmatprep.subr.mxu0 0.0
    %1107 = vmatpush1.msra.mxu0 0.0
    %1108 = vmatprep.subr.mxu0 0.0
    %1109 = vmatpush1.msra.mxu0 0.0
    %1110 = vmatprep.subr.mxu0 0.0
    %1111 = vmatpush1.msra.mxu0 0.0
    %1112 = vmatprep.subr.mxu0 0.0
    %1113 = vmatpush1.msra.mxu0 0.0
    %1114 = vmatprep.subr.mxu0 0.0
    %1115 = vmatpush1.msra.mxu0 0.0
    %1116 = vmatprep.subr.mxu0 0.0
    %1117 = vmatpush1.msra.mxu0 0.0
    %1118 = vmatprep.subr.mxu0 0.0
    %1119 = vmatpush1.msra.mxu0 0.0
    %1120 = vmatprep.subr.mxu0 0.0
    %1121 = vmatpush1.msra.mxu0 0.0
    %1122 = vmatprep.subr.mxu0 0.0
    %1123 = vmatpush1.msra.mxu0 0.0
    %1124 = vmatprep.subr.mxu0 0.0
    %1125 = vmatpush1.msra.mxu0 0.0
    %1126 = vmatprep.mubr.f32.mxu0 0.0
    %1127 = vmatmul.mubr.f32.gmra.mrb[0].mxu0 %v1060
    %v1128 = vpop.f32.mrb[0].mxu0
    %v1129 = vadd.f32 0.0, %v1128
    %v1130 = vpop.f32.mrb[0].mxu0
    %1131 = vdwg.mxu0
    %v1133 = vsel %vm839, %v835, 0
    %1135 = vmatprep.subr.mxu0 0.0
    %1136 = vmatpush1.msra.mxu0 %v73
    %1137 = vmatprep.subr.mxu0 0.0
    %1138 = vmatpush1.msra.mxu0 0.0
    %1139 = vmatprep.subr.mxu0 0.0
    %1140 = vmatpush1.msra.mxu0 0.0
    %1141 = vmatprep.subr.mxu0 0.0
    %1142 = vmatpush1.msra.mxu0 0.0
    %1143 = vmatprep.subr.mxu0 0.0
    %1144 = vmatpush1.msra.mxu0 0.0
    %1145 = vmatprep.subr.mxu0 0.0
    %1146 = vmatpush1.msra.mxu0 0.0
    %1147 = vmatprep.subr.mxu0 0.0
    %1148 = vmatpush1.msra.mxu0 0.0
    %1149 = vmatprep.subr.mxu0 0.0
    %1150 = vmatpush1.msra.mxu0 0.0
    %1151 = vmatprep.subr.mxu0 0.0
    %1152 = vmatpush1.msra.mxu0 0.0
    %1153 = vmatprep.subr.mxu0 0.0
    %1154 = vmatpush1.msra.mxu0 0.0
    %1155 = vmatprep.subr.mxu0 0.0
    %1156 = vmatpush1.msra.mxu0 0.0
    %1157 = vmatprep.subr.mxu0 0.0
    %1158 = vmatpush1.msra.mxu0 0.0
    %1159 = vmatprep.subr.mxu0 0.0
    %1160 = vmatpush1.msra.mxu0 0.0
    %1161 = vmatprep.subr.mxu0 0.0
    %1162 = vmatpush1.msra.mxu0 0.0
    %1163 = vmatprep.subr.mxu0 0.0
    %1164 = vmatpush1.msra.mxu0 0.0
    %1165 = vmatprep.subr.mxu0 0.0
    %1166 = vmatpush1.msra.mxu0 0.0
    %1167 = vmatprep.subr.mxu0 0.0
    %1168 = vmatpush1.msra.mxu0 0.0
    %1169 = vmatprep.subr.mxu0 0.0
    %1170 = vmatpush1.msra.mxu0 0.0
    %1171 = vmatprep.subr.mxu0 0.0
    %1172 = vmatpush1.msra.mxu0 0.0
    %1173 = vmatprep.subr.mxu0 0.0
    %1174 = vmatpush1.msra.mxu0 0.0
    %1175 = vmatprep.subr.mxu0 0.0
    %1176 = vmatpush1.msra.mxu0 0.0
    %1177 = vmatprep.subr.mxu0 0.0
    %1178 = vmatpush1.msra.mxu0 0.0
    %1179 = vmatprep.subr.mxu0 0.0
    %1180 = vmatpush1.msra.mxu0 0.0
    %1181 = vmatprep.subr.mxu0 0.0
    %1182 = vmatpush1.msra.mxu0 0.0
    %1183 = vmatprep.subr.mxu0 0.0
    %1184 = vmatpush1.msra.mxu0 0.0
    %1185 = vmatprep.subr.mxu0 0.0
    %1186 = vmatpush1.msra.mxu0 0.0
    %1187 = vmatprep.subr.mxu0 0.0
    %1188 = vmatpush1.msra.mxu0 0.0
    %1189 = vmatprep.subr.mxu0 0.0
    %1190 = vmatpush1.msra.mxu0 0.0
    %1191 = vmatprep.subr.mxu0 0.0
    %1192 = vmatpush1.msra.mxu0 0.0
    %1193 = vmatprep.subr.mxu0 0.0
    %1194 = vmatpush1.msra.mxu0 0.0
    %1195 = vmatprep.subr.mxu0 0.0
    %1196 = vmatpush1.msra.mxu0 0.0
    %1197 = vmatprep.subr.mxu0 0.0
    %1198 = vmatpush1.msra.mxu0 0.0
    %1199 = vmatprep.mubr.f32.mxu0 0.0
    %1200 = vmatmul.mubr.f32.gmra.mrb[0].mxu0 %v1133
    %v1201 = vpop.f32.mrb[0].mxu0
    %v1202 = vadd.f32 0.0, %v1201
    %v1203 = vpop.f32.mrb[0].mxu0
    %1204 = vdwg.mxu0
    %v1206 = vsel %vm839, %v836, 0
    %1208 = vmatprep.subr.mxu0 0.0
    %1209 = vmatpush1.msra.mxu0 %v74
    %1210 = vmatprep.subr.mxu0 0.0
    %1211 = vmatpush1.msra.mxu0 0.0
    %1212 = vmatprep.subr.mxu0 0.0
    %1213 = vmatpush1.msra.mxu0 0.0
    %1214 = vmatprep.subr.mxu0 0.0
    %1215 = vmatpush1.msra.mxu0 0.0
    %1216 = vmatprep.subr.mxu0 0.0
    %1217 = vmatpush1.msra.mxu0 0.0
    %1218 = vmatprep.subr.mxu0 0.0
    %1219 = vmatpush1.msra.mxu0 0.0
    %1220 = vmatprep.subr.mxu0 0.0
    %1221 = vmatpush1.msra.mxu0 0.0
    %1222 = vmatprep.subr.mxu0 0.0
    %1223 = vmatpush1.msra.mxu0 0.0
    %1224 = vmatprep.subr.mxu0 0.0
    %1225 = vmatpush1.msra.mxu0 0.0
    %1226 = vmatprep.subr.mxu0 0.0
    %1227 = vmatpush1.msra.mxu0 0.0
    %1228 = vmatprep.subr.mxu0 0.0
    %1229 = vmatpush1.msra.mxu0 0.0
    %1230 = vmatprep.subr.mxu0 0.0
    %1231 = vmatpush1.msra.mxu0 0.0
    %1232 = vmatprep.subr.mxu0 0.0
    %1233 = vmatpush1.msra.mxu0 0.0
    %1234 = vmatprep.subr.mxu0 0.0
    %1235 = vmatpush1.msra.mxu0 0.0
    %1236 = vmatprep.subr.mxu0 0.0
    %1237 = vmatpush1.msra.mxu0 0.0
    %1238 = vmatprep.subr.mxu0 0.0
    %1239 = vmatpush1.msra.mxu0 0.0
    %1240 = vmatprep.subr.mxu0 0.0
    %1241 = vmatpush1.msra.mxu0 0.0
    %1242 = vmatprep.subr.mxu0 0.0
    %1243 = vmatpush1.msra.mxu0 0.0
    %1244 = vmatprep.subr.mxu0 0.0
    %1245 = vmatpush1.msra.mxu0 0.0
    %1246 = vmatprep.subr.mxu0 0.0
    %1247 = vmatpush1.msra.mxu0 0.0
    %1248 = vmatprep.subr.mxu0 0.0
    %1249 = vmatpush1.msra.mxu0 0.0
    %1250 = vmatprep.subr.mxu0 0.0
    %1251 = vmatpush1.msra.mxu0 0.0
    %1252 = vmatprep.subr.mxu0 0.0
    %1253 = vmatpush1.msra.mxu0 0.0
    %1254 = vmatprep.subr.mxu0 0.0
    %1255 = vmatpush1.msra.mxu0 0.0
    %1256 = vmatprep.subr.mxu0 0.0
    %1257 = vmatpush1.msra.mxu0 0.0
    %1258 = vmatprep.subr.mxu0 0.0
    %1259 = vmatpush1.msra.mxu0 0.0
    %1260 = vmatprep.subr.mxu0 0.0
    %1261 = vmatpush1.msra.mxu0 0.0
    %1262 = vmatprep.subr.mxu0 0.0
    %1263 = vmatpush1.msra.mxu0 0.0
    %1264 = vmatprep.subr.mxu0 0.0
    %1265 = vmatpush1.msra.mxu0 0.0
    %1266 = vmatprep.subr.mxu0 0.0
    %1267 = vmatpush1.msra.mxu0 0.0
    %1268 = vmatprep.subr.mxu0 0.0
    %1269 = vmatpush1.msra.mxu0 0.0
    %1270 = vmatprep.subr.mxu0 0.0
    %1271 = vmatpush1.msra.mxu0 0.0
    %1272 = vmatprep.mubr.f32.mxu0 0.0
    %1273 = vmatmul.mubr.f32.gmra.mrb[0].mxu0 %v1206
    %v1274 = vpop.f32.mrb[0].mxu0
    %v1275 = vadd.f32 0.0, %v1274
    %v1276 = vpop.f32.mrb[0].mxu0
    %1277 = vdwg.mxu0
    %v1279 = vsel %vm839, %v837, 0
    %1281 = vmatprep.subr.mxu0 0.0
    %1282 = vmatpush1.msra.mxu0 %v75
    %1283 = vmatprep.subr.mxu0 0.0
    %1284 = vmatpush1.msra.mxu0 0.0
    %1285 = vmatprep.subr.mxu0 0.0
    %1286 = vmatpush1.msra.mxu0 0.0
    %1287 = vmatprep.subr.mxu0 0.0
    %1288 = vmatpush1.msra.mxu0 0.0
    %1289 = vmatprep.subr.mxu0 0.0
    %1290 = vmatpush1.msra.mxu0 0.0
    %1291 = vmatprep.subr.mxu0 0.0
    %1292 = vmatpush1.msra.mxu0 0.0
    %1293 = vmatprep.subr.mxu0 0.0
    %1294 = vmatpush1.msra.mxu0 0.0
    %1295 = vmatprep.subr.mxu0 0.0
    %1296 = vmatpush1.msra.mxu0 0.0
    %1297 = vmatprep.subr.mxu0 0.0
    %1298 = vmatpush1.msra.mxu0 0.0
    %1299 = vmatprep.subr.mxu0 0.0
    %1300 = vmatpush1.msra.mxu0 0.0
    %1301 = vmatprep.subr.mxu0 0.0
    %1302 = vmatpush1.msra.mxu0 0.0
    %1303 = vmatprep.subr.mxu0 0.0
    %1304 = vmatpush1.msra.mxu0 0.0
    %1305 = vmatprep.subr.mxu0 0.0
    %1306 = vmatpush1.msra.mxu0 0.0
    %1307 = vmatprep.subr.mxu0 0.0
    %1308 = vmatpush1.msra.mxu0 0.0
    %1309 = vmatprep.subr.mxu0 0.0
    %1310 = vmatpush1.msra.mxu0 0.0
    %1311 = vmatprep.subr.mxu0 0.0
    %1312 = vmatpush1.msra.mxu0 0.0
    %1313 = vmatprep.subr.mxu0 0.0
    %1314 = vmatpush1.msra.mxu0 0.0
    %1315 = vmatprep.subr.mxu0 0.0
    %1316 = vmatpush1.msra.mxu0 0.0
    %1317 = vmatprep.subr.mxu0 0.0
    %1318 = vmatpush1.msra.mxu0 0.0
    %1319 = vmatprep.subr.mxu0 0.0
    %1320 = vmatpush1.msra.mxu0 0.0
    %1321 = vmatprep.subr.mxu0 0.0
    %1322 = vmatpush1.msra.mxu0 0.0
    %1323 = vmatprep.subr.mxu0 0.0
    %1324 = vmatpush1.msra.mxu0 0.0
    %1325 = vmatprep.subr.mxu0 0.0
    %1326 = vmatpush1.msra.mxu0 0.0
    %1327 = vmatprep.subr.mxu0 0.0
    %1328 = vmatpush1.msra.mxu0 0.0
    %1329 = vmatprep.subr.mxu0 0.0
    %1330 = vmatpush1.msra.mxu0 0.0
    %1331 = vmatprep.subr.mxu0 0.0
    %1332 = vmatpush1.msra.mxu0 0.0
    %1333 = vmatprep.subr.mxu0 0.0
    %1334 = vmatpush1.msra.mxu0 0.0
    %1335 = vmatprep.subr.mxu0 0.0
    %1336 = vmatpush1.msra.mxu0 0.0
    %1337 = vmatprep.subr.mxu0 0.0
    %1338 = vmatpush1.msra.mxu0 0.0
    %1339 = vmatprep.subr.mxu0 0.0
    %1340 = vmatpush1.msra.mxu0 0.0
    %1341 = vmatprep.subr.mxu0 0.0
    %1342 = vmatpush1.msra.mxu0 0.0
    %1343 = vmatprep.subr.mxu0 0.0
    %1344 = vmatpush1.msra.mxu0 0.0
    %1345 = vmatprep.mubr.f32.mxu0 0.0
    %1346 = vmatmul.mubr.f32.gmra.mrb[0].mxu0 %v1279
    %v1347 = vpop.f32.mrb[0].mxu0
    %v1348 = vadd.f32 0.0, %v1347
    %v1349 = vpop.f32.mrb[0].mxu0
    %1350 = vdwg.mxu0
    %v1352 = vsel %vm839, %v838, 0
    %1354 = vmatprep.subr.mxu0 0.0
    %1355 = vmatpush1.msra.mxu0 %v76
    %1356 = vmatprep.subr.mxu0 0.0
    %1357 = vmatpush1.msra.mxu0 0.0
    %1358 = vmatprep.subr.mxu0 0.0
    %1359 = vmatpush1.msra.mxu0 0.0
    %1360 = vmatprep.subr.mxu0 0.0
    %1361 = vmatpush1.msra.mxu0 0.0
    %1362 = vmatprep.subr.mxu0 0.0
    %1363 = vmatpush1.msra.mxu0 0.0
    %1364 = vmatprep.subr.mxu0 0.0
    %1365 = vmatpush1.msra.mxu0 0.0
    %1366 = vmatprep.subr.mxu0 0.0
    %1367 = vmatpush1.msra.mxu0 0.0
    %1368 = vmatprep.subr.mxu0 0.0
    %1369 = vmatpush1.msra.mxu0 0.0
    %1370 = vmatprep.subr.mxu0 0.0
    %1371 = vmatpush1.msra.mxu0 0.0
    %1372 = vmatprep.subr.mxu0 0.0
    %1373 = vmatpush1.msra.mxu0 0.0
    %1374 = vmatprep.subr.mxu0 0.0
    %1375 = vmatpush1.msra.mxu0 0.0
    %1376 = vmatprep.subr.mxu0 0.0
    %1377 = vmatpush1.msra.mxu0 0.0
    %1378 = vmatprep.subr.mxu0 0.0
    %1379 = vmatpush1.msra.mxu0 0.0
    %1380 = vmatprep.subr.mxu0 0.0
    %1381 = vmatpush1.msra.mxu0 0.0
    %1382 = vmatprep.subr.mxu0 0.0
    %1383 = vmatpush1.msra.mxu0 0.0
    %1384 = vmatprep.subr.mxu0 0.0
    %1385 = vmatpush1.msra.mxu0 0.0
    %1386 = vmatprep.subr.mxu0 0.0
    %1387 = vmatpush1.msra.mxu0 0.0
    %1388 = vmatprep.subr.mxu0 0.0
    %1389 = vmatpush1.msra.mxu0 0.0
    %1390 = vmatprep.subr.mxu0 0.0
    %1391 = vmatpush1.msra.mxu0 0.0
    %1392 = vmatprep.subr.mxu0 0.0
    %1393 = vmatpush1.msra.mxu0 0.0
    %1394 = vmatprep.subr.mxu0 0.0
    %1395 = vmatpush1.msra.mxu0 0.0
    %1396 = vmatprep.subr.mxu0 0.0
    %1397 = vmatpush1.msra.mxu0 0.0
    %1398 = vmatprep.subr.mxu0 0.0
    %1399 = vmatpush1.msra.mxu0 0.0
    %1400 = vmatprep.subr.mxu0 0.0
    %1401 = vmatpush1.msra.mxu0 0.0
    %1402 = vmatprep.subr.mxu0 0.0
    %1403 = vmatpush1.msra.mxu0 0.0
    %1404 = vmatprep.subr.mxu0 0.0
    %1405 = vmatpush1.msra.mxu0 0.0
    %1406 = vmatprep.subr.mxu0 0.0
    %1407 = vmatpush1.msra.mxu0 0.0
    %1408 = vmatprep.subr.mxu0 0.0
    %1409 = vmatpush1.msra.mxu0 0.0
    %1410 = vmatprep.subr.mxu0 0.0
    %1411 = vmatpush1.msra.mxu0 0.0
    %1412 = vmatprep.subr.mxu0 0.0
    %1413 = vmatpush1.msra.mxu0 0.0
    %1414 = vmatprep.subr.mxu0 0.0
    %1415 = vmatpush1.msra.mxu0 0.0
    %1416 = vmatprep.subr.mxu0 0.0
    %1417 = vmatpush1.msra.mxu0 0.0
    %1418 = vmatprep.mubr.f32.mxu0 0.0
    %1419 = vmatmul.mubr.f32.gmra.mrb[0].mxu0 %v1352
    %v1420 = vpop.f32.mrb[0].mxu0
    %v1421 = vadd.f32 0.0, %v1420
    %v1422 = vpop.f32.mrb[0].mxu0
    %1423 = vdwg.mxu0
    %v1424 = vld [vmem:[%s7] sm:$0x1]
    %v1426 = vlaneseq
    %v1427 = vshrl.u32 %v1426, 7
    %v1428 = vsub.s32 0, %v1427
    %v1429 = vrot.slane %v1424, %v1428
    %v1431 = vld [vmem:[#allocation7] sm:$0xff]
    %v1432 = vld [vmem:[#allocation7 + $0x8] sm:$0xff]
    %v1433 = vld [vmem:[#allocation7 + $0x10] sm:$0xff]
    %v1434 = vld [vmem:[#allocation7 + $0x18] sm:$0xff]
    %v1443 = vrot.slane %v983, 7
    %vm1444 = vcmask 1041409
    %v1445 = vsel %vm1444, %v1443, %v910
    %v1446 = vrot.slane %v1056, 6
    %vm1447 = vcmask 1042434
    %v1448 = vsel %vm1447, %v1446, %v1445
    %v1449 = vrot.slane %v1129, 5
    %vm1450 = vcmask 1043459
    %v1451 = vsel %vm1450, %v1449, %v1448
    %v1452 = vrot.slane %v1202, 4
    %vm1453 = vcmask 1044484
    %v1454 = vsel %vm1453, %v1452, %v1451
    %v1455 = vrot.slane %v1275, 3
    %vm1456 = vcmask 1045509
    %v1457 = vsel %vm1456, %v1455, %v1454
    %v1458 = vrot.slane %v1348, 2
    %vm1459 = vcmask 1046534
    %v1460 = vsel %vm1459, %v1458, %v1457
    %v1461 = vrot.slane %v1421, 1
    %vm1462 = vcmask 1047559
    %v1463 = vsel %vm1462, %v1461, %v1460
    %v1464 = vsel %vm88, %v1463, 0
    %1466 = vmatprep.subr.mxu0 0.0
    %1467 = vmatpush1.msra.mxu0 %v1431
    %1468 = vmatprep.subr.mxu0 0.0
    %1469 = vmatpush1.msra.mxu0 %v1432
    %1470 = vmatprep.subr.mxu0 0.0
    %1471 = vmatpush1.msra.mxu0 %v1433
    %1472 = vmatprep.subr.mxu0 0.0
    %1473 = vmatpush1.msra.mxu0 %v1434
    %1474 = vmatprep.subr.mxu0 0.0
    %1475 = vmatpush1.msra.mxu0 0.0
    %1476 = vmatprep.subr.mxu0 0.0
    %1477 = vmatpush1.msra.mxu0 0.0
    %1478 = vmatprep.subr.mxu0 0.0
    %1479 = vmatpush1.msra.mxu0 0.0
    %1480 = vmatprep.subr.mxu0 0.0
    %1481 = vmatpush1.msra.mxu0 0.0
    %1482 = vmatprep.subr.mxu0 0.0
    %1483 = vmatpush1.msra.mxu0 0.0
    %1484 = vmatprep.subr.mxu0 0.0
    %1485 = vmatpush1.msra.mxu0 0.0
    %1486 = vmatprep.subr.mxu0 0.0
    %1487 = vmatpush1.msra.mxu0 0.0
    %1488 = vmatprep.subr.mxu0 0.0
    %1489 = vmatpush1.msra.mxu0 0.0
    %1490 = vmatprep.subr.mxu0 0.0
    %1491 = vmatpush1.msra.mxu0 0.0
    %1492 = vmatprep.subr.mxu0 0.0
    %1493 = vmatpush1.msra.mxu0 0.0
    %1494 = vmatprep.subr.mxu0 0.0
    %1495 = vmatpush1.msra.mxu0 0.0
    %1496 = vmatprep.subr.mxu0 0.0
    %1497 = vmatpush1.msra.mxu0 0.0
    %1498 = vmatprep.subr.mxu0 0.0
    %1499 = vmatpush1.msra.mxu0 0.0
    %1500 = vmatprep.subr.mxu0 0.0
    %1501 = vmatpush1.msra.mxu0 0.0
    %1502 = vmatprep.subr.mxu0 0.0
    %1503 = vmatpush1.msra.mxu0 0.0
    %1504 = vmatprep.subr.mxu0 0.0
    %1505 = vmatpush1.msra.mxu0 0.0
    %1506 = vmatprep.subr.mxu0 0.0
    %1507 = vmatpush1.msra.mxu0 0.0
    %1508 = vmatprep.subr.mxu0 0.0
    %1509 = vmatpush1.msra.mxu0 0.0
    %1510 = vmatprep.subr.mxu0 0.0
    %1511 = vmatpush1.msra.mxu0 0.0
    %1512 = vmatprep.subr.mxu0 0.0
    %1513 = vmatpush1.msra.mxu0 0.0
    %1514 = vmatprep.subr.mxu0 0.0
    %1515 = vmatpush1.msra.mxu0 0.0
    %1516 = vmatprep.subr.mxu0 0.0
    %1517 = vmatpush1.msra.mxu0 0.0
    %1518 = vmatprep.subr.mxu0 0.0
    %1519 = vmatpush1.msra.mxu0 0.0
    %1520 = vmatprep.subr.mxu0 0.0
    %1521 = vmatpush1.msra.mxu0 0.0
    %1522 = vmatprep.subr.mxu0 0.0
    %1523 = vmatpush1.msra.mxu0 0.0
    %1524 = vmatprep.subr.mxu0 0.0
    %1525 = vmatpush1.msra.mxu0 0.0
    %1526 = vmatprep.subr.mxu0 0.0
    %1527 = vmatpush1.msra.mxu0 0.0
    %1528 = vmatprep.subr.mxu0 0.0
    %1529 = vmatpush1.msra.mxu0 0.0
    %1530 = vmatprep.mubr.f32.mxu0 0.0
    %1531 = vmatmul.mubr.f32.gmra.mrb[0].mxu0 %v1464
    %v1532 = vpop.f32.mrb[0].mxu0
    %v1533 = vadd.f32 0.0, %v1532
    %v1534 = vpop.f32.mrb[0].mxu0
    %1535 = vdwg.mxu0
    %v1536 = vadd.f32 %v1429, %v1533
    %s1537 = scalar_lea.vmem [#allocation7], 32
    %v1538 = vld [vmem:[%s1537] sm:$0xff]
    %v1539 = vld [vmem:[%s1537 + $0x8] sm:$0xff]
    %v1540 = vld [vmem:[%s1537 + $0x10] sm:$0xff]
    %v1541 = vld [vmem:[%s1537 + $0x18] sm:$0xff]
    %v1542 = vrot.slane %v910, 1
    %v1543 = vsel %vm1444, %v983, %v1542
    %v1544 = vrot.slane %v1056, 7
    %v1545 = vsel %vm1447, %v1544, %v1543
    %v1546 = vrot.slane %v1129, 6
    %v1547 = vsel %vm1450, %v1546, %v1545
    %v1548 = vrot.slane %v1202, 5
    %v1549 = vsel %vm1453, %v1548, %v1547
    %v1550 = vrot.slane %v1275, 4
    %v1551 = vsel %vm1456, %v1550, %v1549
    %v1552 = vrot.slane %v1348, 3
    %v1553 = vsel %vm1459, %v1552, %v1551
    %v1554 = vrot.slane %v1421, 2
    %v1555 = vsel %vm1462, %v1554, %v1553
    %v1556 = vsel %vm88, %v1555, 0
    %1558 = vmatprep.subr.mxu0 0.0
    %1559 = vmatpush1.msra.mxu0 %v1538
    %1560 = vmatprep.subr.mxu0 0.0
    %1561 = vmatpush1.msra.mxu0 %v1539
    %1562 = vmatprep.subr.mxu0 0.0
    %1563 = vmatpush1.msra.mxu0 %v1540
    %1564 = vmatprep.subr.mxu0 0.0
    %1565 = vmatpush1.msra.mxu0 %v1541
    %1566 = vmatprep.subr.mxu0 0.0
    %1567 = vmatpush1.msra.mxu0 0.0
    %1568 = vmatprep.subr.mxu0 0.0
    %1569 = vmatpush1.msra.mxu0 0.0
    %1570 = vmatprep.subr.mxu0 0.0
    %1571 = vmatpush1.msra.mxu0 0.0
    %1572 = vmatprep.subr.mxu0 0.0
    %1573 = vmatpush1.msra.mxu0 0.0
    %1574 = vmatprep.subr.mxu0 0.0
    %1575 = vmatpush1.msra.mxu0 0.0
    %1576 = vmatprep.subr.mxu0 0.0
    %1577 = vmatpush1.msra.mxu0 0.0
    %1578 = vmatprep.subr.mxu0 0.0
    %1579 = vmatpush1.msra.mxu0 0.0
    %1580 = vmatprep.subr.mxu0 0.0
    %1581 = vmatpush1.msra.mxu0 0.0
    %1582 = vmatprep.subr.mxu0 0.0
    %1583 = vmatpush1.msra.mxu0 0.0
    %1584 = vmatprep.subr.mxu0 0.0
    %1585 = vmatpush1.msra.mxu0 0.0
    %1586 = vmatprep.subr.mxu0 0.0
    %1587 = vmatpush1.msra.mxu0 0.0
    %1588 = vmatprep.subr.mxu0 0.0
    %1589 = vmatpush1.msra.mxu0 0.0
    %1590 = vmatprep.subr.mxu0 0.0
    %1591 = vmatpush1.msra.mxu0 0.0
    %1592 = vmatprep.subr.mxu0 0.0
    %1593 = vmatpush1.msra.mxu0 0.0
    %1594 = vmatprep.subr.mxu0 0.0
    %1595 = vmatpush1.msra.mxu0 0.0
    %1596 = vmatprep.subr.mxu0 0.0
    %1597 = vmatpush1.msra.mxu0 0.0
    %1598 = vmatprep.subr.mxu0 0.0
    %1599 = vmatpush1.msra.mxu0 0.0
    %1600 = vmatprep.subr.mxu0 0.0
    %1601 = vmatpush1.msra.mxu0 0.0
    %1602 = vmatprep.subr.mxu0 0.0
    %1603 = vmatpush1.msra.mxu0 0.0
    %1604 = vmatprep.subr.mxu0 0.0
    %1605 = vmatpush1.msra.mxu0 0.0
    %1606 = vmatprep.subr.mxu0 0.0
    %1607 = vmatpush1.msra.mxu0 0.0
    %1608 = vmatprep.subr.mxu0 0.0
    %1609 = vmatpush1.msra.mxu0 0.0
    %1610 = vmatprep.subr.mxu0 0.0
    %1611 = vmatpush1.msra.mxu0 0.0
    %1612 = vmatprep.subr.mxu0 0.0
    %1613 = vmatpush1.msra.mxu0 0.0
    %1614 = vmatprep.subr.mxu0 0.0
    %1615 = vmatpush1.msra.mxu0 0.0
    %1616 = vmatprep.subr.mxu0 0.0
    %1617 = vmatpush1.msra.mxu0 0.0
    %1618 = vmatprep.subr.mxu0 0.0
    %1619 = vmatpush1.msra.mxu0 0.0
    %1620 = vmatprep.subr.mxu0 0.0
    %1621 = vmatpush1.msra.mxu0 0.0
    %1622 = vmatprep.mubr.f32.mxu0 0.0
    %1623 = vmatmul.mubr.f32.gmra.mrb[0].mxu0 %v1556
    %v1624 = vpop.f32.mrb[0].mxu0
    %v1625 = vadd.f32 0.0, %v1624
    %v1626 = vpop.f32.mrb[0].mxu0
    %1627 = vdwg.mxu0
    %v1628 = vadd.f32 %v1536, %v1625
    %1629 = vst [vmem:[#allocation8] sm:$0xff] %v1628
    // Predicated region
    $region46: #{tpu_custom_call.1} parent=1 // pred_check
      _
    $region47: #{tpu_custom_call.1} parent=1 // pred_check_branch
      %1631 = sbr.rel (0) target = $region49
    $region48: #{tpu_custom_call.1} parent=1 // pred_region
      %s1633 = ssub.s32 128, 128
      %1634 = vsyncadd [#allocation4], %s1633
      %s1636 = sshll.u32 [#allocation8], 4
      %s1637 = int_to_ptr.vmem [resolvable:$true] %s1636
      %1639 = dma.vmem_to_hbm [thread:$0]  %s1637, 128, %s8, [#allocation4]
    $region49: #{tpu_custom_call.1} parent=1 // pred_fallthru
      _
    // Predicated region
    $region50: #{tpu_custom_call.1} parent=1 // pred_check
      _
    $region51: #{tpu_custom_call.1} parent=1 // pred_check_branch
      %1641 = sbr.rel (0) target = $region53
    $region52: #{tpu_custom_call.1} parent=1 // pred_region
      %1642 = dma.done [#allocation4], 128
    $region53: #{tpu_custom_call.1} parent=1 // pred_fallthru
      _
    %1643 = vsyncpa [#allocation3], 1
    %1644 = vsyncpa [#allocation6], 1
    %1645 = vsyncpa [#allocation4], 1

// kernel: tpu_custom_call.1
$region0: #{tpu_custom_call.1}
  #allocation0 [shape = 'u32[]', space=smem, size = 0x4, offset = 0x4, fixed_abs, tag = 'smem constant byte address 0x4 - core index']
  #allocation1 [shape = 'u32[144,128]{1,0:T(1,128)}', space=vmem, size = 0x12000, scoped, tag = 'internal scratch']
  %s0 = inlined_call_operand.vmem [shape: f32[8,8,32], index: 0, kind: input, shape index: {}]
  %s1 = inlined_call_operand.hbm [shape: f32[8,8], index: 1, kind: input, shape index: {}]
  %s2 = inlined_call_operand.hbm [shape: f32[32,64], index: 2, kind: input, shape index: {}]
  %s3 = inlined_call_operand.vmem [shape: f32[1,64], index: 3, kind: input, shape index: {}]
  %s4 = inlined_call_operand.vmem [shape: f32[64,2], index: 4, kind: input, shape index: {}]
  %s5 = inlined_call_operand.vmem [shape: f32[1,2], index: 5, kind: input, shape index: {}]
  %s6 = inlined_call_operand.hbm [shape: f32[2,32,128], index: 6, kind: input, shape index: {}]
  %s7 = inlined_call_operand.vmem [shape: f32[1,128], index: 7, kind: input, shape index: {}]
  %s8 = inlined_call_operand.hbm [shape: f32[8,128], index: 8, kind: output, shape index: {}]
  %s9 = sld [smem:[#allocation0]]
  $region54: #{tpu_custom_call.1} parent=0
    _
  %s11 = ssub.s32 1, %s9
  %s12 = scalar_select 0, %s11, %s9
  $region1: #{tpu_custom_call.1} parent=0
    #allocation2 [shape = 'u8[4096]{0}', space=vmem, size = 0x1000, scoped, tag = 'input window, operand 1, single buffered']
    #allocation3 [shape = 's32[1]{0}', space=sflag, size = 0x4, scoped, tag = 'scoped memory for tpu_custom_call.1']
    #allocation4 [shape = 's32[1]{0}', space=sflag, size = 0x4, scoped, tag = 'scoped memory for tpu_custom_call.1']
    #allocation5 [shape = 'u8[16384]{0}', space=vmem, size = 0x4000, scoped, tag = 'input window, operand 2, single buffered']
    #allocation6 [shape = 's32[1]{0}', space=sflag, size = 0x4, scoped, tag = 'scoped memory for tpu_custom_call.1']
    #allocation7 [shape = 'u8[32768]{0}', space=vmem, size = 0x8000, scoped, tag = 'input window, operand 6, single buffered']
    #allocation8 [shape = 'u8[4096]{0}', space=vmem, size = 0x1000, scoped, tag = 'output window, operand 0, single buffered']
    %13 = vsyncpa [#allocation3], 0
    %14 = vsyncpa [#allocation6], 0
    %15 = vsyncpa [#allocation4], 0
    // Predicated region
    $region2: #{tpu_custom_call.1} parent=1 // pred_check
      _
    $region3: #{tpu_custom_call.1} parent=1 // pred_check_branch
      %17 = sbr.rel (0) target = $region5
    $region4: #{tpu_custom_call.1} parent=1 // pred_region
      _
    $region5: #{tpu_custom_call.1} parent=1 // pred_fallthru
      _
    // Predicated region
    $region6: #{tpu_custom_call.1} parent=1 // pred_check
      _
    $region7: #{tpu_custom_call.1} parent=1 // pred_check_branch
      %19 = sbr.rel (0) target = $region9
    $region8: #{tpu_custom_call.1} parent=1 // pred_region
      %s21 = ssub.s32 128, 128
      %22 = vsyncadd [#allocation3], %s21
      %s24 = sshll.u32 [#allocation2], 4
      %s25 = int_to_ptr.vmem [resolvable:$true] %s24
      %27 = dma.hbm_to_vmem [thread:$0]  %s1, 128, %s25, [#allocation3]
    $region9: #{tpu_custom_call.1} parent=1 // pred_fallthru
      _
    // Predicated region
    $region10: #{tpu_custom_call.1} parent=1 // pred_check
      _
    $region11: #{tpu_custom_call.1} parent=1 // pred_check_branch
      %29 = sbr.rel (0) target = $region13
    $region12: #{tpu_custom_call.1} parent=1 // pred_region
      %s31 = ssub.s32 512, 512
      %32 = vsyncadd [#allocation6], %s31
      %s33 = sshll.u32 [#allocation5], 4
      %s34 = int_to_ptr.vmem [resolvable:$true] %s33
      %39 = dma.hbm_to_vmem [thread:$0]  %s2, 512, %s34, [#allocation6], 128, 128, 8
    $region13: #{tpu_custom_call.1} parent=1 // pred_fallthru
      _
    // Predicated region
    $region14: #{tpu_custom_call.1} parent=1 // pred_check
      _
    $region15: #{tpu_custom_call.1} parent=1 // pred_check_branch
      %41 = sbr.rel (0) target = $region17
    $region16: #{tpu_custom_call.1} parent=1 // pred_region
      _
    $region17: #{tpu_custom_call.1} parent=1 // pred_fallthru
      _
    // Predicated region
    $region18: #{tpu_custom_call.1} parent=1 // pred_check
      _
    $region19: #{tpu_custom_call.1} parent=1 // pred_check_branch
      %43 = sbr.rel (0) target = $region21
    $region20: #{tpu_custom_call.1} parent=1 // pred_region
      _
    $region21: #{tpu_custom_call.1} parent=1 // pred_fallthru
      _
    // Predicated region
    $region22: #{tpu_custom_call.1} parent=1 // pred_check
      _
    $region23: #{tpu_custom_call.1} parent=1 // pred_check_branch
      %45 = sbr.rel (0) target = $region25
    $region24: #{tpu_custom_call.1} parent=1 // pred_region
      _
    $region25: #{tpu_custom_call.1} parent=1 // pred_fallthru
      _
    // Predicated region
    $region26: #{tpu_custom_call.1} parent=1 // pred_check
      _
    $region27: #{tpu_custom_call.1} parent=1 // pred_check_branch
      %47 = sbr.rel (0) target = $region29
    $region28: #{tpu_custom_call.1} parent=1 // pred_region
      %s49 = ssub.s32 1024, 1024
      %50 = vsyncadd [#allocation6], %s49
      %s51 = sshll.u32 [#allocation7], 4
      %s52 = int_to_ptr.vmem [resolvable:$true] %s51
      %57 = dma.hbm_to_vmem [thread:$0]  %s6, 1024, %s52, [#allocation6], 128, 128, 8
    $region29: #{tpu_custom_call.1} parent=1 // pred_fallthru
      _
    // Predicated region
    $region30: #{tpu_custom_call.1} parent=1 // pred_check
      _
    $region31: #{tpu_custom_call.1} parent=1 // pred_check_branch
      %59 = sbr.rel (0) target = $region33
    $region32: #{tpu_custom_call.1} parent=1 // pred_region
      _
    $region33: #{tpu_custom_call.1} parent=1 // pred_fallthru
      _
    // Predicated region
    $region34: #{tpu_custom_call.1} parent=1 // pred_check
      _
    $region35: #{tpu_custom_call.1} parent=1 // pred_check_branch
      %61 = sbr.rel (0) target = $region37
    $region36: #{tpu_custom_call.1} parent=1 // pred_region
      %62 = dma.done [#allocation3], 128
    $region37: #{tpu_custom_call.1} parent=1 // pred_fallthru
      _
    // Predicated region
    $region38: #{tpu_custom_call.1} parent=1 // pred_check
      _
    $region39: #{tpu_custom_call.1} parent=1 // pred_check_branch
      %64 = sbr.rel (0) target = $region41
    $region40: #{tpu_custom_call.1} parent=1 // pred_region
      %65 = dma.done [#allocation6], 512
    $region41: #{tpu_custom_call.1} parent=1 // pred_fallthru
      _
    // Predicated region
    $region42: #{tpu_custom_call.1} parent=1 // pred_check
      _
    $region43: #{tpu_custom_call.1} parent=1 // pred_check_branch
      %67 = sbr.rel (0) target = $region45
    $region44: #{tpu_custom_call.1} parent=1 // pred_region
      %68 = dma.done [#allocation6], 1024
    $region45: #{tpu_custom_call.1} parent=1 // pred_fallthru
      _
    %v69 = vld [vmem:[%s0] sm:$0xff]
    %v70 = vld [vmem:[%s0 + $0x8] sm:$0xff]
    %v71 = vld [vmem:[%s0 + $0x10] sm:$0xff]
    %v72 = vld [vmem:[%s0 + $0x18] sm:$0xff]
    %v73 = vld [vmem:[%s0 + $0x20] sm:$0xff]
    %v74 = vld [vmem:[%s0 + $0x28] sm:$0xff]
    %v75 = vld [vmem:[%s0 + $0x30] sm:$0xff]
    %v76 = vld [vmem:[%s0 + $0x38] sm:$0xff]
    %v77 = vld [vmem:[#allocation5] sm:$0xff]
    %v78 = vld [vmem:[#allocation5 + $0x8] sm:$0xff]
    %v79 = vld [vmem:[#allocation5 + $0x10] sm:$0xff]
    %v80 = vld [vmem:[#allocation5 + $0x18] sm:$0xff]
    %v81 = vld [vmem:[%s3] sm:$0x1]
    %v83 = vlaneseq
    %v84 = vshrl.u32 %v83, 7
    %v85 = vsub.s32 0, %v84
    %v86 = vrot.slane %v81, %v85
    %vm88 = vcmask 261120
    %v90 = vsel %vm88, %v69, 0
    %v93 = vsel %vm88, %v70, 0
    %v96 = vsel %vm88, %v71, 0
    %v99 = vsel %vm88, %v72, 0
    %v102 = vsel %vm88, %v73, 0
    %v105 = vsel %vm88, %v74, 0
    %v108 = vsel %vm88, %v75, 0
    %v111 = vsel %vm88, %v76, 0
    %113 = vmatprep.subr.mxu0 0.0
    %114 = vmatpush1.msra.mxu0 %v77
    %115 = vmatprep.subr.mxu0 0.0
    %116 = vmatpush1.msra.mxu0 %v78
    %117 = vmatprep.subr.mxu0 0.0
    %118 = vmatpush1.msra.mxu0 %v79
    %119 = vmatprep.subr.mxu0 0.0
    %120 = vmatpush1.msra.mxu0 %v80
    %121 = vmatprep.subr.mxu0 0.0
    %122 = vmatpush1.msra.mxu0 0.0
    %123 = vmatprep.subr.mxu0 0.0
    %124 = vmatpush1.msra.mxu0 0.0
    %125 = vmatprep.subr.mxu0 0.0
    %126 = vmatpush1.msra.mxu0 0.0
    %127 = vmatprep.subr.mxu0 0.0
    %128 = vmatpush1.msra.mxu0 0.0
    %129 = vmatprep.subr.mxu0 0.0
    %130 = vmatpush1.msra.mxu0 0.0
    %131 = vmatprep.subr.mxu0 0.0
    %132 = vmatpush1.msra.mxu0 0.0
    %133 = vmatprep.subr.mxu0 0.0
    %134 = vmatpush1.msra.mxu0 0.0
    %135 = vmatprep.subr.mxu0 0.0
    %136 = vmatpush1.msra.mxu0 0.0
    %137 = vmatprep.subr.mxu0 0.0
    %138 = vmatpush1.msra.mxu0 0.0
    %139 = vmatprep.subr.mxu0 0.0
    %140 = vmatpush1.msra.mxu0 0.0
    %141 = vmatprep.subr.mxu0 0.0
    %142 = vmatpush1.msra.mxu0 0.0
    %143 = vmatprep.subr.mxu0 0.0
    %144 = vmatpush1.msra.mxu0 0.0
    %145 = vmatprep.subr.mxu0 0.0
    %146 = vmatpush1.msra.mxu0 0.0
    %147 = vmatprep.subr.mxu0 0.0
    %148 = vmatpush1.msra.mxu0 0.0
    %149 = vmatprep.subr.mxu0 0.0
    %150 = vmatpush1.msra.mxu0 0.0
    %151 = vmatprep.subr.mxu0 0.0
    %152 = vmatpush1.msra.mxu0 0.0
    %153 = vmatprep.subr.mxu0 0.0
    %154 = vmatpush1.msra.mxu0 0.0
    %155 = vmatprep.subr.mxu0 0.0
    %156 = vmatpush1.msra.mxu0 0.0
    %157 = vmatprep.subr.mxu0 0.0
    %158 = vmatpush1.msra.mxu0 0.0
    %159 = vmatprep.subr.mxu0 0.0
    %160 = vmatpush1.msra.mxu0 0.0
    %161 = vmatprep.subr.mxu0 0.0
    %162 = vmatpush1.msra.mxu0 0.0
    %163 = vmatprep.subr.mxu0 0.0
    %164 = vmatpush1.msra.mxu0 0.0
    %165 = vmatprep.subr.mxu0 0.0
    %166 = vmatpush1.msra.mxu0 0.0
    %167 = vmatprep.subr.mxu0 0.0
    %168 = vmatpush1.msra.mxu0 0.0
    %169 = vmatprep.subr.mxu0 0.0
    %170 = vmatpush1.msra.mxu0 0.0
    %171 = vmatprep.subr.mxu0 0.0
    %172 = vmatpush1.msra.mxu0 0.0
    %173 = vmatprep.subr.mxu0 0.0
    %174 = vmatpush1.msra.mxu0 0.0
    %175 = vmatprep.subr.mxu0 0.0
    %176 = vmatpush1.msra.mxu0 0.0
    %177 = vmatprep.mubr.f32.mxu0 0.0
    %178 = vmatmul.mubr.f32.gmra.mrb[0].mxu0 %v90
    %v179 = vpop.f32.mrb[0].mxu0
    %v180 = vadd.f32 %v86, %v179
    %v181 = vpop.f32.mrb[0].mxu0
    %182 = vmatprep.mubr.f32.mxu0 0.0
    %183 = vmatmul.mubr.f32.gmra.mrb[0].mxu0 %v93
    %v184 = vpop.f32.mrb[0].mxu0
    %v185 = vadd.f32 %v86, %v184
    %v186 = vpop.f32.mrb[0].mxu0
    %187 = vmatprep.mubr.f32.mxu0 0.0
    %188 = vmatmul.mubr.f32.gmra.mrb[0].mxu0 %v96
    %v189 = vpop.f32.mrb[0].mxu0
    %v190 = vadd.f32 %v86, %v189
    %v191 = vpop.f32.mrb[0].mxu0
    %192 = vmatprep.mubr.f32.mxu0 0.0
    %193 = vmatmul.mubr.f32.gmra.mrb[0].mxu0 %v99
    %v194 = vpop.f32.mrb[0].mxu0
    %v195 = vadd.f32 %v86, %v194
    %v196 = vpop.f32.mrb[0].mxu0
    %197 = vmatprep.mubr.f32.mxu0 0.0
    %198 = vmatmul.mubr.f32.gmra.mrb[0].mxu0 %v102
    %v199 = vpop.f32.mrb[0].mxu0
    %v200 = vadd.f32 %v86, %v199
    %v201 = vpop.f32.mrb[0].mxu0
    %202 = vmatprep.mubr.f32.mxu0 0.0
    %203 = vmatmul.mubr.f32.gmra.mrb[0].mxu0 %v105
    %v204 = vpop.f32.mrb[0].mxu0
    %v205 = vadd.f32 %v86, %v204
    %v206 = vpop.f32.mrb[0].mxu0
    %207 = vmatprep.mubr.f32.mxu0 0.0
    %208 = vmatmul.mubr.f32.gmra.mrb[0].mxu0 %v108
    %v209 = vpop.f32.mrb[0].mxu0
    %v210 = vadd.f32 %v86, %v209
    %v211 = vpop.f32.mrb[0].mxu0
    %212 = vmatprep.mubr.f32.mxu0 0.0
    %213 = vmatmul.mubr.f32.gmra.mrb[0].mxu0 %v111
    %v214 = vpop.f32.mrb[0].mxu0
    %v215 = vadd.f32 %v86, %v214
    %v216 = vpop.f32.mrb[0].mxu0
    %217 = vdwg.mxu0
    %v218 = vmax.f32 %v180, 0.0
    %v219 = vmax.f32 %v185, 0.0
    %v220 = vmax.f32 %v190, 0.0
    %v221 = vmax.f32 %v195, 0.0
    %v222 = vmax.f32 %v200, 0.0
    %v223 = vmax.f32 %v205, 0.0
    %v224 = vmax.f32 %v210, 0.0
    %v225 = vmax.f32 %v215, 0.0
    %v226 = vld [vmem:[%s4] sm:$0xff]
    %v227 = vld [vmem:[%s4 + $0x8] sm:$0xff]
    %v228 = vld [vmem:[%s4 + $0x10] sm:$0xff]
    %v229 = vld [vmem:[%s4 + $0x18] sm:$0xff]
    %v230 = vld [vmem:[%s4 + $0x20] sm:$0xff]
    %v231 = vld [vmem:[%s4 + $0x28] sm:$0xff]
    %v232 = vld [vmem:[%s4 + $0x30] sm:$0xff]
    %v233 = vld [vmem:[%s4 + $0x38] sm:$0xff]
    %v234 = vld [vmem:[%s5] sm:$0x1]
    %v236 = vlaneseq
    %v237 = vshrl.u32 %v236, 7
    %v238 = vsub.s32 0, %v237
    %v239 = vrot.slane %v234, %v238
    %vm241 = vcmask 523264
    %v243 = vsel %vm241, %v218, 0
    %v246 = vsel %vm241, %v219, 0
    %v249 = vsel %vm241, %v220, 0
    %v252 = vsel %vm241, %v221, 0
    %v255 = vsel %vm241, %v222, 0
    %v258 = vsel %vm241, %v223, 0
    %v261 = vsel %vm241, %v224, 0
    %v264 = vsel %vm241, %v225, 0
    %266 = vmatprep.subr.mxu0 0.0
    %267 = vmatpush1.msra.mxu0 %v226
    %268 = vmatprep.subr.mxu0 0.0
    %269 = vmatpush1.msra.mxu0 %v227
    %270 = vmatprep.subr.mxu0 0.0
    %271 = vmatpush1.msra.mxu0 %v228
    %272 = vmatprep.subr.mxu0 0.0
    %273 = vmatpush1.msra.mxu0 %v229
    %274 = vmatprep.subr.mxu0 0.0
    %275 = vmatpush1.msra.mxu0 %v230
    %276 = vmatprep.subr.mxu0 0.0
    %277 = vmatpush1.msra.mxu0 %v231
    %278 = vmatprep.subr.mxu0 0.0
    %279 = vmatpush1.msra.mxu0 %v232
    %280 = vmatprep.subr.mxu0 0.0
    %281 = vmatpush1.msra.mxu0 %v233
    %282 = vmatprep.subr.mxu0 0.0
    %283 = vmatpush1.msra.mxu0 0.0
    %284 = vmatprep.subr.mxu0 0.0
    %285 = vmatpush1.msra.mxu0 0.0
    %286 = vmatprep.subr.mxu0 0.0
    %287 = vmatpush1.msra.mxu0 0.0
    %288 = vmatprep.subr.mxu0 0.0
    %289 = vmatpush1.msra.mxu0 0.0
    %290 = vmatprep.subr.mxu0 0.0
    %291 = vmatpush1.msra.mxu0 0.0
    %292 = vmatprep.subr.mxu0 0.0
    %293 = vmatpush1.msra.mxu0 0.0
    %294 = vmatprep.subr.mxu0 0.0
    %295 = vmatpush1.msra.mxu0 0.0
    %296 = vmatprep.subr.mxu0 0.0
    %297 = vmatpush1.msra.mxu0 0.0
    %298 = vmatprep.subr.mxu0 0.0
    %299 = vmatpush1.msra.mxu0 0.0
    %300 = vmatprep.subr.mxu0 0.0
    %301 = vmatpush1.msra.mxu0 0.0
    %302 = vmatprep.subr.mxu0 0.0
    %303 = vmatpush1.msra.mxu0 0.0
    %304 = vmatprep.subr.mxu0 0.0
    %305 = vmatpush1.msra.mxu0 0.0
    %306 = vmatprep.subr.mxu0 0.0
    %307 = vmatpush1.msra.mxu0 0.0
    %308 = vmatprep.subr.mxu0 0.0
    %309 = vmatpush1.msra.mxu0 0.0
    %310 = vmatprep.subr.mxu0 0.0
    %311 = vmatpush1.msra.mxu0 0.0
    %312 = vmatprep.subr.mxu0 0.0
    %313 = vmatpush1.msra.mxu0 0.0
    %314 = vmatprep.subr.mxu0 0.0
    %315 = vmatpush1.msra.mxu0 0.0
    %316 = vmatprep.subr.mxu0 0.0
    %317 = vmatpush1.msra.mxu0 0.0
    %318 = vmatprep.subr.mxu0 0.0
    %319 = vmatpush1.msra.mxu0 0.0
    %320 = vmatprep.subr.mxu0 0.0
    %321 = vmatpush1.msra.mxu0 0.0
    %322 = vmatprep.subr.mxu0 0.0
    %323 = vmatpush1.msra.mxu0 0.0
    %324 = vmatprep.subr.mxu0 0.0
    %325 = vmatpush1.msra.mxu0 0.0
    %326 = vmatprep.subr.mxu0 0.0
    %327 = vmatpush1.msra.mxu0 0.0
    %328 = vmatprep.subr.mxu0 0.0
    %329 = vmatpush1.msra.mxu0 0.0
    %330 = vmatprep.mubr.f32.mxu0 0.0
    %331 = vmatmul.mubr.f32.gmra.mrb[0].mxu0 %v243
    %v332 = vpop.f32.mrb[0].mxu0
    %v333 = vadd.f32 %v239, %v332
    %v334 = vpop.f32.mrb[0].mxu0
    %335 = vmatprep.mubr.f32.mxu0 0.0
    %336 = vmatmul.mubr.f32.gmra.mrb[0].mxu0 %v246
    %v337 = vpop.f32.mrb[0].mxu0
    %v338 = vadd.f32 %v239, %v337
    %v339 = vpop.f32.mrb[0].mxu0
    %340 = vmatprep.mubr.f32.mxu0 0.0
    %341 = vmatmul.mubr.f32.gmra.mrb[0].mxu0 %v249
    %v342 = vpop.f32.mrb[0].mxu0
    %v343 = vadd.f32 %v239, %v342
    %v344 = vpop.f32.mrb[0].mxu0
    %345 = vmatprep.mubr.f32.mxu0 0.0
    %346 = vmatmul.mubr.f32.gmra.mrb[0].mxu0 %v252
    %v347 = vpop.f32.mrb[0].mxu0
    %v348 = vadd.f32 %v239, %v347
    %v349 = vpop.f32.mrb[0].mxu0
    %350 = vmatprep.mubr.f32.mxu0 0.0
    %351 = vmatmul.mubr.f32.gmra.mrb[0].mxu0 %v255
    %v352 = vpop.f32.mrb[0].mxu0
    %v353 = vadd.f32 %v239, %v352
    %v354 = vpop.f32.mrb[0].mxu0
    %355 = vmatprep.mubr.f32.mxu0 0.0
    %356 = vmatmul.mubr.f32.gmra.mrb[0].mxu0 %v258
    %v357 = vpop.f32.mrb[0].mxu0
    %v358 = vadd.f32 %v239, %v357
    %v359 = vpop.f32.mrb[0].mxu0
    %360 = vmatprep.mubr.f32.mxu0 0.0
    %361 = vmatmul.mubr.f32.gmra.mrb[0].mxu0 %v261
    %v362 = vpop.f32.mrb[0].mxu0
    %v363 = vadd.f32 %v239, %v362
    %v364 = vpop.f32.mrb[0].mxu0
    %365 = vmatprep.mubr.f32.mxu0 0.0
    %366 = vmatmul.mubr.f32.gmra.mrb[0].mxu0 %v264
    %v367 = vpop.f32.mrb[0].mxu0
    %v368 = vadd.f32 %v239, %v367
    %v369 = vpop.f32.mrb[0].mxu0
    %370 = vdwg.mxu0
    %371 = vxpose.xlu0.b32.start [1/16] %v333, 128
    %372 = vxpose.xlu0.b32.cont [2/16] 0.0, 128
    %373 = vxpose.xlu0.b32.cont [3/16] 0.0, 128
    %374 = vxpose.xlu0.b32.cont [4/16] 0.0, 128
    %375 = vxpose.xlu0.b32.cont [5/16] 0.0, 128
    %376 = vxpose.xlu0.b32.cont [6/16] 0.0, 128
    %377 = vxpose.xlu0.b32.cont [7/16] 0.0, 128
    %378 = vxpose.xlu0.b32.cont [8/16] 0.0, 128
    %379 = vxpose.xlu0.b32.cont [9/16] 0.0, 128
    %380 = vxpose.xlu0.b32.cont [10/16] 0.0, 128
    %381 = vxpose.xlu0.b32.cont [11/16] 0.0, 128
    %382 = vxpose.xlu0.b32.cont [12/16] 0.0, 128
    %383 = vxpose.xlu0.b32.cont [13/16] 0.0, 128
    %384 = vxpose.xlu0.b32.cont [14/16] 0.0, 128
    %385 = vxpose.xlu0.b32.cont [15/16] 0.0, 128
    %386 = vxpose.xlu0.b32.end [16/16] 0.0, 128
    %v387 = vpop.trf.xlu0
    %v388 = vpop.trf.xlu0
    %v389 = vpop.trf.xlu0
    %v390 = vpop.trf.xlu0
    %v391 = vpop.trf.xlu0
    %v392 = vpop.trf.xlu0
    %v393 = vpop.trf.xlu0
    %v394 = vpop.trf.xlu0
    %v395 = vpop.trf.xlu0
    %v396 = vpop.trf.xlu0
    %v397 = vpop.trf.xlu0
    %v398 = vpop.trf.xlu0
    %v399 = vpop.trf.xlu0
    %v400 = vpop.trf.xlu0
    %v401 = vpop.trf.xlu0
    %v402 = vpop.trf.xlu0
    %403 = vxpose.xlu0.b32.start [1/16] %v338, 128
    %404 = vxpose.xlu0.b32.cont [2/16] 0.0, 128
    %405 = vxpose.xlu0.b32.cont [3/16] 0.0, 128
    %406 = vxpose.xlu0.b32.cont [4/16] 0.0, 128
    %407 = vxpose.xlu0.b32.cont [5/16] 0.0, 128
    %408 = vxpose.xlu0.b32.cont [6/16] 0.0, 128
    %409 = vxpose.xlu0.b32.cont [7/16] 0.0, 128
    %410 = vxpose.xlu0.b32.cont [8/16] 0.0, 128
    %411 = vxpose.xlu0.b32.cont [9/16] 0.0, 128
    %412 = vxpose.xlu0.b32.cont [10/16] 0.0, 128
    %413 = vxpose.xlu0.b32.cont [11/16] 0.0, 128
    %414 = vxpose.xlu0.b32.cont [12/16] 0.0, 128
    %415 = vxpose.xlu0.b32.cont [13/16] 0.0, 128
    %416 = vxpose.xlu0.b32.cont [14/16] 0.0, 128
    %417 = vxpose.xlu0.b32.cont [15/16] 0.0, 128
    %418 = vxpose.xlu0.b32.end [16/16] 0.0, 128
    %v419 = vpop.trf.xlu0
    %v420 = vpop.trf.xlu0
    %v421 = vpop.trf.xlu0
    %v422 = vpop.trf.xlu0
    %v423 = vpop.trf.xlu0
    %v424 = vpop.trf.xlu0
    %v425 = vpop.trf.xlu0
    %v426 = vpop.trf.xlu0
    %v427 = vpop.trf.xlu0
    %v428 = vpop.trf.xlu0
    %v429 = vpop.trf.xlu0
    %v430 = vpop.trf.xlu0
    %v431 = vpop.trf.xlu0
    %v432 = vpop.trf.xlu0
    %v433 = vpop.trf.xlu0
    %v434 = vpop.trf.xlu0
    %435 = vxpose.xlu0.b32.start [1/16] %v343, 128
    %436 = vxpose.xlu0.b32.cont [2/16] 0.0, 128
    %437 = vxpose.xlu0.b32.cont [3/16] 0.0, 128
    %438 = vxpose.xlu0.b32.cont [4/16] 0.0, 128
    %439 = vxpose.xlu0.b32.cont [5/16] 0.0, 128
    %440 = vxpose.xlu0.b32.cont [6/16] 0.0, 128
    %441 = vxpose.xlu0.b32.cont [7/16] 0.0, 128
    %442 = vxpose.xlu0.b32.cont [8/16] 0.0, 128
    %443 = vxpose.xlu0.b32.cont [9/16] 0.0, 128
    %444 = vxpose.xlu0.b32.cont [10/16] 0.0, 128
    %445 = vxpose.xlu0.b32.cont [11/16] 0.0, 128
    %446 = vxpose.xlu0.b32.cont [12/16] 0.0, 128
    %447 = vxpose.xlu0.b32.cont [13/16] 0.0, 128
    %448 = vxpose.xlu0.b32.cont [14/16] 0.0, 128
    %449 = vxpose.xlu0.b32.cont [15/16] 0.0, 128
    %450 = vxpose.xlu0.b32.end [16/16] 0.0, 128
    %v451 = vpop.trf.xlu0
    %v452 = vpop.trf.xlu0
    %v453 = vpop.trf.xlu0
    %v454 = vpop.trf.xlu0
    %v455 = vpop.trf.xlu0
    %v456 = vpop.trf.xlu0
    %v457 = vpop.trf.xlu0
    %v458 = vpop.trf.xlu0
    %v459 = vpop.trf.xlu0
    %v460 = vpop.trf.xlu0
    %v461 = vpop.trf.xlu0
    %v462 = vpop.trf.xlu0
    %v463 = vpop.trf.xlu0
    %v464 = vpop.trf.xlu0
    %v465 = vpop.trf.xlu0
    %v466 = vpop.trf.xlu0
    %467 = vxpose.xlu0.b32.start [1/16] %v348, 128
    %468 = vxpose.xlu0.b32.cont [2/16] 0.0, 128
    %469 = vxpose.xlu0.b32.cont [3/16] 0.0, 128
    %470 = vxpose.xlu0.b32.cont [4/16] 0.0, 128
    %471 = vxpose.xlu0.b32.cont [5/16] 0.0, 128
    %472 = vxpose.xlu0.b32.cont [6/16] 0.0, 128
    %473 = vxpose.xlu0.b32.cont [7/16] 0.0, 128
    %474 = vxpose.xlu0.b32.cont [8/16] 0.0, 128
    %475 = vxpose.xlu0.b32.cont [9/16] 0.0, 128
    %476 = vxpose.xlu0.b32.cont [10/16] 0.0, 128
    %477 = vxpose.xlu0.b32.cont [11/16] 0.0, 128
    %478 = vxpose.xlu0.b32.cont [12/16] 0.0, 128
    %479 = vxpose.xlu0.b32.cont [13/16] 0.0, 128
    %480 = vxpose.xlu0.b32.cont [14/16] 0.0, 128
    %481 = vxpose.xlu0.b32.cont [15/16] 0.0, 128
    %482 = vxpose.xlu0.b32.end [16/16] 0.0, 128
    %v483 = vpop.trf.xlu0
    %v484 = vpop.trf.xlu0
    %v485 = vpop.trf.xlu0
    %v486 = vpop.trf.xlu0
    %v487 = vpop.trf.xlu0
    %v488 = vpop.trf.xlu0
    %v489 = vpop.trf.xlu0
    %v490 = vpop.trf.xlu0
    %v491 = vpop.trf.xlu0
    %v492 = vpop.trf.xlu0
    %v493 = vpop.trf.xlu0
    %v494 = vpop.trf.xlu0
    %v495 = vpop.trf.xlu0
    %v496 = vpop.trf.xlu0
    %v497 = vpop.trf.xlu0
    %v498 = vpop.trf.xlu0
    %499 = vxpose.xlu0.b32.start [1/16] %v353, 128
    %500 = vxpose.xlu0.b32.cont [2/16] 0.0, 128
    %501 = vxpose.xlu0.b32.cont [3/16] 0.0, 128
    %502 = vxpose.xlu0.b32.cont [4/16] 0.0, 128
    %503 = vxpose.xlu0.b32.cont [5/16] 0.0, 128
    %504 = vxpose.xlu0.b32.cont [6/16] 0.0, 128
    %505 = vxpose.xlu0.b32.cont [7/16] 0.0, 128
    %506 = vxpose.xlu0.b32.cont [8/16] 0.0, 128
    %507 = vxpose.xlu0.b32.cont [9/16] 0.0, 128
    %508 = vxpose.xlu0.b32.cont [10/16] 0.0, 128
    %509 = vxpose.xlu0.b32.cont [11/16] 0.0, 128
    %510 = vxpose.xlu0.b32.cont [12/16] 0.0, 128
    %511 = vxpose.xlu0.b32.cont [13/16] 0.0, 128
    %512 = vxpose.xlu0.b32.cont [14/16] 0.0, 128
    %513 = vxpose.xlu0.b32.cont [15/16] 0.0, 128
    %514 = vxpose.xlu0.b32.end [16/16] 0.0, 128
    %v515 = vpop.trf.xlu0
    %v516 = vpop.trf.xlu0
    %v517 = vpop.trf.xlu0
    %v518 = vpop.trf.xlu0
    %v519 = vpop.trf.xlu0
    %v520 = vpop.trf.xlu0
    %v521 = vpop.trf.xlu0
    %v522 = vpop.trf.xlu0
    %v523 = vpop.trf.xlu0
    %v524 = vpop.trf.xlu0
    %v525 = vpop.trf.xlu0
    %v526 = vpop.trf.xlu0
    %v527 = vpop.trf.xlu0
    %v528 = vpop.trf.xlu0
    %v529 = vpop.trf.xlu0
    %v530 = vpop.trf.xlu0
    %531 = vxpose.xlu0.b32.start [1/16] %v358, 128
    %532 = vxpose.xlu0.b32.cont [2/16] 0.0, 128
    %533 = vxpose.xlu0.b32.cont [3/16] 0.0, 128
    %534 = vxpose.xlu0.b32.cont [4/16] 0.0, 128
    %535 = vxpose.xlu0.b32.cont [5/16] 0.0, 128
    %536 = vxpose.xlu0.b32.cont [6/16] 0.0, 128
    %537 = vxpose.xlu0.b32.cont [7/16] 0.0, 128
    %538 = vxpose.xlu0.b32.cont [8/16] 0.0, 128
    %539 = vxpose.xlu0.b32.cont [9/16] 0.0, 128
    %540 = vxpose.xlu0.b32.cont [10/16] 0.0, 128
    %541 = vxpose.xlu0.b32.cont [11/16] 0.0, 128
    %542 = vxpose.xlu0.b32.cont [12/16] 0.0, 128
    %543 = vxpose.xlu0.b32.cont [13/16] 0.0, 128
    %544 = vxpose.xlu0.b32.cont [14/16] 0.0, 128
    %545 = vxpose.xlu0.b32.cont [15/16] 0.0, 128
    %546 = vxpose.xlu0.b32.end [16/16] 0.0, 128
    %v547 = vpop.trf.xlu0
    %v548 = vpop.trf.xlu0
    %v549 = vpop.trf.xlu0
    %v550 = vpop.trf.xlu0
    %v551 = vpop.trf.xlu0
    %v552 = vpop.trf.xlu0
    %v553 = vpop.trf.xlu0
    %v554 = vpop.trf.xlu0
    %v555 = vpop.trf.xlu0
    %v556 = vpop.trf.xlu0
    %v557 = vpop.trf.xlu0
    %v558 = vpop.trf.xlu0
    %v559 = vpop.trf.xlu0
    %v560 = vpop.trf.xlu0
    %v561 = vpop.trf.xlu0
    %v562 = vpop.trf.xlu0
    %563 = vxpose.xlu0.b32.start [1/16] %v363, 128
    %564 = vxpose.xlu0.b32.cont [2/16] 0.0, 128
    %565 = vxpose.xlu0.b32.cont [3/16] 0.0, 128
    %566 = vxpose.xlu0.b32.cont [4/16] 0.0, 128
    %567 = vxpose.xlu0.b32.cont [5/16] 0.0, 128
    %568 = vxpose.xlu0.b32.cont [6/16] 0.0, 128
    %569 = vxpose.xlu0.b32.cont [7/16] 0.0, 128
    %570 = vxpose.xlu0.b32.cont [8/16] 0.0, 128
    %571 = vxpose.xlu0.b32.cont [9/16] 0.0, 128
    %572 = vxpose.xlu0.b32.cont [10/16] 0.0, 128
    %573 = vxpose.xlu0.b32.cont [11/16] 0.0, 128
    %574 = vxpose.xlu0.b32.cont [12/16] 0.0, 128
    %575 = vxpose.xlu0.b32.cont [13/16] 0.0, 128
    %576 = vxpose.xlu0.b32.cont [14/16] 0.0, 128
    %577 = vxpose.xlu0.b32.cont [15/16] 0.0, 128
    %578 = vxpose.xlu0.b32.end [16/16] 0.0, 128
    %v579 = vpop.trf.xlu0
    %v580 = vpop.trf.xlu0
    %v581 = vpop.trf.xlu0
    %v582 = vpop.trf.xlu0
    %v583 = vpop.trf.xlu0
    %v584 = vpop.trf.xlu0
    %v585 = vpop.trf.xlu0
    %v586 = vpop.trf.xlu0
    %v587 = vpop.trf.xlu0
    %v588 = vpop.trf.xlu0
    %v589 = vpop.trf.xlu0
    %v590 = vpop.trf.xlu0
    %v591 = vpop.trf.xlu0
    %v592 = vpop.trf.xlu0
    %v593 = vpop.trf.xlu0
    %v594 = vpop.trf.xlu0
    %595 = vxpose.xlu0.b32.start [1/16] %v368, 128
    %596 = vxpose.xlu0.b32.cont [2/16] 0.0, 128
    %597 = vxpose.xlu0.b32.cont [3/16] 0.0, 128
    %598 = vxpose.xlu0.b32.cont [4/16] 0.0, 128
    %599 = vxpose.xlu0.b32.cont [5/16] 0.0, 128
    %600 = vxpose.xlu0.b32.cont [6/16] 0.0, 128
    %601 = vxpose.xlu0.b32.cont [7/16] 0.0, 128
    %602 = vxpose.xlu0.b32.cont [8/16] 0.0, 128
    %603 = vxpose.xlu0.b32.cont [9/16] 0.0, 128
    %604 = vxpose.xlu0.b32.cont [10/16] 0.0, 128
    %605 = vxpose.xlu0.b32.cont [11/16] 0.0, 128
    %606 = vxpose.xlu0.b32.cont [12/16] 0.0, 128
    %607 = vxpose.xlu0.b32.cont [13/16] 0.0, 128
    %608 = vxpose.xlu0.b32.cont [14/16] 0.0, 128
    %609 = vxpose.xlu0.b32.cont [15/16] 0.0, 128
    %610 = vxpose.xlu0.b32.end [16/16] 0.0, 128
    %v611 = vpop.trf.xlu0
    %v612 = vpop.trf.xlu0
    %v613 = vpop.trf.xlu0
    %v614 = vpop.trf.xlu0
    %v615 = vpop.trf.xlu0
    %v616 = vpop.trf.xlu0
    %v617 = vpop.trf.xlu0
    %v618 = vpop.trf.xlu0
    %v619 = vpop.trf.xlu0
    %v620 = vpop.trf.xlu0
    %v621 = vpop.trf.xlu0
    %v622 = vpop.trf.xlu0
    %v623 = vpop.trf.xlu0
    %v624 = vpop.trf.xlu0
    %v625 = vpop.trf.xlu0
    %v626 = vpop.trf.xlu0
    %v627 = vld [vmem:[#allocation2] sm:$0xff]
    %v629 = vcombine.high %v627, %v627
    %v631 = vunpack.c.l.s4 1966171168
    %v632 = vunpack.c.0.s8 %v631
    %v633 = vlaneseq
    %v634 = vshrl.u32 %v633, 7
    %v635 = vsub.s32 %v632, %v634
    %v636 = vrot.slane %v627, %v635
    %v638 = vunpack.c.l.s4 1966171168
    %v639 = vunpack.c.0.s8 %v638
    %v640 = vlaneseq
    %v641 = vshrl.u32 %v640, 7
    %v642 = vsub.s32 %v639, %v641
    %v643 = vrot.slane %v629, %v642
    %v644 = vcombine.high %v636, %v636
    %v645 = vcombine.high %v643, %v643
    %v647 = vunpack.c.l.s4 1966171168
    %v648 = vunpack.c.0.s8 %v647
    %v649 = vlaneseq
    %v650 = vshrl.u32 %v649, 7
    %v651 = vsub.s32 %v648, %v650
    %v652 = vrot.slane %v636, %v651
    %v654 = vunpack.c.l.s4 1966171168
    %v655 = vunpack.c.0.s8 %v654
    %v656 = vlaneseq
    %v657 = vshrl.u32 %v656, 7
    %v658 = vsub.s32 %v655, %v657
    %v659 = vrot.slane %v643, %v658
    %v661 = vunpack.c.l.s4 1966171168
    %v662 = vunpack.c.0.s8 %v661
    %v663 = vlaneseq
    %v664 = vshrl.u32 %v663, 7
    %v665 = vsub.s32 %v662, %v664
    %v666 = vrot.slane %v644, %v665
    %v668 = vunpack.c.l.s4 1966171168
    %v669 = vunpack.c.0.s8 %v668
    %v670 = vlaneseq
    %v671 = vshrl.u32 %v670, 7
    %v672 = vsub.s32 %v669, %v671
    %v673 = vrot.slane %v645, %v672
    %v674 = vcombine.high %v652, %v652
    %v675 = vcombine.high %v659, %v659
    %v676 = vcombine.high %v666, %v666
    %v677 = vcombine.high %v673, %v673
    %v678 = vlaneseq
    %v679 = vshrl.u32 %v678, 7
    %v680 = vsub.s32 0, %v679
    %v681 = vrot.slane %v652, %v680
    %v682 = vlaneseq
    %v683 = vshrl.u32 %v682, 7
    %v684 = vsub.s32 0, %v683
    %v685 = vrot.slane %v666, %v684
    %v686 = vlaneseq
    %v687 = vshrl.u32 %v686, 7
    %v688 = vsub.s32 0, %v687
    %v689 = vrot.slane %v674, %v688
    %v690 = vlaneseq
    %v691 = vshrl.u32 %v690, 7
    %v692 = vsub.s32 0, %v691
    %v693 = vrot.slane %v676, %v692
    %v694 = vlaneseq
    %v695 = vshrl.u32 %v694, 7
    %v696 = vsub.s32 0, %v695
    %v697 = vrot.slane %v659, %v696
    %v698 = vlaneseq
    %v699 = vshrl.u32 %v698, 7
    %v700 = vsub.s32 0, %v699
    %v701 = vrot.slane %v673, %v700
    %v702 = vlaneseq
    %v703 = vshrl.u32 %v702, 7
    %v704 = vsub.s32 0, %v703
    %v705 = vrot.slane %v675, %v704
    %v706 = vlaneseq
    %v707 = vshrl.u32 %v706, 7
    %v708 = vsub.s32 0, %v707
    %v709 = vrot.slane %v677, %v708
    %v718 = vadd.f32 %v387, %v681
    %v719 = vadd.f32 %v419, %v685
    %v720 = vadd.f32 %v451, %v689
    %v721 = vadd.f32 %v483, %v693
    %v722 = vadd.f32 %v515, %v697
    %v723 = vadd.f32 %v547, %v701
    %v724 = vadd.f32 %v579, %v705
    %v725 = vadd.f32 %v611, %v709
    %vm726 = vcmask 58368
    %v727 = vsel %vm726, %v718, -inf
    %728 = vmax.xlane.f32.xlu0 %v727
    %v729 = vpop.xlane.xlu0 %728
    %v730 = vsel %vm726, %v719, -inf
    %731 = vmax.xlane.f32.xlu0 %v730
    %v732 = vpop.xlane.xlu0 %731
    %v733 = vsel %vm726, %v720, -inf
    %734 = vmax.xlane.f32.xlu0 %v733
    %v735 = vpop.xlane.xlu0 %734
    %v736 = vsel %vm726, %v721, -inf
    %737 = vmax.xlane.f32.xlu0 %v736
    %v738 = vpop.xlane.xlu0 %737
    %v739 = vsel %vm726, %v722, -inf
    %740 = vmax.xlane.f32.xlu0 %v739
    %v741 = vpop.xlane.xlu0 %740
    %v742 = vsel %vm726, %v723, -inf
    %743 = vmax.xlane.f32.xlu0 %v742
    %v744 = vpop.xlane.xlu0 %743
    %v745 = vsel %vm726, %v724, -inf
    %746 = vmax.xlane.f32.xlu0 %v745
    %v747 = vpop.xlane.xlu0 %746
    %v748 = vsel %vm726, %v725, -inf
    %749 = vmax.xlane.f32.xlu0 %v748
    %v750 = vpop.xlane.xlu0 %749
    %v751 = vsub.f32 %v718, %v729
    %v752 = vsub.f32 %v719, %v732
    %v753 = vsub.f32 %v720, %v735
    %v754 = vsub.f32 %v721, %v738
    %v755 = vsub.f32 %v722, %v741
    %v756 = vsub.f32 %v723, %v744
    %v757 = vsub.f32 %v724, %v747
    %v758 = vsub.f32 %v725, %v750
    %v759 = vmul.f32 %v751, 1.442695
    %v760 = vpow.pop %v759
    %v761 = vmul.f32 %v752, 1.442695
    %v762 = vpow.pop %v761
    %v763 = vmul.f32 %v753, 1.442695
    %v764 = vpow.pop %v763
    %v765 = vmul.f32 %v754, 1.442695
    %v766 = vpow.pop %v765
    %v767 = vmul.f32 %v755, 1.442695
    %v768 = vpow.pop %v767
    %v769 = vmul.f32 %v756, 1.442695
    %v770 = vpow.pop %v769
    %v771 = vmul.f32 %v757, 1.442695
    %v772 = vpow.pop %v771
    %v773 = vmul.f32 %v758, 1.442695
    %v774 = vpow.pop %v773
    %v775 = vsel %vm726, %v760, 0.0
    %776 = vadd.xlane.f32.xlu0 %v775
    %v777 = vpop.xlane.xlu0 %776
    %v778 = vsel %vm726, %v762, 0.0
    %779 = vadd.xlane.f32.xlu0 %v778
    %v780 = vpop.xlane.xlu0 %779
    %v781 = vsel %vm726, %v764, 0.0
    %782 = vadd.xlane.f32.xlu0 %v781
    %v783 = vpop.xlane.xlu0 %782
    %v784 = vsel %vm726, %v766, 0.0
    %785 = vadd.xlane.f32.xlu0 %v784
    %v786 = vpop.xlane.xlu0 %785
    %v787 = vsel %vm726, %v768, 0.0
    %788 = vadd.xlane.f32.xlu0 %v787
    %v789 = vpop.xlane.xlu0 %788
    %v790 = vsel %vm726, %v770, 0.0
    %791 = vadd.xlane.f32.xlu0 %v790
    %v792 = vpop.xlane.xlu0 %791
    %v793 = vsel %vm726, %v772, 0.0
    %794 = vadd.xlane.f32.xlu0 %v793
    %v795 = vpop.xlane.xlu0 %794
    %v796 = vsel %vm726, %v774, 0.0
    %797 = vadd.xlane.f32.xlu0 %v796
    %v798 = vpop.xlane.xlu0 %797
    %v799 = vrcp.pop %v777
    %v800 = vrcp.pop %v780
    %v801 = vrcp.pop %v783
    %v802 = vrcp.pop %v786
    %v803 = vrcp.pop %v789
    %v804 = vrcp.pop %v792
    %v805 = vrcp.pop %v795
    %v806 = vrcp.pop %v798
    %v807 = vmul.f32 %v777, %v799
    %v808 = vmul.f32 %v780, %v800
    %v809 = vmul.f32 %v783, %v801
    %v810 = vmul.f32 %v786, %v802
    %v811 = vmul.f32 %v789, %v803
    %v812 = vmul.f32 %v792, %v804
    %v813 = vmul.f32 %v795, %v805
    %v814 = vmul.f32 %v798, %v806
    %v815 = vsub.f32 2.0, %v807
    %v816 = vsub.f32 2.0, %v808
    %v817 = vsub.f32 2.0, %v809
    %v818 = vsub.f32 2.0, %v810
    %v819 = vsub.f32 2.0, %v811
    %v820 = vsub.f32 2.0, %v812
    %v821 = vsub.f32 2.0, %v813
    %v822 = vsub.f32 2.0, %v814
    %v823 = vmul.f32 %v799, %v815
    %v824 = vmul.f32 %v800, %v816
    %v825 = vmul.f32 %v801, %v817
    %v826 = vmul.f32 %v802, %v818
    %v827 = vmul.f32 %v803, %v819
    %v828 = vmul.f32 %v804, %v820
    %v829 = vmul.f32 %v805, %v821
    %v830 = vmul.f32 %v806, %v822
    %v831 = vmul.f32 %v760, %v823
    %v832 = vmul.f32 %v762, %v824
    %v833 = vmul.f32 %v764, %v825
    %v834 = vmul.f32 %v766, %v826
    %v835 = vmul.f32 %v768, %v827
    %v836 = vmul.f32 %v770, %v828
    %v837 = vmul.f32 %v772, %v829
    %v838 = vmul.f32 %v774, %v830
    %vm839 = vcmask 64512
    %v841 = vsel %vm839, %v831, 0
    %843 = vmatprep.subr.mxu0 0.0
    %844 = vmatpush1.msra.mxu0 %v69
    %845 = vmatprep.subr.mxu0 0.0
    %846 = vmatpush1.msra.mxu0 0.0
    %847 = vmatprep.subr.mxu0 0.0
    %848 = vmatpush1.msra.mxu0 0.0
    %849 = vmatprep.subr.mxu0 0.0
    %850 = vmatpush1.msra.mxu0 0.0
    %851 = vmatprep.subr.mxu0 0.0
    %852 = vmatpush1.msra.mxu0 0.0
    %853 = vmatprep.subr.mxu0 0.0
    %854 = vmatpush1.msra.mxu0 0.0
    %855 = vmatprep.subr.mxu0 0.0
    %856 = vmatpush1.msra.mxu0 0.0
    %857 = vmatprep.subr.mxu0 0.0
    %858 = vmatpush1.msra.mxu0 0.0
    %859 = vmatprep.subr.mxu0 0.0
    %860 = vmatpush1.msra.mxu0 0.0
    %861 = vmatprep.subr.mxu0 0.0
    %862 = vmatpush1.msra.mxu0 0.0
    %863 = vmatprep.subr.mxu0 0.0
    %864 = vmatpush1.msra.mxu0 0.0
    %865 = vmatprep.subr.mxu0 0.0
    %866 = vmatpush1.msra.mxu0 0.0
    %867 = vmatprep.subr.mxu0 0.0
    %868 = vmatpush1.msra.mxu0 0.0
    %869 = vmatprep.subr.mxu0 0.0
    %870 = vmatpush1.msra.mxu0 0.0
    %871 = vmatprep.subr.mxu0 0.0
    %872 = vmatpush1.msra.mxu0 0.0
    %873 = vmatprep.subr.mxu0 0.0
    %874 = vmatpush1.msra.mxu0 0.0
    %875 = vmatprep.subr.mxu0 0.0
    %876 = vmatpush1.msra.mxu0 0.0
    %877 = vmatprep.subr.mxu0 0.0
    %878 = vmatpush1.msra.mxu0 0.0
    %879 = vmatprep.subr.mxu0 0.0
    %880 = vmatpush1.msra.mxu0 0.0
    %881 = vmatprep.subr.mxu0 0.0
    %882 = vmatpush1.msra.mxu0 0.0
    %883 = vmatprep.subr.mxu0 0.0
    %884 = vmatpush1.msra.mxu0 0.0
    %885 = vmatprep.subr.mxu0 0.0
    %886 = vmatpush1.msra.mxu0 0.0
    %887 = vmatprep.subr.mxu0 0.0
    %888 = vmatpush1.msra.mxu0 0.0
    %889 = vmatprep.subr.mxu0 0.0
    %890 = vmatpush1.msra.mxu0 0.0
    %891 = vmatprep.subr.mxu0 0.0
    %892 = vmatpush1.msra.mxu0 0.0
    %893 = vmatprep.subr.mxu0 0.0
    %894 = vmatpush1.msra.mxu0 0.0
    %895 = vmatprep.subr.mxu0 0.0
    %896 = vmatpush1.msra.mxu0 0.0
    %897 = vmatprep.subr.mxu0 0.0
    %898 = vmatpush1.msra.mxu0 0.0
    %899 = vmatprep.subr.mxu0 0.0
    %900 = vmatpush1.msra.mxu0 0.0
    %901 = vmatprep.subr.mxu0 0.0
    %902 = vmatpush1.msra.mxu0 0.0
    %903 = vmatprep.subr.mxu0 0.0
    %904 = vmatpush1.msra.mxu0 0.0
    %905 = vmatprep.subr.mxu0 0.0
    %906 = vmatpush1.msra.mxu0 0.0
    %907 = vmatprep.mubr.f32.mxu0 0.0
    %908 = vmatmul.mubr.f32.gmra.mrb[0].mxu0 %v841
    %v909 = vpop.f32.mrb[0].mxu0
    %v910 = vadd.f32 0.0, %v909
    %v911 = vpop.f32.mrb[0].mxu0
    %912 = vdwg.mxu0
    %v914 = vsel %vm839, %v832, 0
    %916 = vmatprep.subr.mxu0 0.0
    %917 = vmatpush1.msra.mxu0 %v70
    %918 = vmatprep.subr.mxu0 0.0
    %919 = vmatpush1.msra.mxu0 0.0
    %920 = vmatprep.subr.mxu0 0.0
    %921 = vmatpush1.msra.mxu0 0.0
    %922 = vmatprep.subr.mxu0 0.0
    %923 = vmatpush1.msra.mxu0 0.0
    %924 = vmatprep.subr.mxu0 0.0
    %925 = vmatpush1.msra.mxu0 0.0
    %926 = vmatprep.subr.mxu0 0.0
    %927 = vmatpush1.msra.mxu0 0.0
    %928 = vmatprep.subr.mxu0 0.0
    %929 = vmatpush1.msra.mxu0 0.0
    %930 = vmatprep.subr.mxu0 0.0
    %931 = vmatpush1.msra.mxu0 0.0
    %932 = vmatprep.subr.mxu0 0.0
    %933 = vmatpush1.msra.mxu0 0.0
    %934 = vmatprep.subr.mxu0 0.0
    %935 = vmatpush1.msra.mxu0 0.0
    %936 = vmatprep.subr.mxu0 0.0
    %937 = vmatpush1.msra.mxu0 0.0
    %938 = vmatprep.subr.mxu0 0.0
    %939 = vmatpush1.msra.mxu0 0.0
    %940 = vmatprep.subr.mxu0 0.0
    %941 = vmatpush1.msra.mxu0 0.0
    %942 = vmatprep.subr.mxu0 0.0
    %943 = vmatpush1.msra.mxu0 0.0
    %944 = vmatprep.subr.mxu0 0.0
    %945 = vmatpush1.msra.mxu0 0.0
    %946 = vmatprep.subr.mxu0 0.0
    %947 = vmatpush1.msra.mxu0 0.0
    %948 = vmatprep.subr.mxu0 0.0
    %949 = vmatpush1.msra.mxu0 0.0
    %950 = vmatprep.subr.mxu0 0.0
    %951 = vmatpush1.msra.mxu0 0.0
    %952 = vmatprep.subr.mxu0 0.0
    %953 = vmatpush1.msra.mxu0 0.0
    %954 = vmatprep.subr.mxu0 0.0
    %955 = vmatpush1.msra.mxu0 0.0
    %956 = vmatprep.subr.mxu0 0.0
    %957 = vmatpush1.msra.mxu0 0.0
    %958 = vmatprep.subr.mxu0 0.0
    %959 = vmatpush1.msra.mxu0 0.0
    %960 = vmatprep.subr.mxu0 0.0
    %961 = vmatpush1.msra.mxu0 0.0
    %962 = vmatprep.subr.mxu0 0.0
    %963 = vmatpush1.msra.mxu0 0.0
    %964 = vmatprep.subr.mxu0 0.0
    %965 = vmatpush1.msra.mxu0 0.0
    %966 = vmatprep.subr.mxu0 0.0
    %967 = vmatpush1.msra.mxu0 0.0
    %968 = vmatprep.subr.mxu0 0.0
    %969 = vmatpush1.msra.mxu0 0.0
    %970 = vmatprep.subr.mxu0 0.0
    %971 = vmatpush1.msra.mxu0 0.0
    %972 = vmatprep.subr.mxu0 0.0
    %973 = vmatpush1.msra.mxu0 0.0
    %974 = vmatprep.subr.mxu0 0.0
    %975 = vmatpush1.msra.mxu0 0.0
    %976 = vmatprep.subr.mxu0 0.0
    %977 = vmatpush1.msra.mxu0 0.0
    %978 = vmatprep.subr.mxu0 0.0
    %979 = vmatpush1.msra.mxu0 0.0
    %980 = vmatprep.mubr.f32.mxu0 0.0
    %981 = vmatmul.mubr.f32.gmra.mrb[0].mxu0 %v914
    %v982 = vpop.f32.mrb[0].mxu0
    %v983 = vadd.f32 0.0, %v982
    %v984 = vpop.f32.mrb[0].mxu0
    %985 = vdwg.mxu0
    %v987 = vsel %vm839, %v833, 0
    %989 = vmatprep.subr.mxu0 0.0
    %990 = vmatpush1.msra.mxu0 %v71
    %991 = vmatprep.subr.mxu0 0.0
    %992 = vmatpush1.msra.mxu0 0.0
    %993 = vmatprep.subr.mxu0 0.0
    %994 = vmatpush1.msra.mxu0 0.0
    %995 = vmatprep.subr.mxu0 0.0
    %996 = vmatpush1.msra.mxu0 0.0
    %997 = vmatprep.subr.mxu0 0.0
    %998 = vmatpush1.msra.mxu0 0.0
    %999 = vmatprep.subr.mxu0 0.0
    %1000 = vmatpush1.msra.mxu0 0.0
    %1001 = vmatprep.subr.mxu0 0.0
    %1002 = vmatpush1.msra.mxu0 0.0
    %1003 = vmatprep.subr.mxu0 0.0
    %1004 = vmatpush1.msra.mxu0 0.0
    %1005 = vmatprep.subr.mxu0 0.0
    %1006 = vmatpush1.msra.mxu0 0.0
    %1007 = vmatprep.subr.mxu0 0.0
    %1008 = vmatpush1.msra.mxu0 0.0
    %1009 = vmatprep.subr.mxu0 0.0
    %1010 = vmatpush1.msra.mxu0 0.0
    %1011 = vmatprep.subr.mxu0 0.0
    %1012 = vmatpush1.msra.mxu0 0.0
    %1013 = vmatprep.subr.mxu0 0.0
    %1014 = vmatpush1.msra.mxu0 0.0
    %1015 = vmatprep.subr.mxu0 0.0
    %1016 = vmatpush1.msra.mxu0 0.0
    %1017 = vmatprep.subr.mxu0 0.0
    %1018 = vmatpush1.msra.mxu0 0.0
    %1019 = vmatprep.subr.mxu0 0.0
    %1020 = vmatpush1.msra.mxu0 0.0
    %1021 = vmatprep.subr.mxu0 0.0
    %1022 = vmatpush1.msra.mxu0 0.0
    %1023 = vmatprep.subr.mxu0 0.0
    %1024 = vmatpush1.msra.mxu0 0.0
    %1025 = vmatprep.subr.mxu0 0.0
    %1026 = vmatpush1.msra.mxu0 0.0
    %1027 = vmatprep.subr.mxu0 0.0
    %1028 = vmatpush1.msra.mxu0 0.0
    %1029 = vmatprep.subr.mxu0 0.0
    %1030 = vmatpush1.msra.mxu0 0.0
    %1031 = vmatprep.subr.mxu0 0.0
    %1032 = vmatpush1.msra.mxu0 0.0
    %1033 = vmatprep.subr.mxu0 0.0
    %1034 = vmatpush1.msra.mxu0 0.0
    %1035 = vmatprep.subr.mxu0 0.0
    %1036 = vmatpush1.msra.mxu0 0.0
    %1037 = vmatprep.subr.mxu0 0.0
    %1038 = vmatpush1.msra.mxu0 0.0
    %1039 = vmatprep.subr.mxu0 0.0
    %1040 = vmatpush1.msra.mxu0 0.0
    %1041 = vmatprep.subr.mxu0 0.0
    %1042 = vmatpush1.msra.mxu0 0.0
    %1043 = vmatprep.subr.mxu0 0.0
    %1044 = vmatpush1.msra.mxu0 0.0
    %1045 = vmatprep.subr.mxu0 0.0
    %1046 = vmatpush1.msra.mxu0 0.0
    %1047 = vmatprep.subr.mxu0 0.0
    %1048 = vmatpush1.msra.mxu0 0.0
    %1049 = vmatprep.subr.mxu0 0.0
    %1050 = vmatpush1.msra.mxu0 0.0
    %1051 = vmatprep.subr.mxu0 0.0
    %1052 = vmatpush1.msra.mxu0 0.0
    %1053 = vmatprep.mubr.f32.mxu0 0.0
    %1054 = vmatmul.mubr.f32.gmra.mrb[0].mxu0 %v987
    %v1055 = vpop.f32.mrb[0].mxu0
    %v1056 = vadd.f32 0.0, %v1055
    %v1057 = vpop.f32.mrb[0].mxu0
    %1058 = vdwg.mxu0
    %v1060 = vsel %vm839, %v834, 0
    %1062 = vmatprep.subr.mxu0 0.0
    %1063 = vmatpush1.msra.mxu0 %v72
    %1064 = vmatprep.subr.mxu0 0.0
    %1065 = vmatpush1.msra.mxu0 0.0
    %1066 = vmatprep.subr.mxu0 0.0
    %1067 = vmatpush1.msra.mxu0 0.0
    %1068 = vmatprep.subr.mxu0 0.0
    %1069 = vmatpush1.msra.mxu0 0.0
    %1070 = vmatprep.subr.mxu0 0.0
    %1071 = vmatpush1.msra.mxu0 0.0
    %1072 = vmatprep.subr.mxu0 0.0
    %1073 = vmatpush1.msra.mxu0 0.0
    %1074 = vmatprep.subr.mxu0 0.0
    %1075 = vmatpush1.msra.mxu0 0.0
    %1076 = vmatprep.subr.mxu0 0.0
    %1077 = vmatpush1.msra.mxu0 0.0
    %1078 = vmatprep.subr.mxu0 0.0
    %1079 = vmatpush1.msra.mxu0 0.0
    %1080 = vmatprep.subr.mxu0 0.0
    %1081 = vmatpush1.msra.mxu0 0.0
    %1082 = vmatprep.subr.mxu0 0.0
    %1083 = vmatpush1.msra.mxu0 0.0
    %1084 = vmatprep.subr.mxu0 0.0
    %1085 = vmatpush1.msra.mxu0 0.0
    %1086 = vmatprep.subr.mxu0 0.0
    %1087 = vmatpush1.msra.mxu0 0.0
    %1088 = vmatprep.subr.mxu0 0.0
    %1089 = vmatpush1.msra.mxu0 0.0
    %1090 = vmatprep.subr.mxu0 0.0
    %1091 = vmatpush1.msra.mxu0 0.0
    %1092 = vmatprep.subr.mxu0 0.0
    %1093 = vmatpush1.msra.mxu0 0.0
    %1094 = vmatprep.subr.mxu0 0.0
    %1095 = vmatpush1.msra.mxu0 0.0
    %1096 = vmatprep.subr.mxu0 0.0
    %1097 = vmatpush1.msra.mxu0 0.0
    %1098 = vmatprep.subr.mxu0 0.0
    %1099 = vmatpush1.msra.mxu0 0.0
    %1100 = vmatprep.subr.mxu0 0.0
    %1101 = vmatpush1.msra.mxu0 0.0
    %1102 = vmatprep.subr.mxu0 0.0
    %1103 = vmatpush1.msra.mxu0 0.0
    %1104 = vmatprep.subr.mxu0 0.0
    %1105 = vmatpush1.msra.mxu0 0.0
    %1106 = vmatprep.subr.mxu0 0.0
    %1107 = vmatpush1.msra.mxu0 0.0
    %1108 = vmatprep.subr.mxu0 0.0
    %1109 = vmatpush1.msra.mxu0 0.0
    %1110 = vmatprep.subr.mxu0 0.0
    %1111 = vmatpush1.msra.mxu0 0.0
    %1112 = vmatprep.subr.mxu0 0.0
    %1113 = vmatpush1.msra.mxu0 0.0
    %1114 = vmatprep.subr.mxu0 0.0
    %1115 = vmatpush1.msra.mxu0 0.0
    %1116 = vmatprep.subr.mxu0 0.0
    %1117 = vmatpush1.msra.mxu0 0.0
    %1118 = vmatprep.subr.mxu0 0.0
    %1119 = vmatpush1.msra.mxu0 0.0
    %1120 = vmatprep.subr.mxu0 0.0
    %1121 = vmatpush1.msra.mxu0 0.0
    %1122 = vmatprep.subr.mxu0 0.0
    %1123 = vmatpush1.msra.mxu0 0.0
    %1124 = vmatprep.subr.mxu0 0.0
    %1125 = vmatpush1.msra.mxu0 0.0
    %1126 = vmatprep.mubr.f32.mxu0 0.0
    %1127 = vmatmul.mubr.f32.gmra.mrb[0].mxu0 %v1060
    %v1128 = vpop.f32.mrb[0].mxu0
    %v1129 = vadd.f32 0.0, %v1128
    %v1130 = vpop.f32.mrb[0].mxu0
    %1131 = vdwg.mxu0
    %v1133 = vsel %vm839, %v835, 0
    %1135 = vmatprep.subr.mxu0 0.0
    %1136 = vmatpush1.msra.mxu0 %v73
    %1137 = vmatprep.subr.mxu0 0.0
    %1138 = vmatpush1.msra.mxu0 0.0
    %1139 = vmatprep.subr.mxu0 0.0
    %1140 = vmatpush1.msra.mxu0 0.0
    %1141 = vmatprep.subr.mxu0 0.0
    %1142 = vmatpush1.msra.mxu0 0.0
    %1143 = vmatprep.subr.mxu0 0.0
    %1144 = vmatpush1.msra.mxu0 0.0
    %1145 = vmatprep.subr.mxu0 0.0
    %1146 = vmatpush1.msra.mxu0 0.0
    %1147 = vmatprep.subr.mxu0 0.0
    %1148 = vmatpush1.msra.mxu0 0.0
    %1149 = vmatprep.subr.mxu0 0.0
    %1150 = vmatpush1.msra.mxu0 0.0
    %1151 = vmatprep.subr.mxu0 0.0
    %1152 = vmatpush1.msra.mxu0 0.0
    %1153 = vmatprep.subr.mxu0 0.0
    %1154 = vmatpush1.msra.mxu0 0.0
    %1155 = vmatprep.subr.mxu0 0.0
    %1156 = vmatpush1.msra.mxu0 0.0
    %1157 = vmatprep.subr.mxu0 0.0
    %1158 = vmatpush1.msra.mxu0 0.0
    %1159 = vmatprep.subr.mxu0 0.0
    %1160 = vmatpush1.msra.mxu0 0.0
    %1161 = vmatprep.subr.mxu0 0.0
    %1162 = vmatpush1.msra.mxu0 0.0
    %1163 = vmatprep.subr.mxu0 0.0
    %1164 = vmatpush1.msra.mxu0 0.0
    %1165 = vmatprep.subr.mxu0 0.0
    %1166 = vmatpush1.msra.mxu0 0.0
    %1167 = vmatprep.subr.mxu0 0.0
    %1168 = vmatpush1.msra.mxu0 0.0
    %1169 = vmatprep.subr.mxu0 0.0
    %1170 = vmatpush1.msra.mxu0 0.0
    %1171 = vmatprep.subr.mxu0 0.0
    %1172 = vmatpush1.msra.mxu0 0.0
    %1173 = vmatprep.subr.mxu0 0.0
    %1174 = vmatpush1.msra.mxu0 0.0
    %1175 = vmatprep.subr.mxu0 0.0
    %1176 = vmatpush1.msra.mxu0 0.0
    %1177 = vmatprep.subr.mxu0 0.0
    %1178 = vmatpush1.msra.mxu0 0.0
    %1179 = vmatprep.subr.mxu0 0.0
    %1180 = vmatpush1.msra.mxu0 0.0
    %1181 = vmatprep.subr.mxu0 0.0
    %1182 = vmatpush1.msra.mxu0 0.0
    %1183 = vmatprep.subr.mxu0 0.0
    %1184 = vmatpush1.msra.mxu0 0.0
    %1185 = vmatprep.subr.mxu0 0.0
    %1186 = vmatpush1.msra.mxu0 0.0
    %1187 = vmatprep.subr.mxu0 0.0
    %1188 = vmatpush1.msra.mxu0 0.0
    %1189 = vmatprep.subr.mxu0 0.0
    %1190 = vmatpush1.msra.mxu0 0.0
    %1191 = vmatprep.subr.mxu0 0.0
    %1192 = vmatpush1.msra.mxu0 0.0
    %1193 = vmatprep.subr.mxu0 0.0
    %1194 = vmatpush1.msra.mxu0 0.0
    %1195 = vmatprep.subr.mxu0 0.0
    %1196 = vmatpush1.msra.mxu0 0.0
    %1197 = vmatprep.subr.mxu0 0.0
    %1198 = vmatpush1.msra.mxu0 0.0
    %1199 = vmatprep.mubr.f32.mxu0 0.0
    %1200 = vmatmul.mubr.f32.gmra.mrb[0].mxu0 %v1133
    %v1201 = vpop.f32.mrb[0].mxu0
    %v1202 = vadd.f32 0.0, %v1201
    %v1203 = vpop.f32.mrb[0].mxu0
    %1204 = vdwg.mxu0
    %v1206 = vsel %vm839, %v836, 0
    %1208 = vmatprep.subr.mxu0 0.0
    %1209 = vmatpush1.msra.mxu0 %v74
    %1210 = vmatprep.subr.mxu0 0.0
    %1211 = vmatpush1.msra.mxu0 0.0
    %1212 = vmatprep.subr.mxu0 0.0
    %1213 = vmatpush1.msra.mxu0 0.0
    %1214 = vmatprep.subr.mxu0 0.0
    %1215 = vmatpush1.msra.mxu0 0.0
    %1216 = vmatprep.subr.mxu0 0.0
    %1217 = vmatpush1.msra.mxu0 0.0
    %1218 = vmatprep.subr.mxu0 0.0
    %1219 = vmatpush1.msra.mxu0 0.0
    %1220 = vmatprep.subr.mxu0 0.0
    %1221 = vmatpush1.msra.mxu0 0.0
    %1222 = vmatprep.subr.mxu0 0.0
    %1223 = vmatpush1.msra.mxu0 0.0
    %1224 = vmatprep.subr.mxu0 0.0
    %1225 = vmatpush1.msra.mxu0 0.0
    %1226 = vmatprep.subr.mxu0 0.0
    %1227 = vmatpush1.msra.mxu0 0.0
    %1228 = vmatprep.subr.mxu0 0.0
    %1229 = vmatpush1.msra.mxu0 0.0
    %1230 = vmatprep.subr.mxu0 0.0
    %1231 = vmatpush1.msra.mxu0 0.0
    %1232 = vmatprep.subr.mxu0 0.0
    %1233 = vmatpush1.msra.mxu0 0.0
    %1234 = vmatprep.subr.mxu0 0.0
    %1235 = vmatpush1.msra.mxu0 0.0
    %1236 = vmatprep.subr.mxu0 0.0
    %1237 = vmatpush1.msra.mxu0 0.0
    %1238 = vmatprep.subr.mxu0 0.0
    %1239 = vmatpush1.msra.mxu0 0.0
    %1240 = vmatprep.subr.mxu0 0.0
    %1241 = vmatpush1.msra.mxu0 0.0
    %1242 = vmatprep.subr.mxu0 0.0
    %1243 = vmatpush1.msra.mxu0 0.0
    %1244 = vmatprep.subr.mxu0 0.0
    %1245 = vmatpush1.msra.mxu0 0.0
    %1246 = vmatprep.subr.mxu0 0.0
    %1247 = vmatpush1.msra.mxu0 0.0
    %1248 = vmatprep.subr.mxu0 0.0
    %1249 = vmatpush1.msra.mxu0 0.0
    %1250 = vmatprep.subr.mxu0 0.0
    %1251 = vmatpush1.msra.mxu0 0.0
    %1252 = vmatprep.subr.mxu0 0.0
    %1253 = vmatpush1.msra.mxu0 0.0
    %1254 = vmatprep.subr.mxu0 0.0
    %1255 = vmatpush1.msra.mxu0 0.0
    %1256 = vmatprep.subr.mxu0 0.0
    %1257 = vmatpush1.msra.mxu0 0.0
    %1258 = vmatprep.subr.mxu0 0.0
    %1259 = vmatpush1.msra.mxu0 0.0
    %1260 = vmatprep.subr.mxu0 0.0
    %1261 = vmatpush1.msra.mxu0 0.0
    %1262 = vmatprep.subr.mxu0 0.0
    %1263 = vmatpush1.msra.mxu0 0.0
    %1264 = vmatprep.subr.mxu0 0.0
    %1265 = vmatpush1.msra.mxu0 0.0
    %1266 = vmatprep.subr.mxu0 0.0
    %1267 = vmatpush1.msra.mxu0 0.0
    %1268 = vmatprep.subr.mxu0 0.0
    %1269 = vmatpush1.msra.mxu0 0.0
    %1270 = vmatprep.subr.mxu0 0.0
    %1271 = vmatpush1.msra.mxu0 0.0
    %1272 = vmatprep.mubr.f32.mxu0 0.0
    %1273 = vmatmul.mubr.f32.gmra.mrb[0].mxu0 %v1206
    %v1274 = vpop.f32.mrb[0].mxu0
    %v1275 = vadd.f32 0.0, %v1274
    %v1276 = vpop.f32.mrb[0].mxu0
    %1277 = vdwg.mxu0
    %v1279 = vsel %vm839, %v837, 0
    %1281 = vmatprep.subr.mxu0 0.0
    %1282 = vmatpush1.msra.mxu0 %v75
    %1283 = vmatprep.subr.mxu0 0.0
    %1284 = vmatpush1.msra.mxu0 0.0
    %1285 = vmatprep.subr.mxu0 0.0
    %1286 = vmatpush1.msra.mxu0 0.0
    %1287 = vmatprep.subr.mxu0 0.0
    %1288 = vmatpush1.msra.mxu0 0.0
    %1289 = vmatprep.subr.mxu0 0.0
    %1290 = vmatpush1.msra.mxu0 0.0
    %1291 = vmatprep.subr.mxu0 0.0
    %1292 = vmatpush1.msra.mxu0 0.0
    %1293 = vmatprep.subr.mxu0 0.0
    %1294 = vmatpush1.msra.mxu0 0.0
    %1295 = vmatprep.subr.mxu0 0.0
    %1296 = vmatpush1.msra.mxu0 0.0
    %1297 = vmatprep.subr.mxu0 0.0
    %1298 = vmatpush1.msra.mxu0 0.0
    %1299 = vmatprep.subr.mxu0 0.0
    %1300 = vmatpush1.msra.mxu0 0.0
    %1301 = vmatprep.subr.mxu0 0.0
    %1302 = vmatpush1.msra.mxu0 0.0
    %1303 = vmatprep.subr.mxu0 0.0
    %1304 = vmatpush1.msra.mxu0 0.0
    %1305 = vmatprep.subr.mxu0 0.0
    %1306 = vmatpush1.msra.mxu0 0.0
    %1307 = vmatprep.subr.mxu0 0.0
    %1308 = vmatpush1.msra.mxu0 0.0
    %1309 = vmatprep.subr.mxu0 0.0
    %1310 = vmatpush1.msra.mxu0 0.0
    %1311 = vmatprep.subr.mxu0 0.0
    %1312 = vmatpush1.msra.mxu0 0.0
    %1313 = vmatprep.subr.mxu0 0.0
    %1314 = vmatpush1.msra.mxu0 0.0
    %1315 = vmatprep.subr.mxu0 0.0
    %1316 = vmatpush1.msra.mxu0 0.0
    %1317 = vmatprep.subr.mxu0 0.0
    %1318 = vmatpush1.msra.mxu0 0.0
    %1319 = vmatprep.subr.mxu0 0.0
    %1320 = vmatpush1.msra.mxu0 0.0
    %1321 = vmatprep.subr.mxu0 0.0
    %1322 = vmatpush1.msra.mxu0 0.0
    %1323 = vmatprep.subr.mxu0 0.0
    %1324 = vmatpush1.msra.mxu0 0.0
    %1325 = vmatprep.subr.mxu0 0.0
    %1326 = vmatpush1.msra.mxu0 0.0
    %1327 = vmatprep.subr.mxu0 0.0
    %1328 = vmatpush1.msra.mxu0 0.0
    %1329 = vmatprep.subr.mxu0 0.0
    %1330 = vmatpush1.msra.mxu0 0.0
    %1331 = vmatprep.subr.mxu0 0.0
    %1332 = vmatpush1.msra.mxu0 0.0
    %1333 = vmatprep.subr.mxu0 0.0
    %1334 = vmatpush1.msra.mxu0 0.0
    %1335 = vmatprep.subr.mxu0 0.0
    %1336 = vmatpush1.msra.mxu0 0.0
    %1337 = vmatprep.subr.mxu0 0.0
    %1338 = vmatpush1.msra.mxu0 0.0
    %1339 = vmatprep.subr.mxu0 0.0
    %1340 = vmatpush1.msra.mxu0 0.0
    %1341 = vmatprep.subr.mxu0 0.0
    %1342 = vmatpush1.msra.mxu0 0.0
    %1343 = vmatprep.subr.mxu0 0.0
    %1344 = vmatpush1.msra.mxu0 0.0
    %1345 = vmatprep.mubr.f32.mxu0 0.0
    %1346 = vmatmul.mubr.f32.gmra.mrb[0].mxu0 %v1279
    %v1347 = vpop.f32.mrb[0].mxu0
    %v1348 = vadd.f32 0.0, %v1347
    %v1349 = vpop.f32.mrb[0].mxu0
    %1350 = vdwg.mxu0
    %v1352 = vsel %vm839, %v838, 0
    %1354 = vmatprep.subr.mxu0 0.0
    %1355 = vmatpush1.msra.mxu0 %v76
    %1356 = vmatprep.subr.mxu0 0.0
    %1357 = vmatpush1.msra.mxu0 0.0
    %1358 = vmatprep.subr.mxu0 0.0
    %1359 = vmatpush1.msra.mxu0 0.0
    %1360 = vmatprep.subr.mxu0 0.0
    %1361 = vmatpush1.msra.mxu0 0.0
    %1362 = vmatprep.subr.mxu0 0.0
    %1363 = vmatpush1.msra.mxu0 0.0
    %1364 = vmatprep.subr.mxu0 0.0
    %1365 = vmatpush1.msra.mxu0 0.0
    %1366 = vmatprep.subr.mxu0 0.0
    %1367 = vmatpush1.msra.mxu0 0.0
    %1368 = vmatprep.subr.mxu0 0.0
    %1369 = vmatpush1.msra.mxu0 0.0
    %1370 = vmatprep.subr.mxu0 0.0
    %1371 = vmatpush1.msra.mxu0 0.0
    %1372 = vmatprep.subr.mxu0 0.0
    %1373 = vmatpush1.msra.mxu0 0.0
    %1374 = vmatprep.subr.mxu0 0.0
    %1375 = vmatpush1.msra.mxu0 0.0
    %1376 = vmatprep.subr.mxu0 0.0
    %1377 = vmatpush1.msra.mxu0 0.0
    %1378 = vmatprep.subr.mxu0 0.0
    %1379 = vmatpush1.msra.mxu0 0.0
    %1380 = vmatprep.subr.mxu0 0.0
    %1381 = vmatpush1.msra.mxu0 0.0
    %1382 = vmatprep.subr.mxu0 0.0
    %1383 = vmatpush1.msra.mxu0 0.0
    %1384 = vmatprep.subr.mxu0 0.0
    %1385 = vmatpush1.msra.mxu0 0.0
    %1386 = vmatprep.subr.mxu0 0.0
    %1387 = vmatpush1.msra.mxu0 0.0
    %1388 = vmatprep.subr.mxu0 0.0
    %1389 = vmatpush1.msra.mxu0 0.0
    %1390 = vmatprep.subr.mxu0 0.0
    %1391 = vmatpush1.msra.mxu0 0.0
    %1392 = vmatprep.subr.mxu0 0.0
    %1393 = vmatpush1.msra.mxu0 0.0
    %1394 = vmatprep.subr.mxu0 0.0
    %1395 = vmatpush1.msra.mxu0 0.0
    %1396 = vmatprep.subr.mxu0 0.0
    %1397 = vmatpush1.msra.mxu0 0.0
    %1398 = vmatprep.subr.mxu0 0.0
    %1399 = vmatpush1.msra.mxu0 0.0
    %1400 = vmatprep.subr.mxu0 0.0
    %1401 = vmatpush1.msra.mxu0 0.0
    %1402 = vmatprep.subr.mxu0 0.0
    %1403 = vmatpush1.msra.mxu0 0.0
    %1404 = vmatprep.subr.mxu0 0.0
    %1405 = vmatpush1.msra.mxu0 0.0
    %1406 = vmatprep.subr.mxu0 0.0
    %1407 = vmatpush1.msra.mxu0 0.0
    %1408 = vmatprep.subr.mxu0 0.0
    %1409 = vmatpush1.msra.mxu0 0.0
    %1410 = vmatprep.subr.mxu0 0.0
    %1411 = vmatpush1.msra.mxu0 0.0
    %1412 = vmatprep.subr.mxu0 0.0
    %1413 = vmatpush1.msra.mxu0 0.0
    %1414 = vmatprep.subr.mxu0 0.0
    %1415 = vmatpush1.msra.mxu0 0.0
    %1416 = vmatprep.subr.mxu0 0.0
    %1417 = vmatpush1.msra.mxu0 0.0
    %1418 = vmatprep.mubr.f32.mxu0 0.0
    %1419 = vmatmul.mubr.f32.gmra.mrb[0].mxu0 %v1352
    %v1420 = vpop.f32.mrb[0].mxu0
    %v1421 = vadd.f32 0.0, %v1420
    %v1422 = vpop.f32.mrb[0].mxu0
    %1423 = vdwg.mxu0
    %v1424 = vld [vmem:[%s7] sm:$0x1]
    %v1426 = vlaneseq
    %v1427 = vshrl.u32 %v1426, 7
    %v1428 = vsub.s32 0, %v1427
    %v1429 = vrot.slane %v1424, %v1428
    %v1431 = vld [vmem:[#allocation7] sm:$0xff]
    %v1432 = vld [vmem:[#allocation7 + $0x8] sm:$0xff]
    %v1433 = vld [vmem:[#allocation7 + $0x10] sm:$0xff]
    %v1434 = vld [vmem:[#allocation7 + $0x18] sm:$0xff]
    %v1443 = vrot.slane %v983, 7
    %vm1444 = vcmask 1041409
    %v1445 = vsel %vm1444, %v1443, %v910
    %v1446 = vrot.slane %v1056, 6
    %vm1447 = vcmask 1042434
    %v1448 = vsel %vm1447, %v1446, %v1445
    %v1449 = vrot.slane %v1129, 5
    %vm1450 = vcmask 1043459
    %v1451 = vsel %vm1450, %v1449, %v1448
    %v1452 = vrot.slane %v1202, 4
    %vm1453 = vcmask 1044484
    %v1454 = vsel %vm1453, %v1452, %v1451
    %v1455 = vrot.slane %v1275, 3
    %vm1456 = vcmask 1045509
    %v1457 = vsel %vm1456, %v1455, %v1454
    %v1458 = vrot.slane %v1348, 2
    %vm1459 = vcmask 1046534
    %v1460 = vsel %vm1459, %v1458, %v1457
    %v1461 = vrot.slane %v1421, 1
    %vm1462 = vcmask 1047559
    %v1463 = vsel %vm1462, %v1461, %v1460
    %v1464 = vsel %vm88, %v1463, 0
    %1466 = vmatprep.subr.mxu0 0.0
    %1467 = vmatpush1.msra.mxu0 %v1431
    %1468 = vmatprep.subr.mxu0 0.0
    %1469 = vmatpush1.msra.mxu0 %v1432
    %1470 = vmatprep.subr.mxu0 0.0
    %1471 = vmatpush1.msra.mxu0 %v1433
    %1472 = vmatprep.subr.mxu0 0.0
    %1473 = vmatpush1.msra.mxu0 %v1434
    %1474 = vmatprep.subr.mxu0 0.0
    %1475 = vmatpush1.msra.mxu0 0.0
    %1476 = vmatprep.subr.mxu0 0.0
    %1477 = vmatpush1.msra.mxu0 0.0
    %1478 = vmatprep.subr.mxu0 0.0
    %1479 = vmatpush1.msra.mxu0 0.0
    %1480 = vmatprep.subr.mxu0 0.0
    %1481 = vmatpush1.msra.mxu0 0.0
    %1482 = vmatprep.subr.mxu0 0.0
    %1483 = vmatpush1.msra.mxu0 0.0
    %1484 = vmatprep.subr.mxu0 0.0
    %1485 = vmatpush1.msra.mxu0 0.0
    %1486 = vmatprep.subr.mxu0 0.0
    %1487 = vmatpush1.msra.mxu0 0.0
    %1488 = vmatprep.subr.mxu0 0.0
    %1489 = vmatpush1.msra.mxu0 0.0
    %1490 = vmatprep.subr.mxu0 0.0
    %1491 = vmatpush1.msra.mxu0 0.0
    %1492 = vmatprep.subr.mxu0 0.0
    %1493 = vmatpush1.msra.mxu0 0.0
    %1494 = vmatprep.subr.mxu0 0.0
    %1495 = vmatpush1.msra.mxu0 0.0
    %1496 = vmatprep.subr.mxu0 0.0
    %1497 = vmatpush1.msra.mxu0 0.0
    %1498 = vmatprep.subr.mxu0 0.0
    %1499 = vmatpush1.msra.mxu0 0.0
    %1500 = vmatprep.subr.mxu0 0.0
    %1501 = vmatpush1.msra.mxu0 0.0
    %1502 = vmatprep.subr.mxu0 0.0
    %1503 = vmatpush1.msra.mxu0 0.0
    %1504 = vmatprep.subr.mxu0 0.0
    %1505 = vmatpush1.msra.mxu0 0.0
    %1506 = vmatprep.subr.mxu0 0.0
    %1507 = vmatpush1.msra.mxu0 0.0
    %1508 = vmatprep.subr.mxu0 0.0
    %1509 = vmatpush1.msra.mxu0 0.0
    %1510 = vmatprep.subr.mxu0 0.0
    %1511 = vmatpush1.msra.mxu0 0.0
    %1512 = vmatprep.subr.mxu0 0.0
    %1513 = vmatpush1.msra.mxu0 0.0
    %1514 = vmatprep.subr.mxu0 0.0
    %1515 = vmatpush1.msra.mxu0 0.0
    %1516 = vmatprep.subr.mxu0 0.0
    %1517 = vmatpush1.msra.mxu0 0.0
    %1518 = vmatprep.subr.mxu0 0.0
    %1519 = vmatpush1.msra.mxu0 0.0
    %1520 = vmatprep.subr.mxu0 0.0
    %1521 = vmatpush1.msra.mxu0 0.0
    %1522 = vmatprep.subr.mxu0 0.0
    %1523 = vmatpush1.msra.mxu0 0.0
    %1524 = vmatprep.subr.mxu0 0.0
    %1525 = vmatpush1.msra.mxu0 0.0
    %1526 = vmatprep.subr.mxu0 0.0
    %1527 = vmatpush1.msra.mxu0 0.0
    %1528 = vmatprep.subr.mxu0 0.0
    %1529 = vmatpush1.msra.mxu0 0.0
    %1530 = vmatprep.mubr.f32.mxu0 0.0
    %1531 = vmatmul.mubr.f32.gmra.mrb[0].mxu0 %v1464
    %v1532 = vpop.f32.mrb[0].mxu0
    %v1533 = vadd.f32 0.0, %v1532
    %v1534 = vpop.f32.mrb[0].mxu0
    %1535 = vdwg.mxu0
    %v1536 = vadd.f32 %v1429, %v1533
    %s1537 = scalar_lea.vmem [#allocation7], 32
    %v1538 = vld [vmem:[%s1537] sm:$0xff]
    %v1539 = vld [vmem:[%s1537 + $0x8] sm:$0xff]
    %v1540 = vld [vmem:[%s1537 + $0x10] sm:$0xff]
    %v1541 = vld [vmem:[%s1537 + $0x18] sm:$0xff]
    %v1542 = vrot.slane %v910, 1
    %v1543 = vsel %vm1444, %v983, %v1542
    %v1544 = vrot.slane %v1056, 7
    %v1545 = vsel %vm1447, %v1544, %v1543
    %v1546 = vrot.slane %v1129, 6
    %v1547 = vsel %vm1450, %v1546, %v1545
    %v1548 = vrot.slane %v1202, 5
    %v1549 = vsel %vm1453, %v1548, %v1547
    %v1550 = vrot.slane %v1275, 4
    %v1551 = vsel %vm1456, %v1550, %v1549
    %v1552 = vrot.slane %v1348, 3
    %v1553 = vsel %vm1459, %v1552, %v1551
    %v1554 = vrot.slane %v1421, 2
    %v1555 = vsel %vm1462, %v1554, %v1553
    %v1556 = vsel %vm88, %v1555, 0
    %1558 = vmatprep.subr.mxu0 0.0
    %1559 = vmatpush1.msra.mxu0 %v1538
    %1560 = vmatprep.subr.mxu0 0.0
    %1561 = vmatpush1.msra.mxu0 %v1539
    %1562 = vmatprep.subr.mxu0 0.0
    %1563 = vmatpush1.msra.mxu0 %v1540
    %1564 = vmatprep.subr.mxu0 0.0
    %1565 = vmatpush1.msra.mxu0 %v1541
    %1566 = vmatprep.subr.mxu0 0.0
    %1567 = vmatpush1.msra.mxu0 0.0
    %1568 = vmatprep.subr.mxu0 0.0
    %1569 = vmatpush1.msra.mxu0 0.0
    %1570 = vmatprep.subr.mxu0 0.0
    %1571 = vmatpush1.msra.mxu0 0.0
    %1572 = vmatprep.subr.mxu0 0.0
    %1573 = vmatpush1.msra.mxu0 0.0
    %1574 = vmatprep.subr.mxu0 0.0
    %1575 = vmatpush1.msra.mxu0 0.0
    %1576 = vmatprep.subr.mxu0 0.0
    %1577 = vmatpush1.msra.mxu0 0.0
    %1578 = vmatprep.subr.mxu0 0.0
    %1579 = vmatpush1.msra.mxu0 0.0
    %1580 = vmatprep.subr.mxu0 0.0
    %1581 = vmatpush1.msra.mxu0 0.0
    %1582 = vmatprep.subr.mxu0 0.0
    %1583 = vmatpush1.msra.mxu0 0.0
    %1584 = vmatprep.subr.mxu0 0.0
    %1585 = vmatpush1.msra.mxu0 0.0
    %1586 = vmatprep.subr.mxu0 0.0
    %1587 = vmatpush1.msra.mxu0 0.0
    %1588 = vmatprep.subr.mxu0 0.0
    %1589 = vmatpush1.msra.mxu0 0.0
    %1590 = vmatprep.subr.mxu0 0.0
    %1591 = vmatpush1.msra.mxu0 0.0
    %1592 = vmatprep.subr.mxu0 0.0
    %1593 = vmatpush1.msra.mxu0 0.0
    %1594 = vmatprep.subr.mxu0 0.0
    %1595 = vmatpush1.msra.mxu0 0.0
    %1596 = vmatprep.subr.mxu0 0.0
    %1597 = vmatpush1.msra.mxu0 0.0
    %1598 = vmatprep.subr.mxu0 0.0
    %1599 = vmatpush1.msra.mxu0 0.0
    %1600 = vmatprep.subr.mxu0 0.0
    %1601 = vmatpush1.msra.mxu0 0.0
    %1602 = vmatprep.subr.mxu0 0.0
    %1603 = vmatpush1.msra.mxu0 0.0
    %1604 = vmatprep.subr.mxu0 0.0
    %1605 = vmatpush1.msra.mxu0 0.0
    %1606 = vmatprep.subr.mxu0 0.0
    %1607 = vmatpush1.msra.mxu0 0.0
    %1608 = vmatprep.subr.mxu0 0.0
    %1609 = vmatpush1.msra.mxu0 0.0
    %1610 = vmatprep.subr.mxu0 0.0
    %1611 = vmatpush1.msra.mxu0 0.0
    %1612 = vmatprep.subr.mxu0 0.0
    %1613 = vmatpush1.msra.mxu0 0.0
    %1614 = vmatprep.subr.mxu0 0.0
    %1615 = vmatpush1.msra.mxu0 0.0
    %1616 = vmatprep.subr.mxu0 0.0
    %1617 = vmatpush1.msra.mxu0 0.0
    %1618 = vmatprep.subr.mxu0 0.0
    %1619 = vmatpush1.msra.mxu0 0.0
    %1620 = vmatprep.subr.mxu0 0.0
    %1621 = vmatpush1.msra.mxu0 0.0
    %1622 = vmatprep.mubr.f32.mxu0 0.0
    %1623 = vmatmul.mubr.f32.gmra.mrb[0].mxu0 %v1556
    %v1624 = vpop.f32.mrb[0].mxu0
    %v1625 = vadd.f32 0.0, %v1624
    %v1626 = vpop.f32.mrb[0].mxu0
    %1627 = vdwg.mxu0
    %v1628 = vadd.f32 %v1536, %v1625
    %1629 = vst [vmem:[#allocation8] sm:$0xff] %v1628
    // Predicated region
    $region46: #{tpu_custom_call.1} parent=1 // pred_check
      _
    $region47: #{tpu_custom_call.1} parent=1 // pred_check_branch
      %1631 = sbr.rel (0) target = $region49
    $region48: #{tpu_custom_call.1} parent=1 // pred_region
      %s1633 = ssub.s32 128, 128
      %1634 = vsyncadd [#allocation4], %s1633
      %s1636 = sshll.u32 [#allocation8], 4
      %s1637 = int_to_ptr.vmem [resolvable:$true] %s1636
      %1639 = dma.vmem_to_hbm [thread:$0]  %s1637, 128, %s8, [#allocation4]
    $region49: #{tpu_custom_call.1} parent=1 // pred_fallthru
      _
    // Predicated region
    $region50: #{tpu_custom_call.1} parent=1 // pred_check
      _
    $region51: #{tpu_custom_call.1} parent=1 // pred_check_branch
      %1641 = sbr.rel (0) target = $region53
    $region52: #{tpu_custom_call.1} parent=1 // pred_region
      %1642 = dma.done [#allocation4], 128
    $region53: #{tpu_custom_call.1} parent=1 // pred_fallthru
      _
    %1643 = vsyncpa [#allocation3], 1
    %1644 = vsyncpa [#allocation6], 1
    %1645 = vsyncpa [#allocation4], 1

</llo_original>
